<compile_context>
chip_gen: v7x
topology: tpu7x:2x2x1
jax: 0.10.0
libtpu: 0.0.40
codegen_flags: <defaults>
</compile_context>

<pallas_src>
import jax
import jax.numpy as jnp
import numpy as np
from jax import lax
from jax.experimental import pallas as pl
from jax.experimental.pallas import tpu as pltpu


# ---------------------------------------------------------------------------
# Fully fused block_group kernel (one image per grid step)
# ---------------------------------------------------------------------------
def _fused_block_group_kernel(x_ref, ph_ref, phh_ref,
                              m1_ref, s1_ref, m2_ref, s2_ref, m3_ref, s3_ref,
                              eo_ref, sel_ref, m4_ref, s4_ref, o_ref):
    """All intermediates stay on-chip.

    x_ref   : (1, H, W*Cin)      lane-dense input rows
    ph_ref  : (2, H, H)          0/1 row down/up-shift matrices (conv H padding)
    phh_ref : (2, H/2, H/2)      same, for the post-pool conv
    m*_ref  : (3, K, N)          banded conv weights (one per kh tap), BN scale folded
    s*_ref  : (1, N)             folded BN shift, tiled across W
    eo_ref  : (2, H/2, H)        0/1 even/odd row selectors (max-pool rows)
    sel_ref : (W*C, W*C)         0/1 lane-group shift matrix (max-pool columns)
    o_ref   : (1, H/2, (W/2)*C)  lane-dense output rows
    """
    f32 = jnp.float32

    def conv_bn_relu(act, p_ref, m_ref, s_ref):
        # 3x3 conv (pad=1) + folded BN + ReLU.  H-shifts via 0/1 matmuls; kw taps and
        # W zero-padding are folded into the band matrices m_ref[kh].
        down = jnp.dot(p_ref[0], act, preferred_element_type=f32)  # act[h-1], 0 at top
        up = jnp.dot(p_ref[1], act, preferred_element_type=f32)    # act[h+1], 0 at bottom
        acc = jnp.dot(down, m_ref[0], preferred_element_type=f32)
        acc = acc + jnp.dot(act, m_ref[1], preferred_element_type=f32)
        acc = acc + jnp.dot(up, m_ref[2], preferred_element_type=f32)
        return jnp.maximum(acc + s_ref[...], 0.0)

    x = x_ref[0].astype(f32)
    y = conv_bn_relu(x, ph_ref, m1_ref, s1_ref)      # conv 24 / bn 25 / relu 26
    y = conv_bn_relu(y, ph_ref, m2_ref, s2_ref)      # conv 27 / bn 28 / relu 29
    y = conv_bn_relu(y, ph_ref, m3_ref, s3_ref)      # conv 30 / bn 31 / relu 32

    # MaxPool2d(2) (module 33), fused in-kernel: rows via even/odd selection matmuls
    # + max; columns via a lane-group shift matmul + max.  Pooled values land in the
    # even C-lane groups of r; the stale odd groups are killed by zero rows in m4.
    r = jnp.maximum(jnp.dot(eo_ref[0], y, preferred_element_type=f32),
                    jnp.dot(eo_ref[1], y, preferred_element_type=f32))
    r = jnp.maximum(r, jnp.dot(r, sel_ref[...], preferred_element_type=f32))

    y = conv_bn_relu(r, phh_ref, m4_ref, s4_ref)     # conv 34 / bn 35 / relu 36
    o_ref[0] = y.astype(o_ref.dtype)


# ---------------------------------------------------------------------------
# Wrapper-side matrix construction (pure JAX on tiny tensors, done once)
# ---------------------------------------------------------------------------
def _band_matrix(w_hwio, width):
    """Fold the kw taps + W zero-padding of a 3x3 conv into per-kh band matrices.

    w_hwio: (3, 3, Cin, Cout)  ->  (3, width*Cin, width*Cout) with
      M[kh, wi*Cin+ci, wo*Cout+co] = w[kh, wi-wo+1, ci, co]  (0 outside the band).
    """
    cin, cout = w_hwio.shape[2], w_hwio.shape[3]
    wi = jnp.arange(width)[:, None]
    wo = jnp.arange(width)[None, :]
    kw = wi - wo + 1
    valid = ((kw >= 0) & (kw <= 2)).astype(w_hwio.dtype)
    band = w_hwio[:, jnp.clip(kw, 0, 2), :, :]              # (3, W, W, Cin, Cout)
    band = band * valid[None, :, :, None, None]
    band = jnp.transpose(band, (0, 1, 3, 2, 4))             # (3, W, Cin, W, Cout)
    return band.reshape(3, width * cin, width * cout)


def _pooled_band_matrix(w_hwio, half_width):
    """Band matrix for conv4 reading the un-compacted pooled rows: valid pooled data
    sits in the even C-lane groups of a (2*half_width*C)-wide row; the odd groups get
    zero rows so the in-kernel garbage lanes are ignored."""
    c, cout = w_hwio.shape[2], w_hwio.shape[3]
    m = _band_matrix(w_hwio, half_width)                     # (3, Wh*C, Wh*Cout)
    m = m.reshape(3, half_width, 1, c, half_width * cout)
    m = jnp.concatenate([m, jnp.zeros_like(m)], axis=2)      # (3, Wh, 2, C, Wh*Cout)
    return m.reshape(3, 2 * half_width * c, half_width * cout)


def _colpool_shift_matrix(half_width, c):
    """0/1 matrix S with (r @ S)[:, 2*wp*C + ci] = r[:, (2*wp+1)*C + ci]."""
    eye = jnp.eye(half_width * c, dtype=jnp.float32).reshape(half_width, c,
                                                             half_width, c)
    s = jnp.zeros((half_width, 2, c, half_width, 2, c), jnp.float32)
    s = s.at[:, 1, :, :, 0, :].set(eye)
    return s.reshape(2 * half_width * c, 2 * half_width * c)


def _row_shift_matrices(n):
    """(2, n, n): [0] shifts rows down by one (act[h-1], 0 at top),
                  [1] shifts rows up by one (act[h+1], 0 at bottom)."""
    return jnp.stack([jnp.eye(n, k=-1, dtype=jnp.float32),
                      jnp.eye(n, k=1, dtype=jnp.float32)])


def _rowpool_select_matrices(h):
    """(2, h//2, h) 0/1 even/odd row selectors for the 2x2 max-pool."""
    eye = jnp.eye(h, dtype=jnp.float32)
    return jnp.stack([eye[0::2, :], eye[1::2, :]])


# ---------------------------------------------------------------------------
# block_group forward (NCHW in / NCHW out, matching the PyTorch module)
# ---------------------------------------------------------------------------
@jax.jit
def block_group_forward(x_nchw, params):
    (w1, sc1, sh1), (w2, sc2, sh2), (w3, sc3, sh3), (w4, sc4, sh4) = params
    n, cin, h, w = x_nchw.shape
    c = w1.shape[-1]
    hh, wh = h // 2, w // 2

    # Fold BN scale into the conv weights and build the lane-dense band matrices.
    m1 = _band_matrix(w1 * sc1, w)            # (3, W*Cin, W*C)
    m2 = _band_matrix(w2 * sc2, w)            # (3, W*C,   W*C)
    m3 = _band_matrix(w3 * sc3, w)
    m4 = _pooled_band_matrix(w4 * sc4, wh)    # (3, W*C,   Wh*C)
    s1 = jnp.tile(sh1, w)[None, :].astype(jnp.float32)
    s2 = jnp.tile(sh2, w)[None, :].astype(jnp.float32)
    s3 = jnp.tile(sh3, w)[None, :].astype(jnp.float32)
    s4 = jnp.tile(sh4, wh)[None, :].astype(jnp.float32)
    ph = _row_shift_matrices(h)               # (2, H, H)
    phh = _row_shift_matrices(hh)             # (2, Hh, Hh)
    eo = _rowpool_select_matrices(h)          # (2, Hh, H)
    sel = _colpool_shift_matrix(wh, c)        # (W*C, W*C)

    # NCHW -> lane-dense (N, H, W*Cin) rows (layout plumbing stays in the wrapper).
    x_rows = jnp.transpose(x_nchw, (0, 2, 3, 1)).reshape(n, h, w * cin)

    full3 = lambda b: (0, 0, 0)
    full2 = lambda b: (0, 0)
    out = pl.pallas_call(
        _fused_block_group_kernel,
        out_shape=jax.ShapeDtypeStruct((n, hh, wh * c), jnp.float32),
        grid_spec=pltpu.PrefetchScalarGridSpec(
            num_scalar_prefetch=0,
            grid=(n,),
            in_specs=[
                pl.BlockSpec((1, h, w * cin), lambda b: (b, 0, 0)),
                pl.BlockSpec((2, h, h), full3),
                pl.BlockSpec((2, hh, hh), full3),
                pl.BlockSpec((3, w * cin, w * c), full3),
                pl.BlockSpec((1, w * c), full2),
                pl.BlockSpec((3, w * c, w * c), full3),
                pl.BlockSpec((1, w * c), full2),
                pl.BlockSpec((3, w * c, w * c), full3),
                pl.BlockSpec((1, w * c), full2),
                pl.BlockSpec((2, hh, h), full3),
                pl.BlockSpec((w * c, w * c), full2),
                pl.BlockSpec((3, w * c, wh * c), full3),
                pl.BlockSpec((1, wh * c), full2),
            ],
            out_specs=pl.BlockSpec((1, hh, wh * c), lambda b: (b, 0, 0)),
        ),
        compiler_params=pltpu.CompilerParams(
            dimension_semantics=("parallel",)),
    )(x_rows, ph, phh, m1, s1, m2, s2, m3, s3, eo, sel, m4, s4)

    # Lane-dense rows -> NCHW.
    return jnp.transpose(out.reshape(n, hh, wh, c), (0, 3, 1, 2))


# ---------------------------------------------------------------------------
# Deterministic parameter construction (Conv2d + BatchNorm2d, eval-mode folded)
# ---------------------------------------------------------------------------
def make_layer_params(key, cin, cout):
    kw, kb, kg, kbeta, km, kv = jax.random.split(key, 6)
    fan_in = cin * 9
    w = jax.random.normal(kw, (3, 3, cin, cout), jnp.float32) / np.sqrt(fan_in)
    b = jax.random.uniform(kb, (cout,), jnp.float32, -0.1, 0.1)
    gamma = jax.random.uniform(kg, (cout,), jnp.float32, 0.5, 1.5)
    beta = jax.random.normal(kbeta, (cout,), jnp.float32) * 0.1
    mean = jax.random.normal(km, (cout,), jnp.float32) * 0.1
    var = jax.random.uniform(kv, (cout,), jnp.float32, 0.5, 1.5)
    eps = 1e-5
    scale = gamma / jnp.sqrt(var + eps)
    shift = beta + (b - mean) * scale
    return w, scale, shift


# ---------------------------------------------------------------------------
# Pure-JAX reference (for correctness check)
# ---------------------------------------------------------------------------
def reference_forward(x_nchw, params):
    def conv_bn_relu_ref(x, w, scale, shift):
        y = lax.conv_general_dilated(
            x, w, window_strides=(1, 1), padding=((1, 1), (1, 1)),
            dimension_numbers=("NHWC", "HWIO", "NHWC"))
        return jnp.maximum(y * scale + shift, 0.0)

    x = jnp.transpose(x_nchw, (0, 2, 3, 1))
    x = conv_bn_relu_ref(x, *params[0])
    x = conv_bn_relu_ref(x, *params[1])
    x = conv_bn_relu_ref(x, *params[2])
    x = lax.reduce_window(x, -jnp.inf, lax.max,
                          (1, 2, 2, 1), (1, 2, 2, 1), "VALID")
    x = conv_bn_relu_ref(x, *params[3])
    return jnp.transpose(x, (0, 3, 1, 2))


if __name__ == "__main__":
    key = jax.random.PRNGKey(0)
    kx, k1, k2, k3, k4 = jax.random.split(key, 5)

    in_channels, out_channels = 4, 8
    x = jax.random.normal(kx, (2, in_channels, 16, 16), jnp.float32)  # NCHW

    params = [make_layer_params(k1, in_channels, out_channels),
              make_layer_params(k2, out_channels, out_channels),
              make_layer_params(k3, out_channels, out_channels),
              make_layer_params(k4, out_channels, out_channels)]

    out = block_group_forward(x, params)
    out = jax.block_until_ready(out)
    assert out.shape == (2, out_channels, 8, 8)

    ref = reference_forward(x, params)
    np.testing.assert_allclose(np.asarray(out), np.asarray(ref),
                               rtol=2e-3, atol=2e-3)

    print("KERNEL_OK")
</pallas_src>

<mosaic_0001>
module attributes {stable_mosaic.version = 11 : i64} {
  func.func @_fused_block_group_kernel(%arg0: i32, %arg1: memref<1x16x64xf32, #tpu.memory_space<vmem>>, %arg2: memref<2x16x16xf32, #tpu.memory_space<vmem>>, %arg3: memref<2x8x8xf32, #tpu.memory_space<vmem>>, %arg4: memref<3x64x128xf32, #tpu.memory_space<vmem>>, %arg5: memref<1x128xf32, #tpu.memory_space<vmem>>, %arg6: memref<3x128x128xf32, #tpu.memory_space<vmem>>, %arg7: memref<1x128xf32, #tpu.memory_space<vmem>>, %arg8: memref<3x128x128xf32, #tpu.memory_space<vmem>>, %arg9: memref<1x128xf32, #tpu.memory_space<vmem>>, %arg10: memref<2x8x16xf32, #tpu.memory_space<vmem>>, %arg11: memref<128x128xf32, #tpu.memory_space<vmem>>, %arg12: memref<3x128x64xf32, #tpu.memory_space<vmem>>, %arg13: memref<1x64xf32, #tpu.memory_space<vmem>>, %arg14: memref<1x8x64xf32, #tpu.memory_space<vmem>>) attributes {dimension_semantics = [#tpu.dimension_semantics<parallel>], iteration_bounds = array<i64: 2>, scalar_prefetch = 0 : i64, scratch_operands = 0 : i64, tpu.core_type = #tpu.core_type<tc>, window_params = [{transform_indices = @transform_0, window_bounds = array<i64: 1, 16, 64>}, {pipeline_mode = #tpu.pipeline_mode<synchronous>, transform_indices = @transform_1, window_bounds = array<i64: 2, 16, 16>}, {pipeline_mode = #tpu.pipeline_mode<synchronous>, transform_indices = @transform_2, window_bounds = array<i64: 2, 8, 8>}, {pipeline_mode = #tpu.pipeline_mode<synchronous>, transform_indices = @transform_3, window_bounds = array<i64: 3, 64, 128>}, {pipeline_mode = #tpu.pipeline_mode<synchronous>, transform_indices = @transform_4, window_bounds = array<i64: 1, 128>}, {pipeline_mode = #tpu.pipeline_mode<synchronous>, transform_indices = @transform_5, window_bounds = array<i64: 3, 128, 128>}, {pipeline_mode = #tpu.pipeline_mode<synchronous>, transform_indices = @transform_6, window_bounds = array<i64: 1, 128>}, {pipeline_mode = #tpu.pipeline_mode<synchronous>, transform_indices = @transform_7, window_bounds = array<i64: 3, 128, 128>}, {pipeline_mode = #tpu.pipeline_mode<synchronous>, transform_indices = @transform_8, window_bounds = array<i64: 1, 128>}, {pipeline_mode = #tpu.pipeline_mode<synchronous>, transform_indices = @transform_9, window_bounds = array<i64: 2, 8, 16>}, {pipeline_mode = #tpu.pipeline_mode<synchronous>, transform_indices = @transform_10, window_bounds = array<i64: 128, 128>}, {pipeline_mode = #tpu.pipeline_mode<synchronous>, transform_indices = @transform_11, window_bounds = array<i64: 3, 128, 64>}, {pipeline_mode = #tpu.pipeline_mode<synchronous>, transform_indices = @transform_12, window_bounds = array<i64: 1, 64>}, {transform_indices = @transform_13, window_bounds = array<i64: 1, 8, 64>}]} {
    %c0 = arith.constant 0 : index
    %c0_0 = arith.constant 0 : index
    %c0_1 = arith.constant 0 : index
    %0 = vector.load %arg1[%c0, %c0_0, %c0_1] : memref<1x16x64xf32, #tpu.memory_space<vmem>>, vector<1x16x64xf32>
    %1 = vector.shape_cast %0 : vector<1x16x64xf32> to vector<16x64xf32>
    %c0_2 = arith.constant 0 : index
    %c0_3 = arith.constant 0 : index
    %c0_4 = arith.constant 0 : index
    %2 = vector.load %arg2[%c0_2, %c0_3, %c0_4] : memref<2x16x16xf32, #tpu.memory_space<vmem>>, vector<1x16x16xf32>
    %3 = vector.shape_cast %2 : vector<1x16x16xf32> to vector<16x16xf32>
    %cst = arith.constant dense<0.000000e+00> : vector<16x64xf32>
    %4 = tpu.matmul %3, %1, %cst {dimension_numbers = #tpu.dot_dimension_numbers<[1], [0], [0], [1], [0, 0, 1, 1], [], []>} : vector<16x16xf32>, vector<16x64xf32>, vector<16x64xf32> -> vector<16x64xf32>
    %c1 = arith.constant 1 : index
    %c0_5 = arith.constant 0 : index
    %c0_6 = arith.constant 0 : index
    %5 = vector.load %arg2[%c1, %c0_5, %c0_6] : memref<2x16x16xf32, #tpu.memory_space<vmem>>, vector<1x16x16xf32>
    %6 = vector.shape_cast %5 : vector<1x16x16xf32> to vector<16x16xf32>
    %cst_7 = arith.constant dense<0.000000e+00> : vector<16x64xf32>
    %7 = tpu.matmul %6, %1, %cst_7 {dimension_numbers = #tpu.dot_dimension_numbers<[1], [0], [0], [1], [0, 0, 1, 1], [], []>} : vector<16x16xf32>, vector<16x64xf32>, vector<16x64xf32> -> vector<16x64xf32>
    %c0_8 = arith.constant 0 : index
    %c0_9 = arith.constant 0 : index
    %c0_10 = arith.constant 0 : index
    %8 = vector.load %arg4[%c0_8, %c0_9, %c0_10] : memref<3x64x128xf32, #tpu.memory_space<vmem>>, vector<1x64x128xf32>
    %9 = vector.shape_cast %8 : vector<1x64x128xf32> to vector<64x128xf32>
    %cst_11 = arith.constant dense<0.000000e+00> : vector<16x128xf32>
    %10 = tpu.matmul %4, %9, %cst_11 {dimension_numbers = #tpu.dot_dimension_numbers<[1], [0], [0], [1], [0, 0, 1, 1], [], []>} : vector<16x64xf32>, vector<64x128xf32>, vector<16x128xf32> -> vector<16x128xf32>
    %c1_12 = arith.constant 1 : index
    %c0_13 = arith.constant 0 : index
    %c0_14 = arith.constant 0 : index
    %11 = vector.load %arg4[%c1_12, %c0_13, %c0_14] : memref<3x64x128xf32, #tpu.memory_space<vmem>>, vector<1x64x128xf32>
    %12 = vector.shape_cast %11 : vector<1x64x128xf32> to vector<64x128xf32>
    %cst_15 = arith.constant dense<0.000000e+00> : vector<16x128xf32>
    %13 = tpu.matmul %1, %12, %cst_15 {dimension_numbers = #tpu.dot_dimension_numbers<[1], [0], [0], [1], [0, 0, 1, 1], [], []>} : vector<16x64xf32>, vector<64x128xf32>, vector<16x128xf32> -> vector<16x128xf32>
    %14 = arith.addf %10, %13 : vector<16x128xf32>
    %c2 = arith.constant 2 : index
    %c0_16 = arith.constant 0 : index
    %c0_17 = arith.constant 0 : index
    %15 = vector.load %arg4[%c2, %c0_16, %c0_17] : memref<3x64x128xf32, #tpu.memory_space<vmem>>, vector<1x64x128xf32>
    %16 = vector.shape_cast %15 : vector<1x64x128xf32> to vector<64x128xf32>
    %cst_18 = arith.constant dense<0.000000e+00> : vector<16x128xf32>
    %17 = tpu.matmul %7, %16, %cst_18 {dimension_numbers = #tpu.dot_dimension_numbers<[1], [0], [0], [1], [0, 0, 1, 1], [], []>} : vector<16x64xf32>, vector<64x128xf32>, vector<16x128xf32> -> vector<16x128xf32>
    %18 = arith.addf %14, %17 : vector<16x128xf32>
    %c0_19 = arith.constant 0 : index
    %c0_20 = arith.constant 0 : index
    %19 = vector.load %arg5[%c0_19, %c0_20] : memref<1x128xf32, #tpu.memory_space<vmem>>, vector<1x128xf32>
    %20 = vector.broadcast %19 : vector<1x128xf32> to vector<16x128xf32>
    %21 = arith.addf %18, %20 : vector<16x128xf32>
    %cst_21 = arith.constant 0.000000e+00 : f32
    %22 = vector.broadcast %cst_21 : f32 to vector<16x128xf32>
    %23 = arith.maximumf %21, %22 : vector<16x128xf32>
    %c0_22 = arith.constant 0 : index
    %c0_23 = arith.constant 0 : index
    %c0_24 = arith.constant 0 : index
    %24 = vector.load %arg2[%c0_22, %c0_23, %c0_24] : memref<2x16x16xf32, #tpu.memory_space<vmem>>, vector<1x16x16xf32>
    %25 = vector.shape_cast %24 : vector<1x16x16xf32> to vector<16x16xf32>
    %cst_25 = arith.constant dense<0.000000e+00> : vector<16x128xf32>
    %26 = tpu.matmul %25, %23, %cst_25 {dimension_numbers = #tpu.dot_dimension_numbers<[1], [0], [0], [1], [0, 0, 1, 1], [], []>} : vector<16x16xf32>, vector<16x128xf32>, vector<16x128xf32> -> vector<16x128xf32>
    %c1_26 = arith.constant 1 : index
    %c0_27 = arith.constant 0 : index
    %c0_28 = arith.constant 0 : index
    %27 = vector.load %arg2[%c1_26, %c0_27, %c0_28] : memref<2x16x16xf32, #tpu.memory_space<vmem>>, vector<1x16x16xf32>
    %28 = vector.shape_cast %27 : vector<1x16x16xf32> to vector<16x16xf32>
    %cst_29 = arith.constant dense<0.000000e+00> : vector<16x128xf32>
    %29 = tpu.matmul %28, %23, %cst_29 {dimension_numbers = #tpu.dot_dimension_numbers<[1], [0], [0], [1], [0, 0, 1, 1], [], []>} : vector<16x16xf32>, vector<16x128xf32>, vector<16x128xf32> -> vector<16x128xf32>
    %c0_30 = arith.constant 0 : index
    %c0_31 = arith.constant 0 : index
    %c0_32 = arith.constant 0 : index
    %30 = vector.load %arg6[%c0_30, %c0_31, %c0_32] : memref<3x128x128xf32, #tpu.memory_space<vmem>>, vector<1x128x128xf32>
    %31 = vector.shape_cast %30 : vector<1x128x128xf32> to vector<128x128xf32>
    %cst_33 = arith.constant dense<0.000000e+00> : vector<16x128xf32>
    %32 = tpu.matmul %26, %31, %cst_33 {dimension_numbers = #tpu.dot_dimension_numbers<[1], [0], [0], [1], [0, 0, 1, 1], [], []>} : vector<16x128xf32>, vector<128x128xf32>, vector<16x128xf32> -> vector<16x128xf32>
    %c1_34 = arith.constant 1 : index
    %c0_35 = arith.constant 0 : index
    %c0_36 = arith.constant 0 : index
    %33 = vector.load %arg6[%c1_34, %c0_35, %c0_36] : memref<3x128x128xf32, #tpu.memory_space<vmem>>, vector<1x128x128xf32>
    %34 = vector.shape_cast %33 : vector<1x128x128xf32> to vector<128x128xf32>
    %cst_37 = arith.constant dense<0.000000e+00> : vector<16x128xf32>
    %35 = tpu.matmul %23, %34, %cst_37 {dimension_numbers = #tpu.dot_dimension_numbers<[1], [0], [0], [1], [0, 0, 1, 1], [], []>} : vector<16x128xf32>, vector<128x128xf32>, vector<16x128xf32> -> vector<16x128xf32>
    %36 = arith.addf %32, %35 : vector<16x128xf32>
    %c2_38 = arith.constant 2 : index
    %c0_39 = arith.constant 0 : index
    %c0_40 = arith.constant 0 : index
    %37 = vector.load %arg6[%c2_38, %c0_39, %c0_40] : memref<3x128x128xf32, #tpu.memory_space<vmem>>, vector<1x128x128xf32>
    %38 = vector.shape_cast %37 : vector<1x128x128xf32> to vector<128x128xf32>
    %cst_41 = arith.constant dense<0.000000e+00> : vector<16x128xf32>
    %39 = tpu.matmul %29, %38, %cst_41 {dimension_numbers = #tpu.dot_dimension_numbers<[1], [0], [0], [1], [0, 0, 1, 1], [], []>} : vector<16x128xf32>, vector<128x128xf32>, vector<16x128xf32> -> vector<16x128xf32>
    %40 = arith.addf %36, %39 : vector<16x128xf32>
    %c0_42 = arith.constant 0 : index
    %c0_43 = arith.constant 0 : index
    %41 = vector.load %arg7[%c0_42, %c0_43] : memref<1x128xf32, #tpu.memory_space<vmem>>, vector<1x128xf32>
    %42 = vector.broadcast %41 : vector<1x128xf32> to vector<16x128xf32>
    %43 = arith.addf %40, %42 : vector<16x128xf32>
    %cst_44 = arith.constant 0.000000e+00 : f32
    %44 = vector.broadcast %cst_44 : f32 to vector<16x128xf32>
    %45 = arith.maximumf %43, %44 : vector<16x128xf32>
    %c0_45 = arith.constant 0 : index
    %c0_46 = arith.constant 0 : index
    %c0_47 = arith.constant 0 : index
    %46 = vector.load %arg2[%c0_45, %c0_46, %c0_47] : memref<2x16x16xf32, #tpu.memory_space<vmem>>, vector<1x16x16xf32>
    %47 = vector.shape_cast %46 : vector<1x16x16xf32> to vector<16x16xf32>
    %cst_48 = arith.constant dense<0.000000e+00> : vector<16x128xf32>
    %48 = tpu.matmul %47, %45, %cst_48 {dimension_numbers = #tpu.dot_dimension_numbers<[1], [0], [0], [1], [0, 0, 1, 1], [], []>} : vector<16x16xf32>, vector<16x128xf32>, vector<16x128xf32> -> vector<16x128xf32>
    %c1_49 = arith.constant 1 : index
    %c0_50 = arith.constant 0 : index
    %c0_51 = arith.constant 0 : index
    %49 = vector.load %arg2[%c1_49, %c0_50, %c0_51] : memref<2x16x16xf32, #tpu.memory_space<vmem>>, vector<1x16x16xf32>
    %50 = vector.shape_cast %49 : vector<1x16x16xf32> to vector<16x16xf32>
    %cst_52 = arith.constant dense<0.000000e+00> : vector<16x128xf32>
    %51 = tpu.matmul %50, %45, %cst_52 {dimension_numbers = #tpu.dot_dimension_numbers<[1], [0], [0], [1], [0, 0, 1, 1], [], []>} : vector<16x16xf32>, vector<16x128xf32>, vector<16x128xf32> -> vector<16x128xf32>
    %c0_53 = arith.constant 0 : index
    %c0_54 = arith.constant 0 : index
    %c0_55 = arith.constant 0 : index
    %52 = vector.load %arg8[%c0_53, %c0_54, %c0_55] : memref<3x128x128xf32, #tpu.memory_space<vmem>>, vector<1x128x128xf32>
    %53 = vector.shape_cast %52 : vector<1x128x128xf32> to vector<128x128xf32>
    %cst_56 = arith.constant dense<0.000000e+00> : vector<16x128xf32>
    %54 = tpu.matmul %48, %53, %cst_56 {dimension_numbers = #tpu.dot_dimension_numbers<[1], [0], [0], [1], [0, 0, 1, 1], [], []>} : vector<16x128xf32>, vector<128x128xf32>, vector<16x128xf32> -> vector<16x128xf32>
    %c1_57 = arith.constant 1 : index
    %c0_58 = arith.constant 0 : index
    %c0_59 = arith.constant 0 : index
    %55 = vector.load %arg8[%c1_57, %c0_58, %c0_59] : memref<3x128x128xf32, #tpu.memory_space<vmem>>, vector<1x128x128xf32>
    %56 = vector.shape_cast %55 : vector<1x128x128xf32> to vector<128x128xf32>
    %cst_60 = arith.constant dense<0.000000e+00> : vector<16x128xf32>
    %57 = tpu.matmul %45, %56, %cst_60 {dimension_numbers = #tpu.dot_dimension_numbers<[1], [0], [0], [1], [0, 0, 1, 1], [], []>} : vector<16x128xf32>, vector<128x128xf32>, vector<16x128xf32> -> vector<16x128xf32>
    %58 = arith.addf %54, %57 : vector<16x128xf32>
    %c2_61 = arith.constant 2 : index
    %c0_62 = arith.constant 0 : index
    %c0_63 = arith.constant 0 : index
    %59 = vector.load %arg8[%c2_61, %c0_62, %c0_63] : memref<3x128x128xf32, #tpu.memory_space<vmem>>, vector<1x128x128xf32>
    %60 = vector.shape_cast %59 : vector<1x128x128xf32> to vector<128x128xf32>
    %cst_64 = arith.constant dense<0.000000e+00> : vector<16x128xf32>
    %61 = tpu.matmul %51, %60, %cst_64 {dimension_numbers = #tpu.dot_dimension_numbers<[1], [0], [0], [1], [0, 0, 1, 1], [], []>} : vector<16x128xf32>, vector<128x128xf32>, vector<16x128xf32> -> vector<16x128xf32>
    %62 = arith.addf %58, %61 : vector<16x128xf32>
    %c0_65 = arith.constant 0 : index
    %c0_66 = arith.constant 0 : index
    %63 = vector.load %arg9[%c0_65, %c0_66] : memref<1x128xf32, #tpu.memory_space<vmem>>, vector<1x128xf32>
    %64 = vector.broadcast %63 : vector<1x128xf32> to vector<16x128xf32>
    %65 = arith.addf %62, %64 : vector<16x128xf32>
    %cst_67 = arith.constant 0.000000e+00 : f32
    %66 = vector.broadcast %cst_67 : f32 to vector<16x128xf32>
    %67 = arith.maximumf %65, %66 : vector<16x128xf32>
    %c0_68 = arith.constant 0 : index
    %c0_69 = arith.constant 0 : index
    %c0_70 = arith.constant 0 : index
    %68 = vector.load %arg10[%c0_68, %c0_69, %c0_70] : memref<2x8x16xf32, #tpu.memory_space<vmem>>, vector<1x8x16xf32>
    %69 = vector.shape_cast %68 : vector<1x8x16xf32> to vector<8x16xf32>
    %cst_71 = arith.constant dense<0.000000e+00> : vector<8x128xf32>
    %70 = tpu.matmul %69, %67, %cst_71 {dimension_numbers = #tpu.dot_dimension_numbers<[1], [0], [0], [1], [0, 0, 1, 1], [], []>} : vector<8x16xf32>, vector<16x128xf32>, vector<8x128xf32> -> vector<8x128xf32>
    %c1_72 = arith.constant 1 : index
    %c0_73 = arith.constant 0 : index
    %c0_74 = arith.constant 0 : index
    %71 = vector.load %arg10[%c1_72, %c0_73, %c0_74] : memref<2x8x16xf32, #tpu.memory_space<vmem>>, vector<1x8x16xf32>
    %72 = vector.shape_cast %71 : vector<1x8x16xf32> to vector<8x16xf32>
    %cst_75 = arith.constant dense<0.000000e+00> : vector<8x128xf32>
    %73 = tpu.matmul %72, %67, %cst_75 {dimension_numbers = #tpu.dot_dimension_numbers<[1], [0], [0], [1], [0, 0, 1, 1], [], []>} : vector<8x16xf32>, vector<16x128xf32>, vector<8x128xf32> -> vector<8x128xf32>
    %74 = arith.maximumf %70, %73 : vector<8x128xf32>
    %c0_76 = arith.constant 0 : index
    %c0_77 = arith.constant 0 : index
    %75 = vector.load %arg11[%c0_76, %c0_77] : memref<128x128xf32, #tpu.memory_space<vmem>>, vector<128x128xf32>
    %cst_78 = arith.constant dense<0.000000e+00> : vector<8x128xf32>
    %76 = tpu.matmul %74, %75, %cst_78 {dimension_numbers = #tpu.dot_dimension_numbers<[1], [0], [0], [1], [0, 0, 1, 1], [], []>} : vector<8x128xf32>, vector<128x128xf32>, vector<8x128xf32> -> vector<8x128xf32>
    %77 = arith.maximumf %74, %76 : vector<8x128xf32>
    %c0_79 = arith.constant 0 : index
    %c0_80 = arith.constant 0 : index
    %c0_81 = arith.constant 0 : index
    %78 = vector.load %arg3[%c0_79, %c0_80, %c0_81] : memref<2x8x8xf32, #tpu.memory_space<vmem>>, vector<1x8x8xf32>
    %79 = vector.shape_cast %78 : vector<1x8x8xf32> to vector<8x8xf32>
    %cst_82 = arith.constant dense<0.000000e+00> : vector<8x128xf32>
    %80 = tpu.matmul %79, %77, %cst_82 {dimension_numbers = #tpu.dot_dimension_numbers<[1], [0], [0], [1], [0, 0, 1, 1], [], []>} : vector<8x8xf32>, vector<8x128xf32>, vector<8x128xf32> -> vector<8x128xf32>
    %c1_83 = arith.constant 1 : index
    %c0_84 = arith.constant 0 : index
    %c0_85 = arith.constant 0 : index
    %81 = vector.load %arg3[%c1_83, %c0_84, %c0_85] : memref<2x8x8xf32, #tpu.memory_space<vmem>>, vector<1x8x8xf32>
    %82 = vector.shape_cast %81 : vector<1x8x8xf32> to vector<8x8xf32>
    %cst_86 = arith.constant dense<0.000000e+00> : vector<8x128xf32>
    %83 = tpu.matmul %82, %77, %cst_86 {dimension_numbers = #tpu.dot_dimension_numbers<[1], [0], [0], [1], [0, 0, 1, 1], [], []>} : vector<8x8xf32>, vector<8x128xf32>, vector<8x128xf32> -> vector<8x128xf32>
    %c0_87 = arith.constant 0 : index
    %c0_88 = arith.constant 0 : index
    %c0_89 = arith.constant 0 : index
    %84 = vector.load %arg12[%c0_87, %c0_88, %c0_89] : memref<3x128x64xf32, #tpu.memory_space<vmem>>, vector<1x128x64xf32>
    %85 = vector.shape_cast %84 : vector<1x128x64xf32> to vector<128x64xf32>
    %cst_90 = arith.constant dense<0.000000e+00> : vector<8x64xf32>
    %86 = tpu.matmul %80, %85, %cst_90 {dimension_numbers = #tpu.dot_dimension_numbers<[1], [0], [0], [1], [0, 0, 1, 1], [], []>} : vector<8x128xf32>, vector<128x64xf32>, vector<8x64xf32> -> vector<8x64xf32>
    %c1_91 = arith.constant 1 : index
    %c0_92 = arith.constant 0 : index
    %c0_93 = arith.constant 0 : index
    %87 = vector.load %arg12[%c1_91, %c0_92, %c0_93] : memref<3x128x64xf32, #tpu.memory_space<vmem>>, vector<1x128x64xf32>
    %88 = vector.shape_cast %87 : vector<1x128x64xf32> to vector<128x64xf32>
    %cst_94 = arith.constant dense<0.000000e+00> : vector<8x64xf32>
    %89 = tpu.matmul %77, %88, %cst_94 {dimension_numbers = #tpu.dot_dimension_numbers<[1], [0], [0], [1], [0, 0, 1, 1], [], []>} : vector<8x128xf32>, vector<128x64xf32>, vector<8x64xf32> -> vector<8x64xf32>
    %90 = arith.addf %86, %89 : vector<8x64xf32>
    %c2_95 = arith.constant 2 : index
    %c0_96 = arith.constant 0 : index
    %c0_97 = arith.constant 0 : index
    %91 = vector.load %arg12[%c2_95, %c0_96, %c0_97] : memref<3x128x64xf32, #tpu.memory_space<vmem>>, vector<1x128x64xf32>
    %92 = vector.shape_cast %91 : vector<1x128x64xf32> to vector<128x64xf32>
    %cst_98 = arith.constant dense<0.000000e+00> : vector<8x64xf32>
    %93 = tpu.matmul %83, %92, %cst_98 {dimension_numbers = #tpu.dot_dimension_numbers<[1], [0], [0], [1], [0, 0, 1, 1], [], []>} : vector<8x128xf32>, vector<128x64xf32>, vector<8x64xf32> -> vector<8x64xf32>
    %94 = arith.addf %90, %93 : vector<8x64xf32>
    %c0_99 = arith.constant 0 : index
    %c0_100 = arith.constant 0 : index
    %95 = vector.load %arg13[%c0_99, %c0_100] : memref<1x64xf32, #tpu.memory_space<vmem>>, vector<1x64xf32>
    %96 = vector.broadcast %95 : vector<1x64xf32> to vector<8x64xf32>
    %97 = arith.addf %94, %96 : vector<8x64xf32>
    %cst_101 = arith.constant 0.000000e+00 : f32
    %98 = vector.broadcast %cst_101 : f32 to vector<8x64xf32>
    %99 = arith.maximumf %97, %98 : vector<8x64xf32>
    %c0_102 = arith.constant 0 : index
    %c0_103 = arith.constant 0 : index
    %c0_104 = arith.constant 0 : index
    %100 = vector.load %arg14[%c0_102, %c0_103, %c0_104] : memref<1x8x64xf32, #tpu.memory_space<vmem>>, vector<1x8x64xf32>
    %101 = vector.shape_cast %100 : vector<1x8x64xf32> to vector<8x64xf32>
    %102 = vector.shape_cast %99 : vector<8x64xf32> to vector<1x8x64xf32>
    tpu.vector_store %arg14[%c0_102, %c0_103, %c0_104], %102 {strides = array<i32>} : memref<1x8x64xf32, #tpu.memory_space<vmem>>, vector<1x8x64xf32>,
    return
  }
  func.func @transform_0(%arg0: i32) -> (i32, i32, i32) {
    %c0_i32 = arith.constant 0 : i32
    %c0_i32_0 = arith.constant 0 : i32
    %c0_i32_1 = arith.constant 0 : i32
    return %arg0, %c0_i32, %c0_i32_0 : i32, i32, i32
  }
  func.func @transform_1(%arg0: i32) -> (i32, i32, i32) {
    %c0_i32 = arith.constant 0 : i32
    %c0_i32_0 = arith.constant 0 : i32
    %c0_i32_1 = arith.constant 0 : i32
    %c0_i32_2 = arith.constant 0 : i32
    return %c0_i32, %c0_i32_0, %c0_i32_1 : i32, i32, i32
  }
  func.func @transform_2(%arg0: i32) -> (i32, i32, i32) {
    %c0_i32 = arith.constant 0 : i32
    %c0_i32_0 = arith.constant 0 : i32
    %c0_i32_1 = arith.constant 0 : i32
    %c0_i32_2 = arith.constant 0 : i32
    return %c0_i32, %c0_i32_0, %c0_i32_1 : i32, i32, i32
  }
  func.func @transform_3(%arg0: i32) -> (i32, i32, i32) {
    %c0_i32 = arith.constant 0 : i32
    %c0_i32_0 = arith.constant 0 : i32
    %c0_i32_1 = arith.constant 0 : i32
    %c0_i32_2 = arith.constant 0 : i32
    return %c0_i32, %c0_i32_0, %c0_i32_1 : i32, i32, i32
  }
  func.func @transform_4(%arg0: i32) -> (i32, i32) {
    %c0_i32 = arith.constant 0 : i32
    %c0_i32_0 = arith.constant 0 : i32
    %c0_i32_1 = arith.constant 0 : i32
    return %c0_i32, %c0_i32_0 : i32, i32
  }
  func.func @transform_5(%arg0: i32) -> (i32, i32, i32) {
    %c0_i32 = arith.constant 0 : i32
    %c0_i32_0 = arith.constant 0 : i32
    %c0_i32_1 = arith.constant 0 : i32
    %c0_i32_2 = arith.constant 0 : i32
    return %c0_i32, %c0_i32_0, %c0_i32_1 : i32, i32, i32
  }
  func.func @transform_6(%arg0: i32) -> (i32, i32) {
    %c0_i32 = arith.constant 0 : i32
    %c0_i32_0 = arith.constant 0 : i32
    %c0_i32_1 = arith.constant 0 : i32
    return %c0_i32, %c0_i32_0 : i32, i32
  }
  func.func @transform_7(%arg0: i32) -> (i32, i32, i32) {
    %c0_i32 = arith.constant 0 : i32
    %c0_i32_0 = arith.constant 0 : i32
    %c0_i32_1 = arith.constant 0 : i32
    %c0_i32_2 = arith.constant 0 : i32
    return %c0_i32, %c0_i32_0, %c0_i32_1 : i32, i32, i32
  }
  func.func @transform_8(%arg0: i32) -> (i32, i32) {
    %c0_i32 = arith.constant 0 : i32
    %c0_i32_0 = arith.constant 0 : i32
    %c0_i32_1 = arith.constant 0 : i32
    return %c0_i32, %c0_i32_0 : i32, i32
  }
  func.func @transform_9(%arg0: i32) -> (i32, i32, i32) {
    %c0_i32 = arith.constant 0 : i32
    %c0_i32_0 = arith.constant 0 : i32
    %c0_i32_1 = arith.constant 0 : i32
    %c0_i32_2 = arith.constant 0 : i32
    return %c0_i32, %c0_i32_0, %c0_i32_1 : i32, i32, i32
  }
  func.func @transform_10(%arg0: i32) -> (i32, i32) {
    %c0_i32 = arith.constant 0 : i32
    %c0_i32_0 = arith.constant 0 : i32
    %c0_i32_1 = arith.constant 0 : i32
    return %c0_i32, %c0_i32_0 : i32, i32
  }
  func.func @transform_11(%arg0: i32) -> (i32, i32, i32) {
    %c0_i32 = arith.constant 0 : i32
    %c0_i32_0 = arith.constant 0 : i32
    %c0_i32_1 = arith.constant 0 : i32
    %c0_i32_2 = arith.constant 0 : i32
    return %c0_i32, %c0_i32_0, %c0_i32_1 : i32, i32, i32
  }
  func.func @transform_12(%arg0: i32) -> (i32, i32) {
    %c0_i32 = arith.constant 0 : i32
    %c0_i32_0 = arith.constant 0 : i32
    %c0_i32_1 = arith.constant 0 : i32
    return %c0_i32, %c0_i32_0 : i32, i32
  }
  func.func @transform_13(%arg0: i32) -> (i32, i32, i32) {
    %c0_i32 = arith.constant 0 : i32
    %c0_i32_0 = arith.constant 0 : i32
    %c0_i32_1 = arith.constant 0 : i32
    return %arg0, %c0_i32, %c0_i32_0 : i32, i32, i32
  }
}

</mosaic_0001>

<llo_original>
// kernel: tile.23
$region0: #{tile.23}
  #allocation0 [shape = 's32[1]{0}', space=sflag, size = 0x4, scoped, tag = 'scoped memory for tile.23']
  %s0 = inlined_call_operand.vmem [shape: f32[8], index: 0, kind: input, shape index: {}]
  %s1 = inlined_call_operand.vmem [shape: f32[16,8], index: 1, kind: output, shape index: {}]
  // Predicated region
  $region2: #{tile.23} parent=0 // pred_check
    _
  $region3: #{tile.23} parent=0 // pred_check_branch
    %3 = sbr.rel (0) target = $region5
  $region4: #{tile.23} parent=0 // pred_region
    _
  $region5: #{tile.23} parent=0 // pred_fallthru
    _
  %v4 = vld [vmem:[%s0] ss:$0 sm:$0xff]
  %5 = vst [vmem:[%s1] sm:$0xff] %v4
  %s6 = scalar_lea.vmem %s1, 8
  %7 = vst [vmem:[%s6] sm:$0xff] %v4

// kernel: tile.24
$region0: #{tile.24}
  %s0 = inlined_call_operand.vmem [shape: f32[16,8], index: 0, kind: input, shape index: {}]
  %s1 = inlined_call_operand.vmem [shape: f32[1,128], index: 1, kind: output, shape index: {}]
  $region1: #{tile.24} parent=0
    #allocation0 [shape = 'u8[4096]{0}', space=vmem, size = 0x1000, scoped, tag = 'scoped mem for output reshape']
    %v2 = vld [vmem:[%s0] sm:$0x1]
    %vm3 = vcmask 64512
    %4 = vst.msk [vmem:[#allocation0] sm:$0x1] %vm3, %v2
    %s5 = scalar_lea.vmem %s0, 15
    %v6 = vld [vmem:[%s5] sm:$0x1]
    %7 = vrot.lane.b32.xlu0 %v6, 120
    %v8 = vpop.permute.xlu0 %7
    %vm9 = vcmask 1048512
    %10 = vst.msk [vmem:[#allocation0] sm:$0x1] %vm9, %v8
    %s11 = scalar_lea.vmem %s0, 14
    %v12 = vld [vmem:[%s11] sm:$0x1]
    %13 = vrot.lane.b32.xlu0 %v12, 112
    %v14 = vpop.permute.xlu0 %13
    %vm15 = vcmask 982912
    %16 = vst.msk [vmem:[#allocation0] sm:$0x1] %vm15, %v14
    %s17 = scalar_lea.vmem %s0, 13
    %v18 = vld [vmem:[%s17] sm:$0x1]
    %19 = vrot.lane.b32.xlu0 %v18, 104
    %v20 = vpop.permute.xlu0 %19
    %vm21 = vcmask 917312
    %22 = vst.msk [vmem:[#allocation0] sm:$0x1] %vm21, %v20
    %s23 = scalar_lea.vmem %s0, 12
    %v24 = vld [vmem:[%s23] sm:$0x1]
    %25 = vrot.lane.b32.xlu0 %v24, 96
    %v26 = vpop.permute.xlu0 %25
    %vm27 = vcmask 851712
    %28 = vst.msk [vmem:[#allocation0] sm:$0x1] %vm27, %v26
    %s29 = scalar_lea.vmem %s0, 11
    %v30 = vld [vmem:[%s29] sm:$0x1]
    %31 = vrot.lane.b32.xlu0 %v30, 88
    %v32 = vpop.permute.xlu0 %31
    %vm33 = vcmask 786112
    %34 = vst.msk [vmem:[#allocation0] sm:$0x1] %vm33, %v32
    %s35 = scalar_lea.vmem %s0, 10
    %v36 = vld [vmem:[%s35] sm:$0x1]
    %37 = vrot.lane.b32.xlu0 %v36, 80
    %v38 = vpop.permute.xlu0 %37
    %vm39 = vcmask 720512
    %40 = vst.msk [vmem:[#allocation0] sm:$0x1] %vm39, %v38
    %s41 = scalar_lea.vmem %s0, 9
    %v42 = vld [vmem:[%s41] sm:$0x1]
    %43 = vrot.lane.b32.xlu0 %v42, 72
    %v44 = vpop.permute.xlu0 %43
    %vm45 = vcmask 654912
    %46 = vst.msk [vmem:[#allocation0] sm:$0x1] %vm45, %v44
    %s47 = scalar_lea.vmem %s0, 8
    %v48 = vld [vmem:[%s47] sm:$0x1]
    %49 = vrot.lane.b32.xlu0 %v48, 64
    %v50 = vpop.permute.xlu0 %49
    %vm51 = vcmask 589312
    %52 = vst.msk [vmem:[#allocation0] sm:$0x1] %vm51, %v50
    %s53 = scalar_lea.vmem %s0, 7
    %v54 = vld [vmem:[%s53] sm:$0x1]
    %55 = vrot.lane.b32.xlu0 %v54, 56
    %v56 = vpop.permute.xlu0 %55
    %vm57 = vcmask 523712
    %58 = vst.msk [vmem:[#allocation0] sm:$0x1] %vm57, %v56
    %s59 = scalar_lea.vmem %s0, 6
    %v60 = vld [vmem:[%s59] sm:$0x1]
    %61 = vrot.lane.b32.xlu0 %v60, 48
    %v62 = vpop.permute.xlu0 %61
    %vm63 = vcmask 458112
    %64 = vst.msk [vmem:[#allocation0] sm:$0x1] %vm63, %v62
    %s65 = scalar_lea.vmem %s0, 5
    %v66 = vld [vmem:[%s65] sm:$0x1]
    %67 = vrot.lane.b32.xlu0 %v66, 40
    %v68 = vpop.permute.xlu0 %67
    %vm69 = vcmask 392512
    %70 = vst.msk [vmem:[#allocation0] sm:$0x1] %vm69, %v68
    %s71 = scalar_lea.vmem %s0, 4
    %v72 = vld [vmem:[%s71] sm:$0x1]
    %73 = vrot.lane.b32.xlu0 %v72, 32
    %v74 = vpop.permute.xlu0 %73
    %vm75 = vcmask 326912
    %76 = vst.msk [vmem:[#allocation0] sm:$0x1] %vm75, %v74
    %s77 = scalar_lea.vmem %s0, 3
    %v78 = vld [vmem:[%s77] sm:$0x1]
    %79 = vrot.lane.b32.xlu0 %v78, 24
    %v80 = vpop.permute.xlu0 %79
    %vm81 = vcmask 261312
    %82 = vst.msk [vmem:[#allocation0] sm:$0x1] %vm81, %v80
    %s83 = scalar_lea.vmem %s0, 2
    %v84 = vld [vmem:[%s83] sm:$0x1]
    %85 = vrot.lane.b32.xlu0 %v84, 16
    %v86 = vpop.permute.xlu0 %85
    %vm87 = vcmask 195712
    %88 = vst.msk [vmem:[#allocation0] sm:$0x1] %vm87, %v86
    %s89 = scalar_lea.vmem %s0, 1
    %v90 = vld [vmem:[%s89] sm:$0x1]
    %91 = vrot.lane.b32.xlu0 %v90, 8
    %v92 = vpop.permute.xlu0 %91
    %vm93 = vcmask 130112
    %94 = vst.msk [vmem:[#allocation0] sm:$0x1] %vm93, %v92
    %s96 = sshllo.u32 0, 1
    %v98 = vld [vmem:[#allocation0] sm:%s96]
    %s99 = sshllo.u32 0, 1
    %100 = vst [vmem:[%s1] sm:%s99] %v98

// kernel: tile.38
$region0: #{tile.38}
  #allocation0 [shape = 's32[1]{0}', space=sflag, size = 0x4, scoped, tag = 'scoped memory for tile.38']
  %s0 = inlined_call_operand.vmem [shape: f32[8], index: 0, kind: input, shape index: {}]
  %s1 = inlined_call_operand.vmem [shape: f32[8,8], index: 1, kind: output, shape index: {}]
  // Predicated region
  $region2: #{tile.38} parent=0 // pred_check
    _
  $region3: #{tile.38} parent=0 // pred_check_branch
    %3 = sbr.rel (0) target = $region5
  $region4: #{tile.38} parent=0 // pred_region
    _
  $region5: #{tile.38} parent=0 // pred_fallthru
    _
  %v4 = vld [vmem:[%s0] ss:$0 sm:$0xff]
  %5 = vst [vmem:[%s1] sm:$0xff] %v4

// kernel: tile.39
$region0: #{tile.39}
  %s0 = inlined_call_operand.vmem [shape: f32[8,8], index: 0, kind: input, shape index: {}]
  %s1 = inlined_call_operand.vmem [shape: f32[1,64], index: 1, kind: output, shape index: {}]
  $region1: #{tile.39} parent=0
    #allocation0 [shape = 'u8[4096]{0}', space=vmem, size = 0x1000, scoped, tag = 'scoped mem for output reshape']
    %v2 = vld [vmem:[%s0] sm:$0x1]
    %vm3 = vcmask 64512
    %4 = vst.msk [vmem:[#allocation0] sm:$0x1] %vm3, %v2
    %s5 = scalar_lea.vmem %s0, 7
    %v6 = vld [vmem:[%s5] sm:$0x1]
    %7 = vrot.lane.b32.xlu0 %v6, 56
    %v8 = vpop.permute.xlu0 %7
    %vm9 = vcmask 523712
    %10 = vst.msk [vmem:[#allocation0] sm:$0x1] %vm9, %v8
    %s11 = scalar_lea.vmem %s0, 6
    %v12 = vld [vmem:[%s11] sm:$0x1]
    %13 = vrot.lane.b32.xlu0 %v12, 48
    %v14 = vpop.permute.xlu0 %13
    %vm15 = vcmask 458112
    %16 = vst.msk [vmem:[#allocation0] sm:$0x1] %vm15, %v14
    %s17 = scalar_lea.vmem %s0, 5
    %v18 = vld [vmem:[%s17] sm:$0x1]
    %19 = vrot.lane.b32.xlu0 %v18, 40
    %v20 = vpop.permute.xlu0 %19
    %vm21 = vcmask 392512
    %22 = vst.msk [vmem:[#allocation0] sm:$0x1] %vm21, %v20
    %s23 = scalar_lea.vmem %s0, 4
    %v24 = vld [vmem:[%s23] sm:$0x1]
    %25 = vrot.lane.b32.xlu0 %v24, 32
    %v26 = vpop.permute.xlu0 %25
    %vm27 = vcmask 326912
    %28 = vst.msk [vmem:[#allocation0] sm:$0x1] %vm27, %v26
    %s29 = scalar_lea.vmem %s0, 3
    %v30 = vld [vmem:[%s29] sm:$0x1]
    %31 = vrot.lane.b32.xlu0 %v30, 24
    %v32 = vpop.permute.xlu0 %31
    %vm33 = vcmask 261312
    %34 = vst.msk [vmem:[#allocation0] sm:$0x1] %vm33, %v32
    %s35 = scalar_lea.vmem %s0, 2
    %v36 = vld [vmem:[%s35] sm:$0x1]
    %37 = vrot.lane.b32.xlu0 %v36, 16
    %v38 = vpop.permute.xlu0 %37
    %vm39 = vcmask 195712
    %40 = vst.msk [vmem:[#allocation0] sm:$0x1] %vm39, %v38
    %s41 = scalar_lea.vmem %s0, 1
    %v42 = vld [vmem:[%s41] sm:$0x1]
    %43 = vrot.lane.b32.xlu0 %v42, 8
    %v44 = vpop.permute.xlu0 %43
    %vm45 = vcmask 130112
    %46 = vst.msk [vmem:[#allocation0] sm:$0x1] %vm45, %v44
    %s48 = sshllo.u32 0, 1
    %v50 = vld [vmem:[#allocation0] sm:%s48]
    %s51 = sshllo.u32 0, 1
    %52 = vst [vmem:[%s1] sm:%s51] %v50

// kernel: block_group_forward.1
$region0: #{block_group_forward.1}
  #allocation0 [shape = 'u32[]', space=smem, size = 0x4, offset = 0x4, fixed_abs, tag = 'smem constant byte address 0x4 - core index']
  #allocation1 [shape = 'u32[144,128]{1,0:T(1,128)}', space=vmem, size = 0x12000, scoped, tag = 'internal scratch']
  %s0 = inlined_call_operand.vmem [shape: f32[2,16,64], index: 0, kind: input, shape index: {}]
  %s1 = inlined_call_operand.vmem [shape: f32[2,16,16], index: 1, kind: input, shape index: {}]
  %s2 = inlined_call_operand.vmem [shape: f32[2,8,8], index: 2, kind: input, shape index: {}]
  %s3 = inlined_call_operand.vmem [shape: f32[3,64,128], index: 3, kind: input, shape index: {}]
  %s4 = inlined_call_operand.vmem [shape: f32[1,128], index: 4, kind: input, shape index: {}]
  %s5 = inlined_call_operand.vmem [shape: f32[3,128,128], index: 5, kind: input, shape index: {}]
  %s6 = inlined_call_operand.vmem [shape: f32[1,128], index: 6, kind: input, shape index: {}]
  %s7 = inlined_call_operand.vmem [shape: f32[3,128,128], index: 7, kind: input, shape index: {}]
  %s8 = inlined_call_operand.vmem [shape: f32[1,128], index: 8, kind: input, shape index: {}]
  %s9 = inlined_call_operand.vmem [shape: f32[2,8,16], index: 9, kind: input, shape index: {}]
  %s10 = inlined_call_operand.vmem [shape: f32[128,128], index: 10, kind: input, shape index: {}]
  %s11 = inlined_call_operand.vmem [shape: f32[3,128,64], index: 11, kind: input, shape index: {}]
  %s12 = inlined_call_operand.vmem [shape: f32[1,64], index: 12, kind: input, shape index: {}]
  %s13 = inlined_call_operand.vmem [shape: f32[2,8,64], index: 13, kind: output, shape index: {}]
  %s14 = sld [smem:[#allocation0]]
  $region85: #{block_group_forward.1} parent=0
    _
  %s16 = ssub.s32 1, %s14
  %s17 = scalar_select 0, %s16, %s14
  loop: start=0, step=1, limit=4
  $region2: #{block_group_forward.1} parent=0 // loop_pre_header
    _
  $region3: #{block_group_forward.1} parent=0 // loop_header
    %s19 = sphi 0, %s23
    %p20 = scmp.ge.s32.totalorder %s19, 4
    %s29 = sphi 0, %s31
    %s32 = sphi 0, %s29
    %s33 = sphi 0, %s32
    %s49 = sphi 0, %s33
    %s53 = sphi 0, %s53
    %s55 = sphi 0, %s53
    %s56 = sphi 0, %s55
    %s70 = sphi 0, %s56
    %s74 = sphi 0, %s74
    %s76 = sphi 0, %s74
    %s77 = sphi 0, %s76
    %s91 = sphi 0, %s77
    %s95 = sphi 0, %s95
    %s97 = sphi 0, %s95
    %s98 = sphi 0, %s97
    %s112 = sphi 0, %s98
    %s116 = sphi 0, %s116
    %s118 = sphi 0, %s116
    %s119 = sphi 0, %s118
    %s133 = sphi 0, %s119
    %s137 = sphi 0, %s137
    %s139 = sphi 0, %s137
    %s140 = sphi 0, %s139
    %s154 = sphi 0, %s140
    %s158 = sphi 0, %s158
    %s160 = sphi 0, %s158
    %s161 = sphi 0, %s160
    %s175 = sphi 0, %s161
    %s179 = sphi 0, %s179
    %s181 = sphi 0, %s179
    %s182 = sphi 0, %s181
    %s196 = sphi 0, %s182
    %s200 = sphi 0, %s200
    %s202 = sphi 0, %s200
    %s203 = sphi 0, %s202
    %s217 = sphi 0, %s203
    %s221 = sphi 0, %s221
    %s223 = sphi 0, %s221
    %s224 = sphi 0, %s223
    %s238 = sphi 0, %s224
    %s242 = sphi 0, %s242
    %s244 = sphi 0, %s242
    %s245 = sphi 0, %s244
    %s259 = sphi 0, %s245
    %s263 = sphi 0, %s263
    %s265 = sphi 0, %s263
    %s266 = sphi 0, %s265
    %s280 = sphi 0, %s266
    %s284 = sphi 0, %s284
    %s286 = sphi 0, %s284
    %s287 = sphi 0, %s286
    %s301 = sphi 0, %s287
    %s307 = sphi 0, %s309
    %s310 = sphi 0, %s307
    %s311 = sphi 0, %s310
    %s327 = sphi 0, %s311
  $region4: #{block_group_forward.1} parent=0 // loop_header_branch
    %22 = sbr.rel (%p20) target = $region8
  $region5: #{block_group_forward.1} parent=0 // loop_body
    %s24 = ssub.s32 %s19, 1
    %s25 = ssub.s32 %s19, 2
    %s26 = sadd.s32 %s19, 1
    %s27 = ssub.s32 %s19, %s26
    %p28 = scmp.eq.s32.totalorder %s27, 0
    %s30 = sadd.s32 %s29, 1
    %s31 = scalar_select %p28, %s29, %s30
    %p34 = pneg %p28
    %p35 = scmp.eq.s32.totalorder %s19, 1
    %p36 = por %p34, %p35
    %p37 = scmp.ne.s32.totalorder %s29, %s32
    %p38 = scmp.eq.s32.totalorder %s19, 0
    %p39 = por %p37, %p38
    %p40 = scmp.ne.s32.totalorder %s29, %s32
    %p41 = scmp.eq.s32.totalorder %s24, 1
    %p42 = por %p40, %p41
    %p43 = scmp.ne.s32.totalorder %s32, %s33
    %p44 = scmp.eq.s32.totalorder %s24, 0
    %p45 = por %p43, %p44
    %p46 = scmp.ne.s32.totalorder %s32, %s33
    %p47 = scmp.eq.s32.totalorder %s25, 1
    %p48 = por %p46, %p47
    %p50 = scmp.ne.s32.totalorder %s33, %s49
    %p51 = scmp.eq.s32.totalorder %s25, 0
    %p52 = por %p50, %p51
    %s54 = sadd.s32 %s53, 1
    %p57 = scmp.eq.s32.totalorder %s19, 1
    %p58 = scmp.ne.s32.totalorder %s53, %s55
    %p59 = scmp.eq.s32.totalorder %s19, 0
    %p60 = por %p58, %p59
    %p61 = scmp.ne.s32.totalorder %s53, %s55
    %p62 = scmp.eq.s32.totalorder %s24, 1
    %p63 = por %p61, %p62
    %p64 = scmp.ne.s32.totalorder %s55, %s56
    %p65 = scmp.eq.s32.totalorder %s24, 0
    %p66 = por %p64, %p65
    %p67 = scmp.ne.s32.totalorder %s55, %s56
    %p68 = scmp.eq.s32.totalorder %s25, 1
    %p69 = por %p67, %p68
    %p71 = scmp.ne.s32.totalorder %s56, %s70
    %p72 = scmp.eq.s32.totalorder %s25, 0
    %p73 = por %p71, %p72
    %s75 = sadd.s32 %s74, 1
    %p78 = scmp.eq.s32.totalorder %s19, 1
    %p79 = scmp.ne.s32.totalorder %s74, %s76
    %p80 = scmp.eq.s32.totalorder %s19, 0
    %p81 = por %p79, %p80
    %p82 = scmp.ne.s32.totalorder %s74, %s76
    %p83 = scmp.eq.s32.totalorder %s24, 1
    %p84 = por %p82, %p83
    %p85 = scmp.ne.s32.totalorder %s76, %s77
    %p86 = scmp.eq.s32.totalorder %s24, 0
    %p87 = por %p85, %p86
    %p88 = scmp.ne.s32.totalorder %s76, %s77
    %p89 = scmp.eq.s32.totalorder %s25, 1
    %p90 = por %p88, %p89
    %p92 = scmp.ne.s32.totalorder %s77, %s91
    %p93 = scmp.eq.s32.totalorder %s25, 0
    %p94 = por %p92, %p93
    %s96 = sadd.s32 %s95, 1
    %p99 = scmp.eq.s32.totalorder %s19, 1
    %p100 = scmp.ne.s32.totalorder %s95, %s97
    %p101 = scmp.eq.s32.totalorder %s19, 0
    %p102 = por %p100, %p101
    %p103 = scmp.ne.s32.totalorder %s95, %s97
    %p104 = scmp.eq.s32.totalorder %s24, 1
    %p105 = por %p103, %p104
    %p106 = scmp.ne.s32.totalorder %s97, %s98
    %p107 = scmp.eq.s32.totalorder %s24, 0
    %p108 = por %p106, %p107
    %p109 = scmp.ne.s32.totalorder %s97, %s98
    %p110 = scmp.eq.s32.totalorder %s25, 1
    %p111 = por %p109, %p110
    %p113 = scmp.ne.s32.totalorder %s98, %s112
    %p114 = scmp.eq.s32.totalorder %s25, 0
    %p115 = por %p113, %p114
    %s117 = sadd.s32 %s116, 1
    %p120 = scmp.eq.s32.totalorder %s19, 1
    %p121 = scmp.ne.s32.totalorder %s116, %s118
    %p122 = scmp.eq.s32.totalorder %s19, 0
    %p123 = por %p121, %p122
    %p124 = scmp.ne.s32.totalorder %s116, %s118
    %p125 = scmp.eq.s32.totalorder %s24, 1
    %p126 = por %p124, %p125
    %p127 = scmp.ne.s32.totalorder %s118, %s119
    %p128 = scmp.eq.s32.totalorder %s24, 0
    %p129 = por %p127, %p128
    %p130 = scmp.ne.s32.totalorder %s118, %s119
    %p131 = scmp.eq.s32.totalorder %s25, 1
    %p132 = por %p130, %p131
    %p134 = scmp.ne.s32.totalorder %s119, %s133
    %p135 = scmp.eq.s32.totalorder %s25, 0
    %p136 = por %p134, %p135
    %s138 = sadd.s32 %s137, 1
    %p141 = scmp.eq.s32.totalorder %s19, 1
    %p142 = scmp.ne.s32.totalorder %s137, %s139
    %p143 = scmp.eq.s32.totalorder %s19, 0
    %p144 = por %p142, %p143
    %p145 = scmp.ne.s32.totalorder %s137, %s139
    %p146 = scmp.eq.s32.totalorder %s24, 1
    %p147 = por %p145, %p146
    %p148 = scmp.ne.s32.totalorder %s139, %s140
    %p149 = scmp.eq.s32.totalorder %s24, 0
    %p150 = por %p148, %p149
    %p151 = scmp.ne.s32.totalorder %s139, %s140
    %p152 = scmp.eq.s32.totalorder %s25, 1
    %p153 = por %p151, %p152
    %p155 = scmp.ne.s32.totalorder %s140, %s154
    %p156 = scmp.eq.s32.totalorder %s25, 0
    %p157 = por %p155, %p156
    %s159 = sadd.s32 %s158, 1
    %p162 = scmp.eq.s32.totalorder %s19, 1
    %p163 = scmp.ne.s32.totalorder %s158, %s160
    %p164 = scmp.eq.s32.totalorder %s19, 0
    %p165 = por %p163, %p164
    %p166 = scmp.ne.s32.totalorder %s158, %s160
    %p167 = scmp.eq.s32.totalorder %s24, 1
    %p168 = por %p166, %p167
    %p169 = scmp.ne.s32.totalorder %s160, %s161
    %p170 = scmp.eq.s32.totalorder %s24, 0
    %p171 = por %p169, %p170
    %p172 = scmp.ne.s32.totalorder %s160, %s161
    %p173 = scmp.eq.s32.totalorder %s25, 1
    %p174 = por %p172, %p173
    %p176 = scmp.ne.s32.totalorder %s161, %s175
    %p177 = scmp.eq.s32.totalorder %s25, 0
    %p178 = por %p176, %p177
    %s180 = sadd.s32 %s179, 1
    %p183 = scmp.eq.s32.totalorder %s19, 1
    %p184 = scmp.ne.s32.totalorder %s179, %s181
    %p185 = scmp.eq.s32.totalorder %s19, 0
    %p186 = por %p184, %p185
    %p187 = scmp.ne.s32.totalorder %s179, %s181
    %p188 = scmp.eq.s32.totalorder %s24, 1
    %p189 = por %p187, %p188
    %p190 = scmp.ne.s32.totalorder %s181, %s182
    %p191 = scmp.eq.s32.totalorder %s24, 0
    %p192 = por %p190, %p191
    %p193 = scmp.ne.s32.totalorder %s181, %s182
    %p194 = scmp.eq.s32.totalorder %s25, 1
    %p195 = por %p193, %p194
    %p197 = scmp.ne.s32.totalorder %s182, %s196
    %p198 = scmp.eq.s32.totalorder %s25, 0
    %p199 = por %p197, %p198
    %s201 = sadd.s32 %s200, 1
    %p204 = scmp.eq.s32.totalorder %s19, 1
    %p205 = scmp.ne.s32.totalorder %s200, %s202
    %p206 = scmp.eq.s32.totalorder %s19, 0
    %p207 = por %p205, %p206
    %p208 = scmp.ne.s32.totalorder %s200, %s202
    %p209 = scmp.eq.s32.totalorder %s24, 1
    %p210 = por %p208, %p209
    %p211 = scmp.ne.s32.totalorder %s202, %s203
    %p212 = scmp.eq.s32.totalorder %s24, 0
    %p213 = por %p211, %p212
    %p214 = scmp.ne.s32.totalorder %s202, %s203
    %p215 = scmp.eq.s32.totalorder %s25, 1
    %p216 = por %p214, %p215
    %p218 = scmp.ne.s32.totalorder %s203, %s217
    %p219 = scmp.eq.s32.totalorder %s25, 0
    %p220 = por %p218, %p219
    %s222 = sadd.s32 %s221, 1
    %p225 = scmp.eq.s32.totalorder %s19, 1
    %p226 = scmp.ne.s32.totalorder %s221, %s223
    %p227 = scmp.eq.s32.totalorder %s19, 0
    %p228 = por %p226, %p227
    %p229 = scmp.ne.s32.totalorder %s221, %s223
    %p230 = scmp.eq.s32.totalorder %s24, 1
    %p231 = por %p229, %p230
    %p232 = scmp.ne.s32.totalorder %s223, %s224
    %p233 = scmp.eq.s32.totalorder %s24, 0
    %p234 = por %p232, %p233
    %p235 = scmp.ne.s32.totalorder %s223, %s224
    %p236 = scmp.eq.s32.totalorder %s25, 1
    %p237 = por %p235, %p236
    %p239 = scmp.ne.s32.totalorder %s224, %s238
    %p240 = scmp.eq.s32.totalorder %s25, 0
    %p241 = por %p239, %p240
    %s243 = sadd.s32 %s242, 1
    %p246 = scmp.eq.s32.totalorder %s19, 1
    %p247 = scmp.ne.s32.totalorder %s242, %s244
    %p248 = scmp.eq.s32.totalorder %s19, 0
    %p249 = por %p247, %p248
    %p250 = scmp.ne.s32.totalorder %s242, %s244
    %p251 = scmp.eq.s32.totalorder %s24, 1
    %p252 = por %p250, %p251
    %p253 = scmp.ne.s32.totalorder %s244, %s245
    %p254 = scmp.eq.s32.totalorder %s24, 0
    %p255 = por %p253, %p254
    %p256 = scmp.ne.s32.totalorder %s244, %s245
    %p257 = scmp.eq.s32.totalorder %s25, 1
    %p258 = por %p256, %p257
    %p260 = scmp.ne.s32.totalorder %s245, %s259
    %p261 = scmp.eq.s32.totalorder %s25, 0
    %p262 = por %p260, %p261
    %s264 = sadd.s32 %s263, 1
    %p267 = scmp.eq.s32.totalorder %s19, 1
    %p268 = scmp.ne.s32.totalorder %s263, %s265
    %p269 = scmp.eq.s32.totalorder %s19, 0
    %p270 = por %p268, %p269
    %p271 = scmp.ne.s32.totalorder %s263, %s265
    %p272 = scmp.eq.s32.totalorder %s24, 1
    %p273 = por %p271, %p272
    %p274 = scmp.ne.s32.totalorder %s265, %s266
    %p275 = scmp.eq.s32.totalorder %s24, 0
    %p276 = por %p274, %p275
    %p277 = scmp.ne.s32.totalorder %s265, %s266
    %p278 = scmp.eq.s32.totalorder %s25, 1
    %p279 = por %p277, %p278
    %p281 = scmp.ne.s32.totalorder %s266, %s280
    %p282 = scmp.eq.s32.totalorder %s25, 0
    %p283 = por %p281, %p282
    %s285 = sadd.s32 %s284, 1
    %p288 = scmp.eq.s32.totalorder %s19, 1
    %p289 = scmp.ne.s32.totalorder %s284, %s286
    %p290 = scmp.eq.s32.totalorder %s19, 0
    %p291 = por %p289, %p290
    %p292 = scmp.ne.s32.totalorder %s284, %s286
    %p293 = scmp.eq.s32.totalorder %s24, 1
    %p294 = por %p292, %p293
    %p295 = scmp.ne.s32.totalorder %s286, %s287
    %p296 = scmp.eq.s32.totalorder %s24, 0
    %p297 = por %p295, %p296
    %p298 = scmp.ne.s32.totalorder %s286, %s287
    %p299 = scmp.eq.s32.totalorder %s25, 1
    %p300 = por %p298, %p299
    %p302 = scmp.ne.s32.totalorder %s287, %s301
    %p303 = scmp.eq.s32.totalorder %s25, 0
    %p304 = por %p302, %p303
    %s305 = ssub.s32 %s19, %s26
    %p306 = scmp.eq.s32.totalorder %s305, 0
    %s308 = sadd.s32 %s307, 1
    %s309 = scalar_select %p306, %s307, %s308
    %p312 = pneg %p306
    %p313 = scmp.eq.s32.totalorder %s19, 1
    %p314 = por %p312, %p313
    %p315 = scmp.ne.s32.totalorder %s307, %s310
    %p316 = scmp.eq.s32.totalorder %s19, 0
    %p317 = por %p315, %p316
    %p318 = scmp.ne.s32.totalorder %s307, %s310
    %p319 = scmp.eq.s32.totalorder %s24, 1
    %p320 = por %p318, %p319
    %p321 = scmp.ne.s32.totalorder %s310, %s311
    %p322 = scmp.eq.s32.totalorder %s24, 0
    %p323 = por %p321, %p322
    %p324 = scmp.ne.s32.totalorder %s310, %s311
    %p325 = scmp.eq.s32.totalorder %s25, 1
    %p326 = por %p324, %p325
    %p328 = scmp.ne.s32.totalorder %s311, %s327
    %p329 = scmp.eq.s32.totalorder %s25, 0
    %p330 = por %p328, %p329
    %p331 = scmp.le.s32.totalorder 1, %s19
    %p332 = scmp.lt.s32.totalorder %s19, 3
    %p333 = pnand %p331, %p332
    %p334 = pneg %p333
    // Predicated region
    $region9: #{block_group_forward.1} parent=5 // pred_check
      _
    $region10: #{block_group_forward.1} parent=5 // pred_check_branch
      %336 = sbr.rel (%p333) target = $region12
    $region11: #{block_group_forward.1} parent=5 // pred_region
      %s337 = ssub.s32 %s19, 1
      // Predicated region
      $region13: #{block_group_forward.1} parent=11 // pred_check
        %p338 = pneg %p66
      $region14: #{block_group_forward.1} parent=11 // pred_check_branch
        %340 = sbr.rel (%p338) target = $region16
      $region15: #{block_group_forward.1} parent=11 // pred_region
        _
      $region16: #{block_group_forward.1} parent=11 // pred_fallthru
        _
      // Predicated region
      $region17: #{block_group_forward.1} parent=11 // pred_check
        %p341 = pneg %p87
      $region18: #{block_group_forward.1} parent=11 // pred_check_branch
        %343 = sbr.rel (%p341) target = $region20
      $region19: #{block_group_forward.1} parent=11 // pred_region
        _
      $region20: #{block_group_forward.1} parent=11 // pred_fallthru
        _
      // Predicated region
      $region21: #{block_group_forward.1} parent=11 // pred_check
        %p344 = pneg %p108
      $region22: #{block_group_forward.1} parent=11 // pred_check_branch
        %346 = sbr.rel (%p344) target = $region24
      $region23: #{block_group_forward.1} parent=11 // pred_region
        _
      $region24: #{block_group_forward.1} parent=11 // pred_fallthru
        _
      // Predicated region
      $region25: #{block_group_forward.1} parent=11 // pred_check
        %p347 = pneg %p129
      $region26: #{block_group_forward.1} parent=11 // pred_check_branch
        %349 = sbr.rel (%p347) target = $region28
      $region27: #{block_group_forward.1} parent=11 // pred_region
        _
      $region28: #{block_group_forward.1} parent=11 // pred_fallthru
        _
      // Predicated region
      $region29: #{block_group_forward.1} parent=11 // pred_check
        %p350 = pneg %p150
      $region30: #{block_group_forward.1} parent=11 // pred_check_branch
        %352 = sbr.rel (%p350) target = $region32
      $region31: #{block_group_forward.1} parent=11 // pred_region
        _
      $region32: #{block_group_forward.1} parent=11 // pred_fallthru
        _
      // Predicated region
      $region33: #{block_group_forward.1} parent=11 // pred_check
        %p353 = pneg %p171
      $region34: #{block_group_forward.1} parent=11 // pred_check_branch
        %355 = sbr.rel (%p353) target = $region36
      $region35: #{block_group_forward.1} parent=11 // pred_region
        _
      $region36: #{block_group_forward.1} parent=11 // pred_fallthru
        _
      // Predicated region
      $region37: #{block_group_forward.1} parent=11 // pred_check
        %p356 = pneg %p192
      $region38: #{block_group_forward.1} parent=11 // pred_check_branch
        %358 = sbr.rel (%p356) target = $region40
      $region39: #{block_group_forward.1} parent=11 // pred_region
        _
      $region40: #{block_group_forward.1} parent=11 // pred_fallthru
        _
      // Predicated region
      $region41: #{block_group_forward.1} parent=11 // pred_check
        %p359 = pneg %p213
      $region42: #{block_group_forward.1} parent=11 // pred_check_branch
        %361 = sbr.rel (%p359) target = $region44
      $region43: #{block_group_forward.1} parent=11 // pred_region
        _
      $region44: #{block_group_forward.1} parent=11 // pred_fallthru
        _
      // Predicated region
      $region45: #{block_group_forward.1} parent=11 // pred_check
        %p362 = pneg %p234
      $region46: #{block_group_forward.1} parent=11 // pred_check_branch
        %364 = sbr.rel (%p362) target = $region48
      $region47: #{block_group_forward.1} parent=11 // pred_region
        _
      $region48: #{block_group_forward.1} parent=11 // pred_fallthru
        _
      // Predicated region
      $region49: #{block_group_forward.1} parent=11 // pred_check
        %p365 = pneg %p255
      $region50: #{block_group_forward.1} parent=11 // pred_check_branch
        %367 = sbr.rel (%p365) target = $region52
      $region51: #{block_group_forward.1} parent=11 // pred_region
        _
      $region52: #{block_group_forward.1} parent=11 // pred_fallthru
        _
      // Predicated region
      $region53: #{block_group_forward.1} parent=11 // pred_check
        %p368 = pneg %p276
      $region54: #{block_group_forward.1} parent=11 // pred_check_branch
        %370 = sbr.rel (%p368) target = $region56
      $region55: #{block_group_forward.1} parent=11 // pred_region
        _
      $region56: #{block_group_forward.1} parent=11 // pred_fallthru
        _
      // Predicated region
      $region57: #{block_group_forward.1} parent=11 // pred_check
        %p371 = pneg %p297
      $region58: #{block_group_forward.1} parent=11 // pred_check_branch
        %373 = sbr.rel (%p371) target = $region60
      $region59: #{block_group_forward.1} parent=11 // pred_region
        _
      $region60: #{block_group_forward.1} parent=11 // pred_fallthru
        _
    $region12: #{block_group_forward.1} parent=5 // pred_fallthru
      _
    %p374 = scmp.lt.s32.totalorder %s19, 2
    // Predicated region
    $region61: #{block_group_forward.1} parent=5 // pred_check
      %p375 = pneg %p374
    $region62: #{block_group_forward.1} parent=5 // pred_check_branch
      %377 = sbr.rel (%p375) target = $region64
    $region63: #{block_group_forward.1} parent=5 // pred_region
      // Predicated region
      $region65: #{block_group_forward.1} parent=63 // pred_check
        %p378 = pneg %p39
      $region66: #{block_group_forward.1} parent=63 // pred_check_branch
        %380 = sbr.rel (%p378) target = $region68
      $region67: #{block_group_forward.1} parent=63 // pred_region
        %p381 = scmp.lt.s32.totalorder %s19, 1
        %s382 = scalar_select %p381, %s19, 1
        %s383 = smul.addr %s382, 2
        %s384 = smul.addr %s383, 8
        %s385 = scalar_lea.vmem %s0, %s384
      $region68: #{block_group_forward.1} parent=63 // pred_fallthru
        _
    $region64: #{block_group_forward.1} parent=5 // pred_fallthru
      _
    %p386 = scmp.le.s32.totalorder 1, %s19
    %p387 = scmp.lt.s32.totalorder %s19, 3
    %p388 = pnand %p386, %p387
    %p389 = pneg %p388
    // Predicated region
    $region69: #{block_group_forward.1} parent=5 // pred_check
      _
    $region70: #{block_group_forward.1} parent=5 // pred_check_branch
      %391 = sbr.rel (%p388) target = $region72
    $region71: #{block_group_forward.1} parent=5 // pred_region
      %s392 = ssub.s32 %s19, 1
      %p393 = scmp.lt.s32.totalorder %s24, 1
      %s394 = scalar_select %p393, %s24, 1
      %s395 = smul.addr %s394, 2
      %s396 = smul.addr %s395, 8
      %s397 = scalar_lea.vmem %s0, %s396
      %p398 = pneg %p45
      %p399 = pneg %p42
      %p400 = pneg %p66
      %p401 = pneg %p63
      %p402 = pneg %p87
      %p403 = pneg %p84
      %p404 = pneg %p108
      %p405 = pneg %p105
      %p406 = pneg %p129
      %p407 = pneg %p126
      %p408 = pneg %p150
      %p409 = pneg %p147
      %p410 = pneg %p171
      %p411 = pneg %p168
      %p412 = pneg %p192
      %p413 = pneg %p189
      %p414 = pneg %p213
      %p415 = pneg %p210
      %p416 = pneg %p234
      %p417 = pneg %p231
      %p418 = pneg %p255
      %p419 = pneg %p252
      %p420 = pneg %p276
      %p421 = pneg %p273
      %p422 = pneg %p297
      %p423 = pneg %p294
      %p424 = pneg %p323
      %p425 = pneg %p320
      %p426 = scmp.lt.s32.totalorder %s24, 1
      %s427 = scalar_select %p426, %s24, 1
      %s428 = smul.addr %s427, 8
      %s429 = scalar_lea.vmem %s13, %s428
      %p430 = scmp.lt.s32.totalorder %s24, 1
      %s431 = scalar_select %p430, %s24, 1
      %s432 = smul.addr %s431, 2
      %s433 = smul.addr %s432, 8
      %s434 = scalar_lea.vmem %s0, %s433
      %p435 = scmp.lt.s32.totalorder %s24, 1
      %s436 = scalar_select %p435, %s24, 1
      %s437 = smul.addr %s436, 8
      %s438 = scalar_lea.vmem %s13, %s437
      %v439 = vld [vmem:[%s434] sm:$0xff]
      %v440 = vld [vmem:[%s434 + $0x8] sm:$0xff]
      %v441 = vld [vmem:[%s1] sm:$0xff]
      %v442 = vld [vmem:[%s1 + $0x8] sm:$0xff]
      %vm443 = vcmask 130048
      %v445 = vsel %vm443, %v441, 0
      %v448 = vsel %vm443, %v442, 0
      %450 = vmatprep.subr.mxu0 0.0
      %451 = vmatpush1.msra.mxu0 %v439
      %452 = vmatprep.subr.mxu0 0.0
      %453 = vmatpush1.msra.mxu0 %v440
      %454 = vmatprep.subr.mxu0 0.0
      %455 = vmatpush1.msra.mxu0 0.0
      %456 = vmatprep.subr.mxu0 0.0
      %457 = vmatpush1.msra.mxu0 0.0
      %458 = vmatprep.subr.mxu0 0.0
      %459 = vmatpush1.msra.mxu0 0.0
      %460 = vmatprep.subr.mxu0 0.0
      %461 = vmatpush1.msra.mxu0 0.0
      %462 = vmatprep.subr.mxu0 0.0
      %463 = vmatpush1.msra.mxu0 0.0
      %464 = vmatprep.subr.mxu0 0.0
      %465 = vmatpush1.msra.mxu0 0.0
      %466 = vmatprep.subr.mxu0 0.0
      %467 = vmatpush1.msra.mxu0 0.0
      %468 = vmatprep.subr.mxu0 0.0
      %469 = vmatpush1.msra.mxu0 0.0
      %470 = vmatprep.subr.mxu0 0.0
      %471 = vmatpush1.msra.mxu0 0.0
      %472 = vmatprep.subr.mxu0 0.0
      %473 = vmatpush1.msra.mxu0 0.0
      %474 = vmatprep.subr.mxu0 0.0
      %475 = vmatpush1.msra.mxu0 0.0
      %476 = vmatprep.subr.mxu0 0.0
      %477 = vmatpush1.msra.mxu0 0.0
      %478 = vmatprep.subr.mxu0 0.0
      %479 = vmatpush1.msra.mxu0 0.0
      %480 = vmatprep.subr.mxu0 0.0
      %481 = vmatpush1.msra.mxu0 0.0
      %482 = vmatprep.subr.mxu0 0.0
      %483 = vmatpush1.msra.mxu0 0.0
      %484 = vmatprep.subr.mxu0 0.0
      %485 = vmatpush1.msra.mxu0 0.0
      %486 = vmatprep.subr.mxu0 0.0
      %487 = vmatpush1.msra.mxu0 0.0
      %488 = vmatprep.subr.mxu0 0.0
      %489 = vmatpush1.msra.mxu0 0.0
      %490 = vmatprep.subr.mxu0 0.0
      %491 = vmatpush1.msra.mxu0 0.0
      %492 = vmatprep.subr.mxu0 0.0
      %493 = vmatpush1.msra.mxu0 0.0
      %494 = vmatprep.subr.mxu0 0.0
      %495 = vmatpush1.msra.mxu0 0.0
      %496 = vmatprep.subr.mxu0 0.0
      %497 = vmatpush1.msra.mxu0 0.0
      %498 = vmatprep.subr.mxu0 0.0
      %499 = vmatpush1.msra.mxu0 0.0
      %500 = vmatprep.subr.mxu0 0.0
      %501 = vmatpush1.msra.mxu0 0.0
      %502 = vmatprep.subr.mxu0 0.0
      %503 = vmatpush1.msra.mxu0 0.0
      %504 = vmatprep.subr.mxu0 0.0
      %505 = vmatpush1.msra.mxu0 0.0
      %506 = vmatprep.subr.mxu0 0.0
      %507 = vmatpush1.msra.mxu0 0.0
      %508 = vmatprep.subr.mxu0 0.0
      %509 = vmatpush1.msra.mxu0 0.0
      %510 = vmatprep.subr.mxu0 0.0
      %511 = vmatpush1.msra.mxu0 0.0
      %512 = vmatprep.subr.mxu0 0.0
      %513 = vmatpush1.msra.mxu0 0.0
      %514 = vmatprep.mubr.f32.mxu0 0.0
      %515 = vmatmul.mubr.f32.gmra.mrb[0].mxu0 %v445
      %v516 = vpop.f32.mrb[0].mxu0
      %v517 = vadd.f32 0.0, %v516
      %v518 = vpop.f32.mrb[0].mxu0
      %519 = vmatprep.mubr.f32.mxu0 0.0
      %520 = vmatmul.mubr.f32.gmra.mrb[0].mxu0 %v448
      %v521 = vpop.f32.mrb[0].mxu0
      %v522 = vadd.f32 0.0, %v521
      %v523 = vpop.f32.mrb[0].mxu0
      %524 = vdwg.mxu0
      %s525 = scalar_lea.vmem %s1, 16
      %v526 = vld [vmem:[%s525] sm:$0xff]
      %v527 = vld [vmem:[%s525 + $0x8] sm:$0xff]
      %v529 = vsel %vm443, %v526, 0
      %v532 = vsel %vm443, %v527, 0
      %534 = vmatprep.subr.mxu0 0.0
      %535 = vmatpush1.msra.mxu0 %v439
      %536 = vmatprep.subr.mxu0 0.0
      %537 = vmatpush1.msra.mxu0 %v440
      %538 = vmatprep.subr.mxu0 0.0
      %539 = vmatpush1.msra.mxu0 0.0
      %540 = vmatprep.subr.mxu0 0.0
      %541 = vmatpush1.msra.mxu0 0.0
      %542 = vmatprep.subr.mxu0 0.0
      %543 = vmatpush1.msra.mxu0 0.0
      %544 = vmatprep.subr.mxu0 0.0
      %545 = vmatpush1.msra.mxu0 0.0
      %546 = vmatprep.subr.mxu0 0.0
      %547 = vmatpush1.msra.mxu0 0.0
      %548 = vmatprep.subr.mxu0 0.0
      %549 = vmatpush1.msra.mxu0 0.0
      %550 = vmatprep.subr.mxu0 0.0
      %551 = vmatpush1.msra.mxu0 0.0
      %552 = vmatprep.subr.mxu0 0.0
      %553 = vmatpush1.msra.mxu0 0.0
      %554 = vmatprep.subr.mxu0 0.0
      %555 = vmatpush1.msra.mxu0 0.0
      %556 = vmatprep.subr.mxu0 0.0
      %557 = vmatpush1.msra.mxu0 0.0
      %558 = vmatprep.subr.mxu0 0.0
      %559 = vmatpush1.msra.mxu0 0.0
      %560 = vmatprep.subr.mxu0 0.0
      %561 = vmatpush1.msra.mxu0 0.0
      %562 = vmatprep.subr.mxu0 0.0
      %563 = vmatpush1.msra.mxu0 0.0
      %564 = vmatprep.subr.mxu0 0.0
      %565 = vmatpush1.msra.mxu0 0.0
      %566 = vmatprep.subr.mxu0 0.0
      %567 = vmatpush1.msra.mxu0 0.0
      %568 = vmatprep.subr.mxu0 0.0
      %569 = vmatpush1.msra.mxu0 0.0
      %570 = vmatprep.subr.mxu0 0.0
      %571 = vmatpush1.msra.mxu0 0.0
      %572 = vmatprep.subr.mxu0 0.0
      %573 = vmatpush1.msra.mxu0 0.0
      %574 = vmatprep.subr.mxu0 0.0
      %575 = vmatpush1.msra.mxu0 0.0
      %576 = vmatprep.subr.mxu0 0.0
      %577 = vmatpush1.msra.mxu0 0.0
      %578 = vmatprep.subr.mxu0 0.0
      %579 = vmatpush1.msra.mxu0 0.0
      %580 = vmatprep.subr.mxu0 0.0
      %581 = vmatpush1.msra.mxu0 0.0
      %582 = vmatprep.subr.mxu0 0.0
      %583 = vmatpush1.msra.mxu0 0.0
      %584 = vmatprep.subr.mxu0 0.0
      %585 = vmatpush1.msra.mxu0 0.0
      %586 = vmatprep.subr.mxu0 0.0
      %587 = vmatpush1.msra.mxu0 0.0
      %588 = vmatprep.subr.mxu0 0.0
      %589 = vmatpush1.msra.mxu0 0.0
      %590 = vmatprep.subr.mxu0 0.0
      %591 = vmatpush1.msra.mxu0 0.0
      %592 = vmatprep.subr.mxu0 0.0
      %593 = vmatpush1.msra.mxu0 0.0
      %594 = vmatprep.subr.mxu0 0.0
      %595 = vmatpush1.msra.mxu0 0.0
      %596 = vmatprep.subr.mxu0 0.0
      %597 = vmatpush1.msra.mxu0 0.0
      %598 = vmatprep.mubr.f32.mxu0 0.0
      %599 = vmatmul.mubr.f32.gmra.mrb[0].mxu0 %v529
      %v600 = vpop.f32.mrb[0].mxu0
      %v601 = vadd.f32 0.0, %v600
      %v602 = vpop.f32.mrb[0].mxu0
      %603 = vmatprep.mubr.f32.mxu0 0.0
      %604 = vmatmul.mubr.f32.gmra.mrb[0].mxu0 %v532
      %v605 = vpop.f32.mrb[0].mxu0
      %v606 = vadd.f32 0.0, %v605
      %v607 = vpop.f32.mrb[0].mxu0
      %608 = vdwg.mxu0
      %v609 = vld [vmem:[%s3] sm:$0xff]
      %v610 = vld [vmem:[%s3 + $0x8] sm:$0xff]
      %v611 = vld [vmem:[%s3 + $0x10] sm:$0xff]
      %v612 = vld [vmem:[%s3 + $0x18] sm:$0xff]
      %v613 = vld [vmem:[%s3 + $0x20] sm:$0xff]
      %v614 = vld [vmem:[%s3 + $0x28] sm:$0xff]
      %v615 = vld [vmem:[%s3 + $0x30] sm:$0xff]
      %v616 = vld [vmem:[%s3 + $0x38] sm:$0xff]
      %s617 = scalar_lea.vmem %s3, 64
      %v618 = vld [vmem:[%s617] sm:$0xff]
      %v619 = vld [vmem:[%s617 + $0x8] sm:$0xff]
      %v620 = vld [vmem:[%s617 + $0x10] sm:$0xff]
      %v621 = vld [vmem:[%s617 + $0x18] sm:$0xff]
      %v622 = vld [vmem:[%s617 + $0x20] sm:$0xff]
      %v623 = vld [vmem:[%s617 + $0x28] sm:$0xff]
      %v624 = vld [vmem:[%s617 + $0x30] sm:$0xff]
      %v625 = vld [vmem:[%s617 + $0x38] sm:$0xff]
      %vm626 = vcmask 523264
      %v628 = vsel %vm626, %v439, 0
      %v631 = vsel %vm626, %v440, 0
      %633 = vmatprep.subr.mxu0 0.0
      %634 = vmatpush1.msra.mxu0 %v618
      %635 = vmatprep.subr.mxu0 0.0
      %636 = vmatpush1.msra.mxu0 %v619
      %637 = vmatprep.subr.mxu0 0.0
      %638 = vmatpush1.msra.mxu0 %v620
      %639 = vmatprep.subr.mxu0 0.0
      %640 = vmatpush1.msra.mxu0 %v621
      %641 = vmatprep.subr.mxu0 0.0
      %642 = vmatpush1.msra.mxu0 %v622
      %643 = vmatprep.subr.mxu0 0.0
      %644 = vmatpush1.msra.mxu0 %v623
      %645 = vmatprep.subr.mxu0 0.0
      %646 = vmatpush1.msra.mxu0 %v624
      %647 = vmatprep.subr.mxu0 0.0
      %648 = vmatpush1.msra.mxu0 %v625
      %649 = vmatprep.subr.mxu0 0.0
      %650 = vmatpush1.msra.mxu0 0.0
      %651 = vmatprep.subr.mxu0 0.0
      %652 = vmatpush1.msra.mxu0 0.0
      %653 = vmatprep.subr.mxu0 0.0
      %654 = vmatpush1.msra.mxu0 0.0
      %655 = vmatprep.subr.mxu0 0.0
      %656 = vmatpush1.msra.mxu0 0.0
      %657 = vmatprep.subr.mxu0 0.0
      %658 = vmatpush1.msra.mxu0 0.0
      %659 = vmatprep.subr.mxu0 0.0
      %660 = vmatpush1.msra.mxu0 0.0
      %661 = vmatprep.subr.mxu0 0.0
      %662 = vmatpush1.msra.mxu0 0.0
      %663 = vmatprep.subr.mxu0 0.0
      %664 = vmatpush1.msra.mxu0 0.0
      %665 = vmatprep.subr.mxu0 0.0
      %666 = vmatpush1.msra.mxu0 0.0
      %667 = vmatprep.subr.mxu0 0.0
      %668 = vmatpush1.msra.mxu0 0.0
      %669 = vmatprep.subr.mxu0 0.0
      %670 = vmatpush1.msra.mxu0 0.0
      %671 = vmatprep.subr.mxu0 0.0
      %672 = vmatpush1.msra.mxu0 0.0
      %673 = vmatprep.subr.mxu0 0.0
      %674 = vmatpush1.msra.mxu0 0.0
      %675 = vmatprep.subr.mxu0 0.0
      %676 = vmatpush1.msra.mxu0 0.0
      %677 = vmatprep.subr.mxu0 0.0
      %678 = vmatpush1.msra.mxu0 0.0
      %679 = vmatprep.subr.mxu0 0.0
      %680 = vmatpush1.msra.mxu0 0.0
      %681 = vmatprep.subr.mxu0 0.0
      %682 = vmatpush1.msra.mxu0 0.0
      %683 = vmatprep.subr.mxu0 0.0
      %684 = vmatpush1.msra.mxu0 0.0
      %685 = vmatprep.subr.mxu0 0.0
      %686 = vmatpush1.msra.mxu0 0.0
      %687 = vmatprep.subr.mxu0 0.0
      %688 = vmatpush1.msra.mxu0 0.0
      %689 = vmatprep.subr.mxu0 0.0
      %690 = vmatpush1.msra.mxu0 0.0
      %691 = vmatprep.subr.mxu0 0.0
      %692 = vmatpush1.msra.mxu0 0.0
      %693 = vmatprep.subr.mxu0 0.0
      %694 = vmatpush1.msra.mxu0 0.0
      %695 = vmatprep.subr.mxu0 0.0
      %696 = vmatpush1.msra.mxu0 0.0
      %697 = vmatprep.mubr.f32.mxu0 0.0
      %698 = vmatmul.mubr.f32.gmra.mrb[0].mxu0 %v628
      %v699 = vpop.f32.mrb[0].mxu0
      %v700 = vadd.f32 0.0, %v699
      %v701 = vpop.f32.mrb[0].mxu0
      %702 = vmatprep.mubr.f32.mxu0 0.0
      %703 = vmatmul.mubr.f32.gmra.mrb[0].mxu0 %v631
      %v704 = vpop.f32.mrb[0].mxu0
      %v705 = vadd.f32 0.0, %v704
      %v706 = vpop.f32.mrb[0].mxu0
      %707 = vdwg.mxu0
      %v709 = vsel %vm626, %v517, 0
      %v712 = vsel %vm626, %v522, 0
      %714 = vmatprep.subr.mxu0 0.0
      %715 = vmatpush1.msra.mxu0 %v609
      %716 = vmatprep.subr.mxu0 0.0
      %717 = vmatpush1.msra.mxu0 %v610
      %718 = vmatprep.subr.mxu0 0.0
      %719 = vmatpush1.msra.mxu0 %v611
      %720 = vmatprep.subr.mxu0 0.0
      %721 = vmatpush1.msra.mxu0 %v612
      %722 = vmatprep.subr.mxu0 0.0
      %723 = vmatpush1.msra.mxu0 %v613
      %724 = vmatprep.subr.mxu0 0.0
      %725 = vmatpush1.msra.mxu0 %v614
      %726 = vmatprep.subr.mxu0 0.0
      %727 = vmatpush1.msra.mxu0 %v615
      %728 = vmatprep.subr.mxu0 0.0
      %729 = vmatpush1.msra.mxu0 %v616
      %730 = vmatprep.subr.mxu0 0.0
      %731 = vmatpush1.msra.mxu0 0.0
      %732 = vmatprep.subr.mxu0 0.0
      %733 = vmatpush1.msra.mxu0 0.0
      %734 = vmatprep.subr.mxu0 0.0
      %735 = vmatpush1.msra.mxu0 0.0
      %736 = vmatprep.subr.mxu0 0.0
      %737 = vmatpush1.msra.mxu0 0.0
      %738 = vmatprep.subr.mxu0 0.0
      %739 = vmatpush1.msra.mxu0 0.0
      %740 = vmatprep.subr.mxu0 0.0
      %741 = vmatpush1.msra.mxu0 0.0
      %742 = vmatprep.subr.mxu0 0.0
      %743 = vmatpush1.msra.mxu0 0.0
      %744 = vmatprep.subr.mxu0 0.0
      %745 = vmatpush1.msra.mxu0 0.0
      %746 = vmatprep.subr.mxu0 0.0
      %747 = vmatpush1.msra.mxu0 0.0
      %748 = vmatprep.subr.mxu0 0.0
      %749 = vmatpush1.msra.mxu0 0.0
      %750 = vmatprep.subr.mxu0 0.0
      %751 = vmatpush1.msra.mxu0 0.0
      %752 = vmatprep.subr.mxu0 0.0
      %753 = vmatpush1.msra.mxu0 0.0
      %754 = vmatprep.subr.mxu0 0.0
      %755 = vmatpush1.msra.mxu0 0.0
      %756 = vmatprep.subr.mxu0 0.0
      %757 = vmatpush1.msra.mxu0 0.0
      %758 = vmatprep.subr.mxu0 0.0
      %759 = vmatpush1.msra.mxu0 0.0
      %760 = vmatprep.subr.mxu0 0.0
      %761 = vmatpush1.msra.mxu0 0.0
      %762 = vmatprep.subr.mxu0 0.0
      %763 = vmatpush1.msra.mxu0 0.0
      %764 = vmatprep.subr.mxu0 0.0
      %765 = vmatpush1.msra.mxu0 0.0
      %766 = vmatprep.subr.mxu0 0.0
      %767 = vmatpush1.msra.mxu0 0.0
      %768 = vmatprep.subr.mxu0 0.0
      %769 = vmatpush1.msra.mxu0 0.0
      %770 = vmatprep.subr.mxu0 0.0
      %771 = vmatpush1.msra.mxu0 0.0
      %772 = vmatprep.subr.mxu0 0.0
      %773 = vmatpush1.msra.mxu0 0.0
      %774 = vmatprep.subr.mxu0 0.0
      %775 = vmatpush1.msra.mxu0 0.0
      %776 = vmatprep.subr.mxu0 0.0
      %777 = vmatpush1.msra.mxu0 0.0
      %778 = vmatprep.mubr.f32.mxu0 0.0
      %779 = vmatmul.mubr.f32.gmra.mrb[0].mxu0 %v709
      %v780 = vpop.f32.mrb[0].mxu0
      %v781 = vadd.f32 %v700, %v780
      %v782 = vpop.f32.mrb[0].mxu0
      %783 = vmatprep.mubr.f32.mxu0 0.0
      %784 = vmatmul.mubr.f32.gmra.mrb[0].mxu0 %v712
      %v785 = vpop.f32.mrb[0].mxu0
      %v786 = vadd.f32 %v705, %v785
      %v787 = vpop.f32.mrb[0].mxu0
      %788 = vdwg.mxu0
      %s789 = scalar_lea.vmem %s3, 128
      %v790 = vld [vmem:[%s789] sm:$0xff]
      %v791 = vld [vmem:[%s789 + $0x8] sm:$0xff]
      %v792 = vld [vmem:[%s789 + $0x10] sm:$0xff]
      %v793 = vld [vmem:[%s789 + $0x18] sm:$0xff]
      %v794 = vld [vmem:[%s789 + $0x20] sm:$0xff]
      %v795 = vld [vmem:[%s789 + $0x28] sm:$0xff]
      %v796 = vld [vmem:[%s789 + $0x30] sm:$0xff]
      %v797 = vld [vmem:[%s789 + $0x38] sm:$0xff]
      %v799 = vsel %vm626, %v601, 0
      %v802 = vsel %vm626, %v606, 0
      %804 = vmatprep.subr.mxu0 0.0
      %805 = vmatpush1.msra.mxu0 %v790
      %806 = vmatprep.subr.mxu0 0.0
      %807 = vmatpush1.msra.mxu0 %v791
      %808 = vmatprep.subr.mxu0 0.0
      %809 = vmatpush1.msra.mxu0 %v792
      %810 = vmatprep.subr.mxu0 0.0
      %811 = vmatpush1.msra.mxu0 %v793
      %812 = vmatprep.subr.mxu0 0.0
      %813 = vmatpush1.msra.mxu0 %v794
      %814 = vmatprep.subr.mxu0 0.0
      %815 = vmatpush1.msra.mxu0 %v795
      %816 = vmatprep.subr.mxu0 0.0
      %817 = vmatpush1.msra.mxu0 %v796
      %818 = vmatprep.subr.mxu0 0.0
      %819 = vmatpush1.msra.mxu0 %v797
      %820 = vmatprep.subr.mxu0 0.0
      %821 = vmatpush1.msra.mxu0 0.0
      %822 = vmatprep.subr.mxu0 0.0
      %823 = vmatpush1.msra.mxu0 0.0
      %824 = vmatprep.subr.mxu0 0.0
      %825 = vmatpush1.msra.mxu0 0.0
      %826 = vmatprep.subr.mxu0 0.0
      %827 = vmatpush1.msra.mxu0 0.0
      %828 = vmatprep.subr.mxu0 0.0
      %829 = vmatpush1.msra.mxu0 0.0
      %830 = vmatprep.subr.mxu0 0.0
      %831 = vmatpush1.msra.mxu0 0.0
      %832 = vmatprep.subr.mxu0 0.0
      %833 = vmatpush1.msra.mxu0 0.0
      %834 = vmatprep.subr.mxu0 0.0
      %835 = vmatpush1.msra.mxu0 0.0
      %836 = vmatprep.subr.mxu0 0.0
      %837 = vmatpush1.msra.mxu0 0.0
      %838 = vmatprep.subr.mxu0 0.0
      %839 = vmatpush1.msra.mxu0 0.0
      %840 = vmatprep.subr.mxu0 0.0
      %841 = vmatpush1.msra.mxu0 0.0
      %842 = vmatprep.subr.mxu0 0.0
      %843 = vmatpush1.msra.mxu0 0.0
      %844 = vmatprep.subr.mxu0 0.0
      %845 = vmatpush1.msra.mxu0 0.0
      %846 = vmatprep.subr.mxu0 0.0
      %847 = vmatpush1.msra.mxu0 0.0
      %848 = vmatprep.subr.mxu0 0.0
      %849 = vmatpush1.msra.mxu0 0.0
      %850 = vmatprep.subr.mxu0 0.0
      %851 = vmatpush1.msra.mxu0 0.0
      %852 = vmatprep.subr.mxu0 0.0
      %853 = vmatpush1.msra.mxu0 0.0
      %854 = vmatprep.subr.mxu0 0.0
      %855 = vmatpush1.msra.mxu0 0.0
      %856 = vmatprep.subr.mxu0 0.0
      %857 = vmatpush1.msra.mxu0 0.0
      %858 = vmatprep.subr.mxu0 0.0
      %859 = vmatpush1.msra.mxu0 0.0
      %860 = vmatprep.subr.mxu0 0.0
      %861 = vmatpush1.msra.mxu0 0.0
      %862 = vmatprep.subr.mxu0 0.0
      %863 = vmatpush1.msra.mxu0 0.0
      %864 = vmatprep.subr.mxu0 0.0
      %865 = vmatpush1.msra.mxu0 0.0
      %866 = vmatprep.subr.mxu0 0.0
      %867 = vmatpush1.msra.mxu0 0.0
      %868 = vmatprep.mubr.f32.mxu0 0.0
      %869 = vmatmul.mubr.f32.gmra.mrb[0].mxu0 %v799
      %v870 = vpop.f32.mrb[0].mxu0
      %v871 = vadd.f32 0.0, %v870
      %v872 = vpop.f32.mrb[0].mxu0
      %873 = vmatprep.mubr.f32.mxu0 0.0
      %874 = vmatmul.mubr.f32.gmra.mrb[0].mxu0 %v802
      %v875 = vpop.f32.mrb[0].mxu0
      %v876 = vadd.f32 0.0, %v875
      %v877 = vpop.f32.mrb[0].mxu0
      %878 = vdwg.mxu0
      %v879 = vadd.f32 %v781, %v871
      %v880 = vadd.f32 %v786, %v876
      %v881 = vld [vmem:[%s4] sm:$0x1]
      %v883 = vlaneseq
      %v884 = vshrl.u32 %v883, 7
      %v885 = vsub.s32 0, %v884
      %v886 = vrot.slane %v881, %v885
      %v888 = vadd.f32 %v879, %v886
      %v889 = vadd.f32 %v880, %v886
      %v890 = vmax.f32 %v888, 0.0
      %v891 = vmax.f32 %v889, 0.0
      %892 = vmatprep.subr.mxu0 0.0
      %893 = vmatpush1.msra.mxu0 %v890
      %894 = vmatprep.subr.mxu0 0.0
      %895 = vmatpush1.msra.mxu0 %v891
      %896 = vmatprep.subr.mxu0 0.0
      %897 = vmatpush1.msra.mxu0 0.0
      %898 = vmatprep.subr.mxu0 0.0
      %899 = vmatpush1.msra.mxu0 0.0
      %900 = vmatprep.subr.mxu0 0.0
      %901 = vmatpush1.msra.mxu0 0.0
      %902 = vmatprep.subr.mxu0 0.0
      %903 = vmatpush1.msra.mxu0 0.0
      %904 = vmatprep.subr.mxu0 0.0
      %905 = vmatpush1.msra.mxu0 0.0
      %906 = vmatprep.subr.mxu0 0.0
      %907 = vmatpush1.msra.mxu0 0.0
      %908 = vmatprep.subr.mxu0 0.0
      %909 = vmatpush1.msra.mxu0 0.0
      %910 = vmatprep.subr.mxu0 0.0
      %911 = vmatpush1.msra.mxu0 0.0
      %912 = vmatprep.subr.mxu0 0.0
      %913 = vmatpush1.msra.mxu0 0.0
      %914 = vmatprep.subr.mxu0 0.0
      %915 = vmatpush1.msra.mxu0 0.0
      %916 = vmatprep.subr.mxu0 0.0
      %917 = vmatpush1.msra.mxu0 0.0
      %918 = vmatprep.subr.mxu0 0.0
      %919 = vmatpush1.msra.mxu0 0.0
      %920 = vmatprep.subr.mxu0 0.0
      %921 = vmatpush1.msra.mxu0 0.0
      %922 = vmatprep.subr.mxu0 0.0
      %923 = vmatpush1.msra.mxu0 0.0
      %924 = vmatprep.subr.mxu0 0.0
      %925 = vmatpush1.msra.mxu0 0.0
      %926 = vmatprep.subr.mxu0 0.0
      %927 = vmatpush1.msra.mxu0 0.0
      %928 = vmatprep.subr.mxu0 0.0
      %929 = vmatpush1.msra.mxu0 0.0
      %930 = vmatprep.subr.mxu0 0.0
      %931 = vmatpush1.msra.mxu0 0.0
      %932 = vmatprep.subr.mxu0 0.0
      %933 = vmatpush1.msra.mxu0 0.0
      %934 = vmatprep.subr.mxu0 0.0
      %935 = vmatpush1.msra.mxu0 0.0
      %936 = vmatprep.subr.mxu0 0.0
      %937 = vmatpush1.msra.mxu0 0.0
      %938 = vmatprep.subr.mxu0 0.0
      %939 = vmatpush1.msra.mxu0 0.0
      %940 = vmatprep.subr.mxu0 0.0
      %941 = vmatpush1.msra.mxu0 0.0
      %942 = vmatprep.subr.mxu0 0.0
      %943 = vmatpush1.msra.mxu0 0.0
      %944 = vmatprep.subr.mxu0 0.0
      %945 = vmatpush1.msra.mxu0 0.0
      %946 = vmatprep.subr.mxu0 0.0
      %947 = vmatpush1.msra.mxu0 0.0
      %948 = vmatprep.subr.mxu0 0.0
      %949 = vmatpush1.msra.mxu0 0.0
      %950 = vmatprep.subr.mxu0 0.0
      %951 = vmatpush1.msra.mxu0 0.0
      %952 = vmatprep.subr.mxu0 0.0
      %953 = vmatpush1.msra.mxu0 0.0
      %954 = vmatprep.subr.mxu0 0.0
      %955 = vmatpush1.msra.mxu0 0.0
      %956 = vmatprep.mubr.f32.mxu0 0.0
      %957 = vmatmul.mubr.f32.gmra.mrb[0].mxu0 %v445
      %v958 = vpop.f32.mrb[0].mxu0
      %v959 = vadd.f32 0.0, %v958
      %v960 = vpop.f32.mrb[0].mxu0
      %961 = vmatprep.mubr.f32.mxu0 0.0
      %962 = vmatmul.mubr.f32.gmra.mrb[0].mxu0 %v448
      %v963 = vpop.f32.mrb[0].mxu0
      %v964 = vadd.f32 0.0, %v963
      %v965 = vpop.f32.mrb[0].mxu0
      %966 = vdwg.mxu0
      %967 = vmatprep.subr.mxu0 0.0
      %968 = vmatpush1.msra.mxu0 %v890
      %969 = vmatprep.subr.mxu0 0.0
      %970 = vmatpush1.msra.mxu0 %v891
      %971 = vmatprep.subr.mxu0 0.0
      %972 = vmatpush1.msra.mxu0 0.0
      %973 = vmatprep.subr.mxu0 0.0
      %974 = vmatpush1.msra.mxu0 0.0
      %975 = vmatprep.subr.mxu0 0.0
      %976 = vmatpush1.msra.mxu0 0.0
      %977 = vmatprep.subr.mxu0 0.0
      %978 = vmatpush1.msra.mxu0 0.0
      %979 = vmatprep.subr.mxu0 0.0
      %980 = vmatpush1.msra.mxu0 0.0
      %981 = vmatprep.subr.mxu0 0.0
      %982 = vmatpush1.msra.mxu0 0.0
      %983 = vmatprep.subr.mxu0 0.0
      %984 = vmatpush1.msra.mxu0 0.0
      %985 = vmatprep.subr.mxu0 0.0
      %986 = vmatpush1.msra.mxu0 0.0
      %987 = vmatprep.subr.mxu0 0.0
      %988 = vmatpush1.msra.mxu0 0.0
      %989 = vmatprep.subr.mxu0 0.0
      %990 = vmatpush1.msra.mxu0 0.0
      %991 = vmatprep.subr.mxu0 0.0
      %992 = vmatpush1.msra.mxu0 0.0
      %993 = vmatprep.subr.mxu0 0.0
      %994 = vmatpush1.msra.mxu0 0.0
      %995 = vmatprep.subr.mxu0 0.0
      %996 = vmatpush1.msra.mxu0 0.0
      %997 = vmatprep.subr.mxu0 0.0
      %998 = vmatpush1.msra.mxu0 0.0
      %999 = vmatprep.subr.mxu0 0.0
      %1000 = vmatpush1.msra.mxu0 0.0
      %1001 = vmatprep.subr.mxu0 0.0
      %1002 = vmatpush1.msra.mxu0 0.0
      %1003 = vmatprep.subr.mxu0 0.0
      %1004 = vmatpush1.msra.mxu0 0.0
      %1005 = vmatprep.subr.mxu0 0.0
      %1006 = vmatpush1.msra.mxu0 0.0
      %1007 = vmatprep.subr.mxu0 0.0
      %1008 = vmatpush1.msra.mxu0 0.0
      %1009 = vmatprep.subr.mxu0 0.0
      %1010 = vmatpush1.msra.mxu0 0.0
      %1011 = vmatprep.subr.mxu0 0.0
      %1012 = vmatpush1.msra.mxu0 0.0
      %1013 = vmatprep.subr.mxu0 0.0
      %1014 = vmatpush1.msra.mxu0 0.0
      %1015 = vmatprep.subr.mxu0 0.0
      %1016 = vmatpush1.msra.mxu0 0.0
      %1017 = vmatprep.subr.mxu0 0.0
      %1018 = vmatpush1.msra.mxu0 0.0
      %1019 = vmatprep.subr.mxu0 0.0
      %1020 = vmatpush1.msra.mxu0 0.0
      %1021 = vmatprep.subr.mxu0 0.0
      %1022 = vmatpush1.msra.mxu0 0.0
      %1023 = vmatprep.subr.mxu0 0.0
      %1024 = vmatpush1.msra.mxu0 0.0
      %1025 = vmatprep.subr.mxu0 0.0
      %1026 = vmatpush1.msra.mxu0 0.0
      %1027 = vmatprep.subr.mxu0 0.0
      %1028 = vmatpush1.msra.mxu0 0.0
      %1029 = vmatprep.subr.mxu0 0.0
      %1030 = vmatpush1.msra.mxu0 0.0
      %1031 = vmatprep.mubr.f32.mxu0 0.0
      %1032 = vmatmul.mubr.f32.gmra.mrb[0].mxu0 %v529
      %v1033 = vpop.f32.mrb[0].mxu0
      %v1034 = vadd.f32 0.0, %v1033
      %v1035 = vpop.f32.mrb[0].mxu0
      %1036 = vmatprep.mubr.f32.mxu0 0.0
      %1037 = vmatmul.mubr.f32.gmra.mrb[0].mxu0 %v532
      %v1038 = vpop.f32.mrb[0].mxu0
      %v1039 = vadd.f32 0.0, %v1038
      %v1040 = vpop.f32.mrb[0].mxu0
      %1041 = vdwg.mxu0
      %v1042 = vld [vmem:[%s5] sm:$0xff]
      %v1043 = vld [vmem:[%s5 + $0x8] sm:$0xff]
      %v1044 = vld [vmem:[%s5 + $0x10] sm:$0xff]
      %v1045 = vld [vmem:[%s5 + $0x18] sm:$0xff]
      %v1046 = vld [vmem:[%s5 + $0x20] sm:$0xff]
      %v1047 = vld [vmem:[%s5 + $0x28] sm:$0xff]
      %v1048 = vld [vmem:[%s5 + $0x30] sm:$0xff]
      %v1049 = vld [vmem:[%s5 + $0x38] sm:$0xff]
      %v1050 = vld [vmem:[%s5 + $0x40] sm:$0xff]
      %v1051 = vld [vmem:[%s5 + $0x48] sm:$0xff]
      %v1052 = vld [vmem:[%s5 + $0x50] sm:$0xff]
      %v1053 = vld [vmem:[%s5 + $0x58] sm:$0xff]
      %v1054 = vld [vmem:[%s5 + $0x60] sm:$0xff]
      %v1055 = vld [vmem:[%s5 + $0x68] sm:$0xff]
      %v1056 = vld [vmem:[%s5 + $0x70] sm:$0xff]
      %v1057 = vld [vmem:[%s5 + $0x78] sm:$0xff]
      %s1058 = scalar_lea.vmem %s5, 128
      %v1059 = vld [vmem:[%s1058] sm:$0xff]
      %v1060 = vld [vmem:[%s1058 + $0x8] sm:$0xff]
      %v1061 = vld [vmem:[%s1058 + $0x10] sm:$0xff]
      %v1062 = vld [vmem:[%s1058 + $0x18] sm:$0xff]
      %v1063 = vld [vmem:[%s1058 + $0x20] sm:$0xff]
      %v1064 = vld [vmem:[%s1058 + $0x28] sm:$0xff]
      %v1065 = vld [vmem:[%s1058 + $0x30] sm:$0xff]
      %v1066 = vld [vmem:[%s1058 + $0x38] sm:$0xff]
      %v1067 = vld [vmem:[%s1058 + $0x40] sm:$0xff]
      %v1068 = vld [vmem:[%s1058 + $0x48] sm:$0xff]
      %v1069 = vld [vmem:[%s1058 + $0x50] sm:$0xff]
      %v1070 = vld [vmem:[%s1058 + $0x58] sm:$0xff]
      %v1071 = vld [vmem:[%s1058 + $0x60] sm:$0xff]
      %v1072 = vld [vmem:[%s1058 + $0x68] sm:$0xff]
      %v1073 = vld [vmem:[%s1058 + $0x70] sm:$0xff]
      %v1074 = vld [vmem:[%s1058 + $0x78] sm:$0xff]
      %1075 = vmatprep.subr.mxu0 0.0
      %1076 = vmatpush1.msra.mxu0 %v1059
      %1077 = vmatprep.subr.mxu0 0.0
      %1078 = vmatpush1.msra.mxu0 %v1060
      %1079 = vmatprep.subr.mxu0 0.0
      %1080 = vmatpush1.msra.mxu0 %v1061
      %1081 = vmatprep.subr.mxu0 0.0
      %1082 = vmatpush1.msra.mxu0 %v1062
      %1083 = vmatprep.subr.mxu0 0.0
      %1084 = vmatpush1.msra.mxu0 %v1063
      %1085 = vmatprep.subr.mxu0 0.0
      %1086 = vmatpush1.msra.mxu0 %v1064
      %1087 = vmatprep.subr.mxu0 0.0
      %1088 = vmatpush1.msra.mxu0 %v1065
      %1089 = vmatprep.subr.mxu0 0.0
      %1090 = vmatpush1.msra.mxu0 %v1066
      %1091 = vmatprep.subr.mxu0 0.0
      %1092 = vmatpush1.msra.mxu0 %v1067
      %1093 = vmatprep.subr.mxu0 0.0
      %1094 = vmatpush1.msra.mxu0 %v1068
      %1095 = vmatprep.subr.mxu0 0.0
      %1096 = vmatpush1.msra.mxu0 %v1069
      %1097 = vmatprep.subr.mxu0 0.0
      %1098 = vmatpush1.msra.mxu0 %v1070
      %1099 = vmatprep.subr.mxu0 0.0
      %1100 = vmatpush1.msra.mxu0 %v1071
      %1101 = vmatprep.subr.mxu0 0.0
      %1102 = vmatpush1.msra.mxu0 %v1072
      %1103 = vmatprep.subr.mxu0 0.0
      %1104 = vmatpush1.msra.mxu0 %v1073
      %1105 = vmatprep.subr.mxu0 0.0
      %1106 = vmatpush1.msra.mxu0 %v1074
      %1107 = vmatprep.subr.mxu0 0.0
      %1108 = vmatpush1.msra.mxu0 0.0
      %1109 = vmatprep.subr.mxu0 0.0
      %1110 = vmatpush1.msra.mxu0 0.0
      %1111 = vmatprep.subr.mxu0 0.0
      %1112 = vmatpush1.msra.mxu0 0.0
      %1113 = vmatprep.subr.mxu0 0.0
      %1114 = vmatpush1.msra.mxu0 0.0
      %1115 = vmatprep.subr.mxu0 0.0
      %1116 = vmatpush1.msra.mxu0 0.0
      %1117 = vmatprep.subr.mxu0 0.0
      %1118 = vmatpush1.msra.mxu0 0.0
      %1119 = vmatprep.subr.mxu0 0.0
      %1120 = vmatpush1.msra.mxu0 0.0
      %1121 = vmatprep.subr.mxu0 0.0
      %1122 = vmatpush1.msra.mxu0 0.0
      %1123 = vmatprep.subr.mxu0 0.0
      %1124 = vmatpush1.msra.mxu0 0.0
      %1125 = vmatprep.subr.mxu0 0.0
      %1126 = vmatpush1.msra.mxu0 0.0
      %1127 = vmatprep.subr.mxu0 0.0
      %1128 = vmatpush1.msra.mxu0 0.0
      %1129 = vmatprep.subr.mxu0 0.0
      %1130 = vmatpush1.msra.mxu0 0.0
      %1131 = vmatprep.subr.mxu0 0.0
      %1132 = vmatpush1.msra.mxu0 0.0
      %1133 = vmatprep.subr.mxu0 0.0
      %1134 = vmatpush1.msra.mxu0 0.0
      %1135 = vmatprep.subr.mxu0 0.0
      %1136 = vmatpush1.msra.mxu0 0.0
      %1137 = vmatprep.subr.mxu0 0.0
      %1138 = vmatpush1.msra.mxu0 0.0
      %1139 = vmatprep.mubr.f32.mxu0 0.0
      %1140 = vmatmul.mubr.f32.gmra.mrb[0].mxu0 %v890
      %v1141 = vpop.f32.mrb[0].mxu0
      %v1142 = vadd.f32 0.0, %v1141
      %v1143 = vpop.f32.mrb[0].mxu0
      %1144 = vmatprep.mubr.f32.mxu0 0.0
      %1145 = vmatmul.mubr.f32.gmra.mrb[0].mxu0 %v891
      %v1146 = vpop.f32.mrb[0].mxu0
      %v1147 = vadd.f32 0.0, %v1146
      %v1148 = vpop.f32.mrb[0].mxu0
      %1149 = vdwg.mxu0
      %1150 = vmatprep.subr.mxu0 0.0
      %1151 = vmatpush1.msra.mxu0 %v1042
      %1152 = vmatprep.subr.mxu0 0.0
      %1153 = vmatpush1.msra.mxu0 %v1043
      %1154 = vmatprep.subr.mxu0 0.0
      %1155 = vmatpush1.msra.mxu0 %v1044
      %1156 = vmatprep.subr.mxu0 0.0
      %1157 = vmatpush1.msra.mxu0 %v1045
      %1158 = vmatprep.subr.mxu0 0.0
      %1159 = vmatpush1.msra.mxu0 %v1046
      %1160 = vmatprep.subr.mxu0 0.0
      %1161 = vmatpush1.msra.mxu0 %v1047
      %1162 = vmatprep.subr.mxu0 0.0
      %1163 = vmatpush1.msra.mxu0 %v1048
      %1164 = vmatprep.subr.mxu0 0.0
      %1165 = vmatpush1.msra.mxu0 %v1049
      %1166 = vmatprep.subr.mxu0 0.0
      %1167 = vmatpush1.msra.mxu0 %v1050
      %1168 = vmatprep.subr.mxu0 0.0
      %1169 = vmatpush1.msra.mxu0 %v1051
      %1170 = vmatprep.subr.mxu0 0.0
      %1171 = vmatpush1.msra.mxu0 %v1052
      %1172 = vmatprep.subr.mxu0 0.0
      %1173 = vmatpush1.msra.mxu0 %v1053
      %1174 = vmatprep.subr.mxu0 0.0
      %1175 = vmatpush1.msra.mxu0 %v1054
      %1176 = vmatprep.subr.mxu0 0.0
      %1177 = vmatpush1.msra.mxu0 %v1055
      %1178 = vmatprep.subr.mxu0 0.0
      %1179 = vmatpush1.msra.mxu0 %v1056
      %1180 = vmatprep.subr.mxu0 0.0
      %1181 = vmatpush1.msra.mxu0 %v1057
      %1182 = vmatprep.subr.mxu0 0.0
      %1183 = vmatpush1.msra.mxu0 0.0
      %1184 = vmatprep.subr.mxu0 0.0
      %1185 = vmatpush1.msra.mxu0 0.0
      %1186 = vmatprep.subr.mxu0 0.0
      %1187 = vmatpush1.msra.mxu0 0.0
      %1188 = vmatprep.subr.mxu0 0.0
      %1189 = vmatpush1.msra.mxu0 0.0
      %1190 = vmatprep.subr.mxu0 0.0
      %1191 = vmatpush1.msra.mxu0 0.0
      %1192 = vmatprep.subr.mxu0 0.0
      %1193 = vmatpush1.msra.mxu0 0.0
      %1194 = vmatprep.subr.mxu0 0.0
      %1195 = vmatpush1.msra.mxu0 0.0
      %1196 = vmatprep.subr.mxu0 0.0
      %1197 = vmatpush1.msra.mxu0 0.0
      %1198 = vmatprep.subr.mxu0 0.0
      %1199 = vmatpush1.msra.mxu0 0.0
      %1200 = vmatprep.subr.mxu0 0.0
      %1201 = vmatpush1.msra.mxu0 0.0
      %1202 = vmatprep.subr.mxu0 0.0
      %1203 = vmatpush1.msra.mxu0 0.0
      %1204 = vmatprep.subr.mxu0 0.0
      %1205 = vmatpush1.msra.mxu0 0.0
      %1206 = vmatprep.subr.mxu0 0.0
      %1207 = vmatpush1.msra.mxu0 0.0
      %1208 = vmatprep.subr.mxu0 0.0
      %1209 = vmatpush1.msra.mxu0 0.0
      %1210 = vmatprep.subr.mxu0 0.0
      %1211 = vmatpush1.msra.mxu0 0.0
      %1212 = vmatprep.subr.mxu0 0.0
      %1213 = vmatpush1.msra.mxu0 0.0
      %1214 = vmatprep.mubr.f32.mxu0 0.0
      %1215 = vmatmul.mubr.f32.gmra.mrb[0].mxu0 %v959
      %v1216 = vpop.f32.mrb[0].mxu0
      %v1217 = vadd.f32 %v1142, %v1216
      %v1218 = vpop.f32.mrb[0].mxu0
      %1219 = vmatprep.mubr.f32.mxu0 0.0
      %1220 = vmatmul.mubr.f32.gmra.mrb[0].mxu0 %v964
      %v1221 = vpop.f32.mrb[0].mxu0
      %v1222 = vadd.f32 %v1147, %v1221
      %v1223 = vpop.f32.mrb[0].mxu0
      %1224 = vdwg.mxu0
      %s1225 = scalar_lea.vmem %s5, 256
      %v1226 = vld [vmem:[%s1225] sm:$0xff]
      %v1227 = vld [vmem:[%s1225 + $0x8] sm:$0xff]
      %v1228 = vld [vmem:[%s1225 + $0x10] sm:$0xff]
      %v1229 = vld [vmem:[%s1225 + $0x18] sm:$0xff]
      %v1230 = vld [vmem:[%s1225 + $0x20] sm:$0xff]
      %v1231 = vld [vmem:[%s1225 + $0x28] sm:$0xff]
      %v1232 = vld [vmem:[%s1225 + $0x30] sm:$0xff]
      %v1233 = vld [vmem:[%s1225 + $0x38] sm:$0xff]
      %v1234 = vld [vmem:[%s1225 + $0x40] sm:$0xff]
      %v1235 = vld [vmem:[%s1225 + $0x48] sm:$0xff]
      %v1236 = vld [vmem:[%s1225 + $0x50] sm:$0xff]
      %v1237 = vld [vmem:[%s1225 + $0x58] sm:$0xff]
      %v1238 = vld [vmem:[%s1225 + $0x60] sm:$0xff]
      %v1239 = vld [vmem:[%s1225 + $0x68] sm:$0xff]
      %v1240 = vld [vmem:[%s1225 + $0x70] sm:$0xff]
      %v1241 = vld [vmem:[%s1225 + $0x78] sm:$0xff]
      %1242 = vmatprep.subr.mxu0 0.0
      %1243 = vmatpush1.msra.mxu0 %v1226
      %1244 = vmatprep.subr.mxu0 0.0
      %1245 = vmatpush1.msra.mxu0 %v1227
      %1246 = vmatprep.subr.mxu0 0.0
      %1247 = vmatpush1.msra.mxu0 %v1228
      %1248 = vmatprep.subr.mxu0 0.0
      %1249 = vmatpush1.msra.mxu0 %v1229
      %1250 = vmatprep.subr.mxu0 0.0
      %1251 = vmatpush1.msra.mxu0 %v1230
      %1252 = vmatprep.subr.mxu0 0.0
      %1253 = vmatpush1.msra.mxu0 %v1231
      %1254 = vmatprep.subr.mxu0 0.0
      %1255 = vmatpush1.msra.mxu0 %v1232
      %1256 = vmatprep.subr.mxu0 0.0
      %1257 = vmatpush1.msra.mxu0 %v1233
      %1258 = vmatprep.subr.mxu0 0.0
      %1259 = vmatpush1.msra.mxu0 %v1234
      %1260 = vmatprep.subr.mxu0 0.0
      %1261 = vmatpush1.msra.mxu0 %v1235
      %1262 = vmatprep.subr.mxu0 0.0
      %1263 = vmatpush1.msra.mxu0 %v1236
      %1264 = vmatprep.subr.mxu0 0.0
      %1265 = vmatpush1.msra.mxu0 %v1237
      %1266 = vmatprep.subr.mxu0 0.0
      %1267 = vmatpush1.msra.mxu0 %v1238
      %1268 = vmatprep.subr.mxu0 0.0
      %1269 = vmatpush1.msra.mxu0 %v1239
      %1270 = vmatprep.subr.mxu0 0.0
      %1271 = vmatpush1.msra.mxu0 %v1240
      %1272 = vmatprep.subr.mxu0 0.0
      %1273 = vmatpush1.msra.mxu0 %v1241
      %1274 = vmatprep.subr.mxu0 0.0
      %1275 = vmatpush1.msra.mxu0 0.0
      %1276 = vmatprep.subr.mxu0 0.0
      %1277 = vmatpush1.msra.mxu0 0.0
      %1278 = vmatprep.subr.mxu0 0.0
      %1279 = vmatpush1.msra.mxu0 0.0
      %1280 = vmatprep.subr.mxu0 0.0
      %1281 = vmatpush1.msra.mxu0 0.0
      %1282 = vmatprep.subr.mxu0 0.0
      %1283 = vmatpush1.msra.mxu0 0.0
      %1284 = vmatprep.subr.mxu0 0.0
      %1285 = vmatpush1.msra.mxu0 0.0
      %1286 = vmatprep.subr.mxu0 0.0
      %1287 = vmatpush1.msra.mxu0 0.0
      %1288 = vmatprep.subr.mxu0 0.0
      %1289 = vmatpush1.msra.mxu0 0.0
      %1290 = vmatprep.subr.mxu0 0.0
      %1291 = vmatpush1.msra.mxu0 0.0
      %1292 = vmatprep.subr.mxu0 0.0
      %1293 = vmatpush1.msra.mxu0 0.0
      %1294 = vmatprep.subr.mxu0 0.0
      %1295 = vmatpush1.msra.mxu0 0.0
      %1296 = vmatprep.subr.mxu0 0.0
      %1297 = vmatpush1.msra.mxu0 0.0
      %1298 = vmatprep.subr.mxu0 0.0
      %1299 = vmatpush1.msra.mxu0 0.0
      %1300 = vmatprep.subr.mxu0 0.0
      %1301 = vmatpush1.msra.mxu0 0.0
      %1302 = vmatprep.subr.mxu0 0.0
      %1303 = vmatpush1.msra.mxu0 0.0
      %1304 = vmatprep.subr.mxu0 0.0
      %1305 = vmatpush1.msra.mxu0 0.0
      %1306 = vmatprep.mubr.f32.mxu0 0.0
      %1307 = vmatmul.mubr.f32.gmra.mrb[0].mxu0 %v1034
      %v1308 = vpop.f32.mrb[0].mxu0
      %v1309 = vadd.f32 0.0, %v1308
      %v1310 = vpop.f32.mrb[0].mxu0
      %1311 = vmatprep.mubr.f32.mxu0 0.0
      %1312 = vmatmul.mubr.f32.gmra.mrb[0].mxu0 %v1039
      %v1313 = vpop.f32.mrb[0].mxu0
      %v1314 = vadd.f32 0.0, %v1313
      %v1315 = vpop.f32.mrb[0].mxu0
      %1316 = vdwg.mxu0
      %v1317 = vadd.f32 %v1217, %v1309
      %v1318 = vadd.f32 %v1222, %v1314
      %v1319 = vld [vmem:[%s6] sm:$0x1]
      %v1321 = vlaneseq
      %v1322 = vshrl.u32 %v1321, 7
      %v1323 = vsub.s32 0, %v1322
      %v1324 = vrot.slane %v1319, %v1323
      %v1326 = vadd.f32 %v1317, %v1324
      %v1327 = vadd.f32 %v1318, %v1324
      %v1328 = vmax.f32 %v1326, 0.0
      %v1329 = vmax.f32 %v1327, 0.0
      %1330 = vmatprep.subr.mxu0 0.0
      %1331 = vmatpush1.msra.mxu0 %v1328
      %1332 = vmatprep.subr.mxu0 0.0
      %1333 = vmatpush1.msra.mxu0 %v1329
      %1334 = vmatprep.subr.mxu0 0.0
      %1335 = vmatpush1.msra.mxu0 0.0
      %1336 = vmatprep.subr.mxu0 0.0
      %1337 = vmatpush1.msra.mxu0 0.0
      %1338 = vmatprep.subr.mxu0 0.0
      %1339 = vmatpush1.msra.mxu0 0.0
      %1340 = vmatprep.subr.mxu0 0.0
      %1341 = vmatpush1.msra.mxu0 0.0
      %1342 = vmatprep.subr.mxu0 0.0
      %1343 = vmatpush1.msra.mxu0 0.0
      %1344 = vmatprep.subr.mxu0 0.0
      %1345 = vmatpush1.msra.mxu0 0.0
      %1346 = vmatprep.subr.mxu0 0.0
      %1347 = vmatpush1.msra.mxu0 0.0
      %1348 = vmatprep.subr.mxu0 0.0
      %1349 = vmatpush1.msra.mxu0 0.0
      %1350 = vmatprep.subr.mxu0 0.0
      %1351 = vmatpush1.msra.mxu0 0.0
      %1352 = vmatprep.subr.mxu0 0.0
      %1353 = vmatpush1.msra.mxu0 0.0
      %1354 = vmatprep.subr.mxu0 0.0
      %1355 = vmatpush1.msra.mxu0 0.0
      %1356 = vmatprep.subr.mxu0 0.0
      %1357 = vmatpush1.msra.mxu0 0.0
      %1358 = vmatprep.subr.mxu0 0.0
      %1359 = vmatpush1.msra.mxu0 0.0
      %1360 = vmatprep.subr.mxu0 0.0
      %1361 = vmatpush1.msra.mxu0 0.0
      %1362 = vmatprep.subr.mxu0 0.0
      %1363 = vmatpush1.msra.mxu0 0.0
      %1364 = vmatprep.subr.mxu0 0.0
      %1365 = vmatpush1.msra.mxu0 0.0
      %1366 = vmatprep.subr.mxu0 0.0
      %1367 = vmatpush1.msra.mxu0 0.0
      %1368 = vmatprep.subr.mxu0 0.0
      %1369 = vmatpush1.msra.mxu0 0.0
      %1370 = vmatprep.subr.mxu0 0.0
      %1371 = vmatpush1.msra.mxu0 0.0
      %1372 = vmatprep.subr.mxu0 0.0
      %1373 = vmatpush1.msra.mxu0 0.0
      %1374 = vmatprep.subr.mxu0 0.0
      %1375 = vmatpush1.msra.mxu0 0.0
      %1376 = vmatprep.subr.mxu0 0.0
      %1377 = vmatpush1.msra.mxu0 0.0
      %1378 = vmatprep.subr.mxu0 0.0
      %1379 = vmatpush1.msra.mxu0 0.0
      %1380 = vmatprep.subr.mxu0 0.0
      %1381 = vmatpush1.msra.mxu0 0.0
      %1382 = vmatprep.subr.mxu0 0.0
      %1383 = vmatpush1.msra.mxu0 0.0
      %1384 = vmatprep.subr.mxu0 0.0
      %1385 = vmatpush1.msra.mxu0 0.0
      %1386 = vmatprep.subr.mxu0 0.0
      %1387 = vmatpush1.msra.mxu0 0.0
      %1388 = vmatprep.subr.mxu0 0.0
      %1389 = vmatpush1.msra.mxu0 0.0
      %1390 = vmatprep.subr.mxu0 0.0
      %1391 = vmatpush1.msra.mxu0 0.0
      %1392 = vmatprep.subr.mxu0 0.0
      %1393 = vmatpush1.msra.mxu0 0.0
      %1394 = vmatprep.mubr.f32.mxu0 0.0
      %1395 = vmatmul.mubr.f32.gmra.mrb[0].mxu0 %v445
      %v1396 = vpop.f32.mrb[0].mxu0
      %v1397 = vadd.f32 0.0, %v1396
      %v1398 = vpop.f32.mrb[0].mxu0
      %1399 = vmatprep.mubr.f32.mxu0 0.0
      %1400 = vmatmul.mubr.f32.gmra.mrb[0].mxu0 %v448
      %v1401 = vpop.f32.mrb[0].mxu0
      %v1402 = vadd.f32 0.0, %v1401
      %v1403 = vpop.f32.mrb[0].mxu0
      %1404 = vdwg.mxu0
      %1405 = vmatprep.subr.mxu0 0.0
      %1406 = vmatpush1.msra.mxu0 %v1328
      %1407 = vmatprep.subr.mxu0 0.0
      %1408 = vmatpush1.msra.mxu0 %v1329
      %1409 = vmatprep.subr.mxu0 0.0
      %1410 = vmatpush1.msra.mxu0 0.0
      %1411 = vmatprep.subr.mxu0 0.0
      %1412 = vmatpush1.msra.mxu0 0.0
      %1413 = vmatprep.subr.mxu0 0.0
      %1414 = vmatpush1.msra.mxu0 0.0
      %1415 = vmatprep.subr.mxu0 0.0
      %1416 = vmatpush1.msra.mxu0 0.0
      %1417 = vmatprep.subr.mxu0 0.0
      %1418 = vmatpush1.msra.mxu0 0.0
      %1419 = vmatprep.subr.mxu0 0.0
      %1420 = vmatpush1.msra.mxu0 0.0
      %1421 = vmatprep.subr.mxu0 0.0
      %1422 = vmatpush1.msra.mxu0 0.0
      %1423 = vmatprep.subr.mxu0 0.0
      %1424 = vmatpush1.msra.mxu0 0.0
      %1425 = vmatprep.subr.mxu0 0.0
      %1426 = vmatpush1.msra.mxu0 0.0
      %1427 = vmatprep.subr.mxu0 0.0
      %1428 = vmatpush1.msra.mxu0 0.0
      %1429 = vmatprep.subr.mxu0 0.0
      %1430 = vmatpush1.msra.mxu0 0.0
      %1431 = vmatprep.subr.mxu0 0.0
      %1432 = vmatpush1.msra.mxu0 0.0
      %1433 = vmatprep.subr.mxu0 0.0
      %1434 = vmatpush1.msra.mxu0 0.0
      %1435 = vmatprep.subr.mxu0 0.0
      %1436 = vmatpush1.msra.mxu0 0.0
      %1437 = vmatprep.subr.mxu0 0.0
      %1438 = vmatpush1.msra.mxu0 0.0
      %1439 = vmatprep.subr.mxu0 0.0
      %1440 = vmatpush1.msra.mxu0 0.0
      %1441 = vmatprep.subr.mxu0 0.0
      %1442 = vmatpush1.msra.mxu0 0.0
      %1443 = vmatprep.subr.mxu0 0.0
      %1444 = vmatpush1.msra.mxu0 0.0
      %1445 = vmatprep.subr.mxu0 0.0
      %1446 = vmatpush1.msra.mxu0 0.0
      %1447 = vmatprep.subr.mxu0 0.0
      %1448 = vmatpush1.msra.mxu0 0.0
      %1449 = vmatprep.subr.mxu0 0.0
      %1450 = vmatpush1.msra.mxu0 0.0
      %1451 = vmatprep.subr.mxu0 0.0
      %1452 = vmatpush1.msra.mxu0 0.0
      %1453 = vmatprep.subr.mxu0 0.0
      %1454 = vmatpush1.msra.mxu0 0.0
      %1455 = vmatprep.subr.mxu0 0.0
      %1456 = vmatpush1.msra.mxu0 0.0
      %1457 = vmatprep.subr.mxu0 0.0
      %1458 = vmatpush1.msra.mxu0 0.0
      %1459 = vmatprep.subr.mxu0 0.0
      %1460 = vmatpush1.msra.mxu0 0.0
      %1461 = vmatprep.subr.mxu0 0.0
      %1462 = vmatpush1.msra.mxu0 0.0
      %1463 = vmatprep.subr.mxu0 0.0
      %1464 = vmatpush1.msra.mxu0 0.0
      %1465 = vmatprep.subr.mxu0 0.0
      %1466 = vmatpush1.msra.mxu0 0.0
      %1467 = vmatprep.subr.mxu0 0.0
      %1468 = vmatpush1.msra.mxu0 0.0
      %1469 = vmatprep.mubr.f32.mxu0 0.0
      %1470 = vmatmul.mubr.f32.gmra.mrb[0].mxu0 %v529
      %v1471 = vpop.f32.mrb[0].mxu0
      %v1472 = vadd.f32 0.0, %v1471
      %v1473 = vpop.f32.mrb[0].mxu0
      %1474 = vmatprep.mubr.f32.mxu0 0.0
      %1475 = vmatmul.mubr.f32.gmra.mrb[0].mxu0 %v532
      %v1476 = vpop.f32.mrb[0].mxu0
      %v1477 = vadd.f32 0.0, %v1476
      %v1478 = vpop.f32.mrb[0].mxu0
      %1479 = vdwg.mxu0
      %v1480 = vld [vmem:[%s7] sm:$0xff]
      %v1481 = vld [vmem:[%s7 + $0x8] sm:$0xff]
      %v1482 = vld [vmem:[%s7 + $0x10] sm:$0xff]
      %v1483 = vld [vmem:[%s7 + $0x18] sm:$0xff]
      %v1484 = vld [vmem:[%s7 + $0x20] sm:$0xff]
      %v1485 = vld [vmem:[%s7 + $0x28] sm:$0xff]
      %v1486 = vld [vmem:[%s7 + $0x30] sm:$0xff]
      %v1487 = vld [vmem:[%s7 + $0x38] sm:$0xff]
      %v1488 = vld [vmem:[%s7 + $0x40] sm:$0xff]
      %v1489 = vld [vmem:[%s7 + $0x48] sm:$0xff]
      %v1490 = vld [vmem:[%s7 + $0x50] sm:$0xff]
      %v1491 = vld [vmem:[%s7 + $0x58] sm:$0xff]
      %v1492 = vld [vmem:[%s7 + $0x60] sm:$0xff]
      %v1493 = vld [vmem:[%s7 + $0x68] sm:$0xff]
      %v1494 = vld [vmem:[%s7 + $0x70] sm:$0xff]
      %v1495 = vld [vmem:[%s7 + $0x78] sm:$0xff]
      %s1496 = scalar_lea.vmem %s7, 128
      %v1497 = vld [vmem:[%s1496] sm:$0xff]
      %v1498 = vld [vmem:[%s1496 + $0x8] sm:$0xff]
      %v1499 = vld [vmem:[%s1496 + $0x10] sm:$0xff]
      %v1500 = vld [vmem:[%s1496 + $0x18] sm:$0xff]
      %v1501 = vld [vmem:[%s1496 + $0x20] sm:$0xff]
      %v1502 = vld [vmem:[%s1496 + $0x28] sm:$0xff]
      %v1503 = vld [vmem:[%s1496 + $0x30] sm:$0xff]
      %v1504 = vld [vmem:[%s1496 + $0x38] sm:$0xff]
      %v1505 = vld [vmem:[%s1496 + $0x40] sm:$0xff]
      %v1506 = vld [vmem:[%s1496 + $0x48] sm:$0xff]
      %v1507 = vld [vmem:[%s1496 + $0x50] sm:$0xff]
      %v1508 = vld [vmem:[%s1496 + $0x58] sm:$0xff]
      %v1509 = vld [vmem:[%s1496 + $0x60] sm:$0xff]
      %v1510 = vld [vmem:[%s1496 + $0x68] sm:$0xff]
      %v1511 = vld [vmem:[%s1496 + $0x70] sm:$0xff]
      %v1512 = vld [vmem:[%s1496 + $0x78] sm:$0xff]
      %1513 = vmatprep.subr.mxu0 0.0
      %1514 = vmatpush1.msra.mxu0 %v1497
      %1515 = vmatprep.subr.mxu0 0.0
      %1516 = vmatpush1.msra.mxu0 %v1498
      %1517 = vmatprep.subr.mxu0 0.0
      %1518 = vmatpush1.msra.mxu0 %v1499
      %1519 = vmatprep.subr.mxu0 0.0
      %1520 = vmatpush1.msra.mxu0 %v1500
      %1521 = vmatprep.subr.mxu0 0.0
      %1522 = vmatpush1.msra.mxu0 %v1501
      %1523 = vmatprep.subr.mxu0 0.0
      %1524 = vmatpush1.msra.mxu0 %v1502
      %1525 = vmatprep.subr.mxu0 0.0
      %1526 = vmatpush1.msra.mxu0 %v1503
      %1527 = vmatprep.subr.mxu0 0.0
      %1528 = vmatpush1.msra.mxu0 %v1504
      %1529 = vmatprep.subr.mxu0 0.0
      %1530 = vmatpush1.msra.mxu0 %v1505
      %1531 = vmatprep.subr.mxu0 0.0
      %1532 = vmatpush1.msra.mxu0 %v1506
      %1533 = vmatprep.subr.mxu0 0.0
      %1534 = vmatpush1.msra.mxu0 %v1507
      %1535 = vmatprep.subr.mxu0 0.0
      %1536 = vmatpush1.msra.mxu0 %v1508
      %1537 = vmatprep.subr.mxu0 0.0
      %1538 = vmatpush1.msra.mxu0 %v1509
      %1539 = vmatprep.subr.mxu0 0.0
      %1540 = vmatpush1.msra.mxu0 %v1510
      %1541 = vmatprep.subr.mxu0 0.0
      %1542 = vmatpush1.msra.mxu0 %v1511
      %1543 = vmatprep.subr.mxu0 0.0
      %1544 = vmatpush1.msra.mxu0 %v1512
      %1545 = vmatprep.subr.mxu0 0.0
      %1546 = vmatpush1.msra.mxu0 0.0
      %1547 = vmatprep.subr.mxu0 0.0
      %1548 = vmatpush1.msra.mxu0 0.0
      %1549 = vmatprep.subr.mxu0 0.0
      %1550 = vmatpush1.msra.mxu0 0.0
      %1551 = vmatprep.subr.mxu0 0.0
      %1552 = vmatpush1.msra.mxu0 0.0
      %1553 = vmatprep.subr.mxu0 0.0
      %1554 = vmatpush1.msra.mxu0 0.0
      %1555 = vmatprep.subr.mxu0 0.0
      %1556 = vmatpush1.msra.mxu0 0.0
      %1557 = vmatprep.subr.mxu0 0.0
      %1558 = vmatpush1.msra.mxu0 0.0
      %1559 = vmatprep.subr.mxu0 0.0
      %1560 = vmatpush1.msra.mxu0 0.0
      %1561 = vmatprep.subr.mxu0 0.0
      %1562 = vmatpush1.msra.mxu0 0.0
      %1563 = vmatprep.subr.mxu0 0.0
      %1564 = vmatpush1.msra.mxu0 0.0
      %1565 = vmatprep.subr.mxu0 0.0
      %1566 = vmatpush1.msra.mxu0 0.0
      %1567 = vmatprep.subr.mxu0 0.0
      %1568 = vmatpush1.msra.mxu0 0.0
      %1569 = vmatprep.subr.mxu0 0.0
      %1570 = vmatpush1.msra.mxu0 0.0
      %1571 = vmatprep.subr.mxu0 0.0
      %1572 = vmatpush1.msra.mxu0 0.0
      %1573 = vmatprep.subr.mxu0 0.0
      %1574 = vmatpush1.msra.mxu0 0.0
      %1575 = vmatprep.subr.mxu0 0.0
      %1576 = vmatpush1.msra.mxu0 0.0
      %1577 = vmatprep.mubr.f32.mxu0 0.0
      %1578 = vmatmul.mubr.f32.gmra.mrb[0].mxu0 %v1328
      %v1579 = vpop.f32.mrb[0].mxu0
      %v1580 = vadd.f32 0.0, %v1579
      %v1581 = vpop.f32.mrb[0].mxu0
      %1582 = vmatprep.mubr.f32.mxu0 0.0
      %1583 = vmatmul.mubr.f32.gmra.mrb[0].mxu0 %v1329
      %v1584 = vpop.f32.mrb[0].mxu0
      %v1585 = vadd.f32 0.0, %v1584
      %v1586 = vpop.f32.mrb[0].mxu0
      %1587 = vdwg.mxu0
      %1588 = vmatprep.subr.mxu0 0.0
      %1589 = vmatpush1.msra.mxu0 %v1480
      %1590 = vmatprep.subr.mxu0 0.0
      %1591 = vmatpush1.msra.mxu0 %v1481
      %1592 = vmatprep.subr.mxu0 0.0
      %1593 = vmatpush1.msra.mxu0 %v1482
      %1594 = vmatprep.subr.mxu0 0.0
      %1595 = vmatpush1.msra.mxu0 %v1483
      %1596 = vmatprep.subr.mxu0 0.0
      %1597 = vmatpush1.msra.mxu0 %v1484
      %1598 = vmatprep.subr.mxu0 0.0
      %1599 = vmatpush1.msra.mxu0 %v1485
      %1600 = vmatprep.subr.mxu0 0.0
      %1601 = vmatpush1.msra.mxu0 %v1486
      %1602 = vmatprep.subr.mxu0 0.0
      %1603 = vmatpush1.msra.mxu0 %v1487
      %1604 = vmatprep.subr.mxu0 0.0
      %1605 = vmatpush1.msra.mxu0 %v1488
      %1606 = vmatprep.subr.mxu0 0.0
      %1607 = vmatpush1.msra.mxu0 %v1489
      %1608 = vmatprep.subr.mxu0 0.0
      %1609 = vmatpush1.msra.mxu0 %v1490
      %1610 = vmatprep.subr.mxu0 0.0
      %1611 = vmatpush1.msra.mxu0 %v1491
      %1612 = vmatprep.subr.mxu0 0.0
      %1613 = vmatpush1.msra.mxu0 %v1492
      %1614 = vmatprep.subr.mxu0 0.0
      %1615 = vmatpush1.msra.mxu0 %v1493
      %1616 = vmatprep.subr.mxu0 0.0
      %1617 = vmatpush1.msra.mxu0 %v1494
      %1618 = vmatprep.subr.mxu0 0.0
      %1619 = vmatpush1.msra.mxu0 %v1495
      %1620 = vmatprep.subr.mxu0 0.0
      %1621 = vmatpush1.msra.mxu0 0.0
      %1622 = vmatprep.subr.mxu0 0.0
      %1623 = vmatpush1.msra.mxu0 0.0
      %1624 = vmatprep.subr.mxu0 0.0
      %1625 = vmatpush1.msra.mxu0 0.0
      %1626 = vmatprep.subr.mxu0 0.0
      %1627 = vmatpush1.msra.mxu0 0.0
      %1628 = vmatprep.subr.mxu0 0.0
      %1629 = vmatpush1.msra.mxu0 0.0
      %1630 = vmatprep.subr.mxu0 0.0
      %1631 = vmatpush1.msra.mxu0 0.0
      %1632 = vmatprep.subr.mxu0 0.0
      %1633 = vmatpush1.msra.mxu0 0.0
      %1634 = vmatprep.subr.mxu0 0.0
      %1635 = vmatpush1.msra.mxu0 0.0
      %1636 = vmatprep.subr.mxu0 0.0
      %1637 = vmatpush1.msra.mxu0 0.0
      %1638 = vmatprep.subr.mxu0 0.0
      %1639 = vmatpush1.msra.mxu0 0.0
      %1640 = vmatprep.subr.mxu0 0.0
      %1641 = vmatpush1.msra.mxu0 0.0
      %1642 = vmatprep.subr.mxu0 0.0
      %1643 = vmatpush1.msra.mxu0 0.0
      %1644 = vmatprep.subr.mxu0 0.0
      %1645 = vmatpush1.msra.mxu0 0.0
      %1646 = vmatprep.subr.mxu0 0.0
      %1647 = vmatpush1.msra.mxu0 0.0
      %1648 = vmatprep.subr.mxu0 0.0
      %1649 = vmatpush1.msra.mxu0 0.0
      %1650 = vmatprep.subr.mxu0 0.0
      %1651 = vmatpush1.msra.mxu0 0.0
      %1652 = vmatprep.mubr.f32.mxu0 0.0
      %1653 = vmatmul.mubr.f32.gmra.mrb[0].mxu0 %v1397
      %v1654 = vpop.f32.mrb[0].mxu0
      %v1655 = vadd.f32 %v1580, %v1654
      %v1656 = vpop.f32.mrb[0].mxu0
      %1657 = vmatprep.mubr.f32.mxu0 0.0
      %1658 = vmatmul.mubr.f32.gmra.mrb[0].mxu0 %v1402
      %v1659 = vpop.f32.mrb[0].mxu0
      %v1660 = vadd.f32 %v1585, %v1659
      %v1661 = vpop.f32.mrb[0].mxu0
      %1662 = vdwg.mxu0
      %s1663 = scalar_lea.vmem %s7, 256
      %v1664 = vld [vmem:[%s1663] sm:$0xff]
      %v1665 = vld [vmem:[%s1663 + $0x8] sm:$0xff]
      %v1666 = vld [vmem:[%s1663 + $0x10] sm:$0xff]
      %v1667 = vld [vmem:[%s1663 + $0x18] sm:$0xff]
      %v1668 = vld [vmem:[%s1663 + $0x20] sm:$0xff]
      %v1669 = vld [vmem:[%s1663 + $0x28] sm:$0xff]
      %v1670 = vld [vmem:[%s1663 + $0x30] sm:$0xff]
      %v1671 = vld [vmem:[%s1663 + $0x38] sm:$0xff]
      %v1672 = vld [vmem:[%s1663 + $0x40] sm:$0xff]
      %v1673 = vld [vmem:[%s1663 + $0x48] sm:$0xff]
      %v1674 = vld [vmem:[%s1663 + $0x50] sm:$0xff]
      %v1675 = vld [vmem:[%s1663 + $0x58] sm:$0xff]
      %v1676 = vld [vmem:[%s1663 + $0x60] sm:$0xff]
      %v1677 = vld [vmem:[%s1663 + $0x68] sm:$0xff]
      %v1678 = vld [vmem:[%s1663 + $0x70] sm:$0xff]
      %v1679 = vld [vmem:[%s1663 + $0x78] sm:$0xff]
      %1680 = vmatprep.subr.mxu0 0.0
      %1681 = vmatpush1.msra.mxu0 %v1664
      %1682 = vmatprep.subr.mxu0 0.0
      %1683 = vmatpush1.msra.mxu0 %v1665
      %1684 = vmatprep.subr.mxu0 0.0
      %1685 = vmatpush1.msra.mxu0 %v1666
      %1686 = vmatprep.subr.mxu0 0.0
      %1687 = vmatpush1.msra.mxu0 %v1667
      %1688 = vmatprep.subr.mxu0 0.0
      %1689 = vmatpush1.msra.mxu0 %v1668
      %1690 = vmatprep.subr.mxu0 0.0
      %1691 = vmatpush1.msra.mxu0 %v1669
      %1692 = vmatprep.subr.mxu0 0.0
      %1693 = vmatpush1.msra.mxu0 %v1670
      %1694 = vmatprep.subr.mxu0 0.0
      %1695 = vmatpush1.msra.mxu0 %v1671
      %1696 = vmatprep.subr.mxu0 0.0
      %1697 = vmatpush1.msra.mxu0 %v1672
      %1698 = vmatprep.subr.mxu0 0.0
      %1699 = vmatpush1.msra.mxu0 %v1673
      %1700 = vmatprep.subr.mxu0 0.0
      %1701 = vmatpush1.msra.mxu0 %v1674
      %1702 = vmatprep.subr.mxu0 0.0
      %1703 = vmatpush1.msra.mxu0 %v1675
      %1704 = vmatprep.subr.mxu0 0.0
      %1705 = vmatpush1.msra.mxu0 %v1676
      %1706 = vmatprep.subr.mxu0 0.0
      %1707 = vmatpush1.msra.mxu0 %v1677
      %1708 = vmatprep.subr.mxu0 0.0
      %1709 = vmatpush1.msra.mxu0 %v1678
      %1710 = vmatprep.subr.mxu0 0.0
      %1711 = vmatpush1.msra.mxu0 %v1679
      %1712 = vmatprep.subr.mxu0 0.0
      %1713 = vmatpush1.msra.mxu0 0.0
      %1714 = vmatprep.subr.mxu0 0.0
      %1715 = vmatpush1.msra.mxu0 0.0
      %1716 = vmatprep.subr.mxu0 0.0
      %1717 = vmatpush1.msra.mxu0 0.0
      %1718 = vmatprep.subr.mxu0 0.0
      %1719 = vmatpush1.msra.mxu0 0.0
      %1720 = vmatprep.subr.mxu0 0.0
      %1721 = vmatpush1.msra.mxu0 0.0
      %1722 = vmatprep.subr.mxu0 0.0
      %1723 = vmatpush1.msra.mxu0 0.0
      %1724 = vmatprep.subr.mxu0 0.0
      %1725 = vmatpush1.msra.mxu0 0.0
      %1726 = vmatprep.subr.mxu0 0.0
      %1727 = vmatpush1.msra.mxu0 0.0
      %1728 = vmatprep.subr.mxu0 0.0
      %1729 = vmatpush1.msra.mxu0 0.0
      %1730 = vmatprep.subr.mxu0 0.0
      %1731 = vmatpush1.msra.mxu0 0.0
      %1732 = vmatprep.subr.mxu0 0.0
      %1733 = vmatpush1.msra.mxu0 0.0
      %1734 = vmatprep.subr.mxu0 0.0
      %1735 = vmatpush1.msra.mxu0 0.0
      %1736 = vmatprep.subr.mxu0 0.0
      %1737 = vmatpush1.msra.mxu0 0.0
      %1738 = vmatprep.subr.mxu0 0.0
      %1739 = vmatpush1.msra.mxu0 0.0
      %1740 = vmatprep.subr.mxu0 0.0
      %1741 = vmatpush1.msra.mxu0 0.0
      %1742 = vmatprep.subr.mxu0 0.0
      %1743 = vmatpush1.msra.mxu0 0.0
      %1744 = vmatprep.mubr.f32.mxu0 0.0
      %1745 = vmatmul.mubr.f32.gmra.mrb[0].mxu0 %v1472
      %v1746 = vpop.f32.mrb[0].mxu0
      %v1747 = vadd.f32 0.0, %v1746
      %v1748 = vpop.f32.mrb[0].mxu0
      %1749 = vmatprep.mubr.f32.mxu0 0.0
      %1750 = vmatmul.mubr.f32.gmra.mrb[0].mxu0 %v1477
      %v1751 = vpop.f32.mrb[0].mxu0
      %v1752 = vadd.f32 0.0, %v1751
      %v1753 = vpop.f32.mrb[0].mxu0
      %1754 = vdwg.mxu0
      %v1755 = vadd.f32 %v1655, %v1747
      %v1756 = vadd.f32 %v1660, %v1752
      %v1757 = vld [vmem:[%s8] sm:$0x1]
      %v1759 = vlaneseq
      %v1760 = vshrl.u32 %v1759, 7
      %v1761 = vsub.s32 0, %v1760
      %v1762 = vrot.slane %v1757, %v1761
      %v1764 = vadd.f32 %v1755, %v1762
      %v1765 = vadd.f32 %v1756, %v1762
      %v1766 = vmax.f32 %v1764, 0.0
      %v1767 = vmax.f32 %v1765, 0.0
      %v1768 = vld [vmem:[%s9] sm:$0xff]
      %v1770 = vsel %vm443, %v1768, 0
      %1772 = vmatprep.subr.mxu0 0.0
      %1773 = vmatpush1.msra.mxu0 %v1766
      %1774 = vmatprep.subr.mxu0 0.0
      %1775 = vmatpush1.msra.mxu0 %v1767
      %1776 = vmatprep.subr.mxu0 0.0
      %1777 = vmatpush1.msra.mxu0 0.0
      %1778 = vmatprep.subr.mxu0 0.0
      %1779 = vmatpush1.msra.mxu0 0.0
      %1780 = vmatprep.subr.mxu0 0.0
      %1781 = vmatpush1.msra.mxu0 0.0
      %1782 = vmatprep.subr.mxu0 0.0
      %1783 = vmatpush1.msra.mxu0 0.0
      %1784 = vmatprep.subr.mxu0 0.0
      %1785 = vmatpush1.msra.mxu0 0.0
      %1786 = vmatprep.subr.mxu0 0.0
      %1787 = vmatpush1.msra.mxu0 0.0
      %1788 = vmatprep.subr.mxu0 0.0
      %1789 = vmatpush1.msra.mxu0 0.0
      %1790 = vmatprep.subr.mxu0 0.0
      %1791 = vmatpush1.msra.mxu0 0.0
      %1792 = vmatprep.subr.mxu0 0.0
      %1793 = vmatpush1.msra.mxu0 0.0
      %1794 = vmatprep.subr.mxu0 0.0
      %1795 = vmatpush1.msra.mxu0 0.0
      %1796 = vmatprep.subr.mxu0 0.0
      %1797 = vmatpush1.msra.mxu0 0.0
      %1798 = vmatprep.subr.mxu0 0.0
      %1799 = vmatpush1.msra.mxu0 0.0
      %1800 = vmatprep.subr.mxu0 0.0
      %1801 = vmatpush1.msra.mxu0 0.0
      %1802 = vmatprep.subr.mxu0 0.0
      %1803 = vmatpush1.msra.mxu0 0.0
      %1804 = vmatprep.subr.mxu0 0.0
      %1805 = vmatpush1.msra.mxu0 0.0
      %1806 = vmatprep.subr.mxu0 0.0
      %1807 = vmatpush1.msra.mxu0 0.0
      %1808 = vmatprep.subr.mxu0 0.0
      %1809 = vmatpush1.msra.mxu0 0.0
      %1810 = vmatprep.subr.mxu0 0.0
      %1811 = vmatpush1.msra.mxu0 0.0
      %1812 = vmatprep.subr.mxu0 0.0
      %1813 = vmatpush1.msra.mxu0 0.0
      %1814 = vmatprep.subr.mxu0 0.0
      %1815 = vmatpush1.msra.mxu0 0.0
      %1816 = vmatprep.subr.mxu0 0.0
      %1817 = vmatpush1.msra.mxu0 0.0
      %1818 = vmatprep.subr.mxu0 0.0
      %1819 = vmatpush1.msra.mxu0 0.0
      %1820 = vmatprep.subr.mxu0 0.0
      %1821 = vmatpush1.msra.mxu0 0.0
      %1822 = vmatprep.subr.mxu0 0.0
      %1823 = vmatpush1.msra.mxu0 0.0
      %1824 = vmatprep.subr.mxu0 0.0
      %1825 = vmatpush1.msra.mxu0 0.0
      %1826 = vmatprep.subr.mxu0 0.0
      %1827 = vmatpush1.msra.mxu0 0.0
      %1828 = vmatprep.subr.mxu0 0.0
      %1829 = vmatpush1.msra.mxu0 0.0
      %1830 = vmatprep.subr.mxu0 0.0
      %1831 = vmatpush1.msra.mxu0 0.0
      %1832 = vmatprep.subr.mxu0 0.0
      %1833 = vmatpush1.msra.mxu0 0.0
      %1834 = vmatprep.subr.mxu0 0.0
      %1835 = vmatpush1.msra.mxu0 0.0
      %1836 = vmatprep.mubr.f32.mxu0 0.0
      %1837 = vmatmul.mubr.f32.gmra.mrb[0].mxu0 %v1770
      %v1838 = vpop.f32.mrb[0].mxu0
      %v1839 = vadd.f32 0.0, %v1838
      %v1840 = vpop.f32.mrb[0].mxu0
      %1841 = vdwg.mxu0
      %s1842 = scalar_lea.vmem %s9, 8
      %v1843 = vld [vmem:[%s1842] sm:$0xff]
      %v1845 = vsel %vm443, %v1843, 0
      %1847 = vmatprep.subr.mxu0 0.0
      %1848 = vmatpush1.msra.mxu0 %v1766
      %1849 = vmatprep.subr.mxu0 0.0
      %1850 = vmatpush1.msra.mxu0 %v1767
      %1851 = vmatprep.subr.mxu0 0.0
      %1852 = vmatpush1.msra.mxu0 0.0
      %1853 = vmatprep.subr.mxu0 0.0
      %1854 = vmatpush1.msra.mxu0 0.0
      %1855 = vmatprep.subr.mxu0 0.0
      %1856 = vmatpush1.msra.mxu0 0.0
      %1857 = vmatprep.subr.mxu0 0.0
      %1858 = vmatpush1.msra.mxu0 0.0
      %1859 = vmatprep.subr.mxu0 0.0
      %1860 = vmatpush1.msra.mxu0 0.0
      %1861 = vmatprep.subr.mxu0 0.0
      %1862 = vmatpush1.msra.mxu0 0.0
      %1863 = vmatprep.subr.mxu0 0.0
      %1864 = vmatpush1.msra.mxu0 0.0
      %1865 = vmatprep.subr.mxu0 0.0
      %1866 = vmatpush1.msra.mxu0 0.0
      %1867 = vmatprep.subr.mxu0 0.0
      %1868 = vmatpush1.msra.mxu0 0.0
      %1869 = vmatprep.subr.mxu0 0.0
      %1870 = vmatpush1.msra.mxu0 0.0
      %1871 = vmatprep.subr.mxu0 0.0
      %1872 = vmatpush1.msra.mxu0 0.0
      %1873 = vmatprep.subr.mxu0 0.0
      %1874 = vmatpush1.msra.mxu0 0.0
      %1875 = vmatprep.subr.mxu0 0.0
      %1876 = vmatpush1.msra.mxu0 0.0
      %1877 = vmatprep.subr.mxu0 0.0
      %1878 = vmatpush1.msra.mxu0 0.0
      %1879 = vmatprep.subr.mxu0 0.0
      %1880 = vmatpush1.msra.mxu0 0.0
      %1881 = vmatprep.subr.mxu0 0.0
      %1882 = vmatpush1.msra.mxu0 0.0
      %1883 = vmatprep.subr.mxu0 0.0
      %1884 = vmatpush1.msra.mxu0 0.0
      %1885 = vmatprep.subr.mxu0 0.0
      %1886 = vmatpush1.msra.mxu0 0.0
      %1887 = vmatprep.subr.mxu0 0.0
      %1888 = vmatpush1.msra.mxu0 0.0
      %1889 = vmatprep.subr.mxu0 0.0
      %1890 = vmatpush1.msra.mxu0 0.0
      %1891 = vmatprep.subr.mxu0 0.0
      %1892 = vmatpush1.msra.mxu0 0.0
      %1893 = vmatprep.subr.mxu0 0.0
      %1894 = vmatpush1.msra.mxu0 0.0
      %1895 = vmatprep.subr.mxu0 0.0
      %1896 = vmatpush1.msra.mxu0 0.0
      %1897 = vmatprep.subr.mxu0 0.0
      %1898 = vmatpush1.msra.mxu0 0.0
      %1899 = vmatprep.subr.mxu0 0.0
      %1900 = vmatpush1.msra.mxu0 0.0
      %1901 = vmatprep.subr.mxu0 0.0
      %1902 = vmatpush1.msra.mxu0 0.0
      %1903 = vmatprep.subr.mxu0 0.0
      %1904 = vmatpush1.msra.mxu0 0.0
      %1905 = vmatprep.subr.mxu0 0.0
      %1906 = vmatpush1.msra.mxu0 0.0
      %1907 = vmatprep.subr.mxu0 0.0
      %1908 = vmatpush1.msra.mxu0 0.0
      %1909 = vmatprep.subr.mxu0 0.0
      %1910 = vmatpush1.msra.mxu0 0.0
      %1911 = vmatprep.mubr.f32.mxu0 0.0
      %1912 = vmatmul.mubr.f32.gmra.mrb[0].mxu0 %v1845
      %v1913 = vpop.f32.mrb[0].mxu0
      %v1914 = vadd.f32 0.0, %v1913
      %v1915 = vpop.f32.mrb[0].mxu0
      %1916 = vdwg.mxu0
      %v1917 = vmax.f32 %v1839, %v1914
      %v1918 = vld [vmem:[%s10] sm:$0xff]
      %v1919 = vld [vmem:[%s10 + $0x8] sm:$0xff]
      %v1920 = vld [vmem:[%s10 + $0x10] sm:$0xff]
      %v1921 = vld [vmem:[%s10 + $0x18] sm:$0xff]
      %v1922 = vld [vmem:[%s10 + $0x20] sm:$0xff]
      %v1923 = vld [vmem:[%s10 + $0x28] sm:$0xff]
      %v1924 = vld [vmem:[%s10 + $0x30] sm:$0xff]
      %v1925 = vld [vmem:[%s10 + $0x38] sm:$0xff]
      %v1926 = vld [vmem:[%s10 + $0x40] sm:$0xff]
      %v1927 = vld [vmem:[%s10 + $0x48] sm:$0xff]
      %v1928 = vld [vmem:[%s10 + $0x50] sm:$0xff]
      %v1929 = vld [vmem:[%s10 + $0x58] sm:$0xff]
      %v1930 = vld [vmem:[%s10 + $0x60] sm:$0xff]
      %v1931 = vld [vmem:[%s10 + $0x68] sm:$0xff]
      %v1932 = vld [vmem:[%s10 + $0x70] sm:$0xff]
      %v1933 = vld [vmem:[%s10 + $0x78] sm:$0xff]
      %1934 = vmatprep.subr.mxu0 0.0
      %1935 = vmatpush1.msra.mxu0 %v1918
      %1936 = vmatprep.subr.mxu0 0.0
      %1937 = vmatpush1.msra.mxu0 %v1919
      %1938 = vmatprep.subr.mxu0 0.0
      %1939 = vmatpush1.msra.mxu0 %v1920
      %1940 = vmatprep.subr.mxu0 0.0
      %1941 = vmatpush1.msra.mxu0 %v1921
      %1942 = vmatprep.subr.mxu0 0.0
      %1943 = vmatpush1.msra.mxu0 %v1922
      %1944 = vmatprep.subr.mxu0 0.0
      %1945 = vmatpush1.msra.mxu0 %v1923
      %1946 = vmatprep.subr.mxu0 0.0
      %1947 = vmatpush1.msra.mxu0 %v1924
      %1948 = vmatprep.subr.mxu0 0.0
      %1949 = vmatpush1.msra.mxu0 %v1925
      %1950 = vmatprep.subr.mxu0 0.0
      %1951 = vmatpush1.msra.mxu0 %v1926
      %1952 = vmatprep.subr.mxu0 0.0
      %1953 = vmatpush1.msra.mxu0 %v1927
      %1954 = vmatprep.subr.mxu0 0.0
      %1955 = vmatpush1.msra.mxu0 %v1928
      %1956 = vmatprep.subr.mxu0 0.0
      %1957 = vmatpush1.msra.mxu0 %v1929
      %1958 = vmatprep.subr.mxu0 0.0
      %1959 = vmatpush1.msra.mxu0 %v1930
      %1960 = vmatprep.subr.mxu0 0.0
      %1961 = vmatpush1.msra.mxu0 %v1931
      %1962 = vmatprep.subr.mxu0 0.0
      %1963 = vmatpush1.msra.mxu0 %v1932
      %1964 = vmatprep.subr.mxu0 0.0
      %1965 = vmatpush1.msra.mxu0 %v1933
      %1966 = vmatprep.subr.mxu0 0.0
      %1967 = vmatpush1.msra.mxu0 0.0
      %1968 = vmatprep.subr.mxu0 0.0
      %1969 = vmatpush1.msra.mxu0 0.0
      %1970 = vmatprep.subr.mxu0 0.0
      %1971 = vmatpush1.msra.mxu0 0.0
      %1972 = vmatprep.subr.mxu0 0.0
      %1973 = vmatpush1.msra.mxu0 0.0
      %1974 = vmatprep.subr.mxu0 0.0
      %1975 = vmatpush1.msra.mxu0 0.0
      %1976 = vmatprep.subr.mxu0 0.0
      %1977 = vmatpush1.msra.mxu0 0.0
      %1978 = vmatprep.subr.mxu0 0.0
      %1979 = vmatpush1.msra.mxu0 0.0
      %1980 = vmatprep.subr.mxu0 0.0
      %1981 = vmatpush1.msra.mxu0 0.0
      %1982 = vmatprep.subr.mxu0 0.0
      %1983 = vmatpush1.msra.mxu0 0.0
      %1984 = vmatprep.subr.mxu0 0.0
      %1985 = vmatpush1.msra.mxu0 0.0
      %1986 = vmatprep.subr.mxu0 0.0
      %1987 = vmatpush1.msra.mxu0 0.0
      %1988 = vmatprep.subr.mxu0 0.0
      %1989 = vmatpush1.msra.mxu0 0.0
      %1990 = vmatprep.subr.mxu0 0.0
      %1991 = vmatpush1.msra.mxu0 0.0
      %1992 = vmatprep.subr.mxu0 0.0
      %1993 = vmatpush1.msra.mxu0 0.0
      %1994 = vmatprep.subr.mxu0 0.0
      %1995 = vmatpush1.msra.mxu0 0.0
      %1996 = vmatprep.subr.mxu0 0.0
      %1997 = vmatpush1.msra.mxu0 0.0
      %1998 = vmatprep.mubr.f32.mxu0 0.0
      %1999 = vmatmul.mubr.f32.gmra.mrb[0].mxu0 %v1917
      %v2000 = vpop.f32.mrb[0].mxu0
      %v2001 = vadd.f32 0.0, %v2000
      %v2002 = vpop.f32.mrb[0].mxu0
      %2003 = vdwg.mxu0
      %v2004 = vmax.f32 %v1917, %v2001
      %v2005 = vld [vmem:[%s2] sm:$0xff]
      %vm2006 = vcmask 64512
      %v2008 = vsel %vm2006, %v2005, 0
      %2010 = vmatprep.subr.mxu0 0.0
      %2011 = vmatpush1.msra.mxu0 %v2004
      %2012 = vmatprep.subr.mxu0 0.0
      %2013 = vmatpush1.msra.mxu0 0.0
      %2014 = vmatprep.subr.mxu0 0.0
      %2015 = vmatpush1.msra.mxu0 0.0
      %2016 = vmatprep.subr.mxu0 0.0
      %2017 = vmatpush1.msra.mxu0 0.0
      %2018 = vmatprep.subr.mxu0 0.0
      %2019 = vmatpush1.msra.mxu0 0.0
      %2020 = vmatprep.subr.mxu0 0.0
      %2021 = vmatpush1.msra.mxu0 0.0
      %2022 = vmatprep.subr.mxu0 0.0
      %2023 = vmatpush1.msra.mxu0 0.0
      %2024 = vmatprep.subr.mxu0 0.0
      %2025 = vmatpush1.msra.mxu0 0.0
      %2026 = vmatprep.subr.mxu0 0.0
      %2027 = vmatpush1.msra.mxu0 0.0
      %2028 = vmatprep.subr.mxu0 0.0
      %2029 = vmatpush1.msra.mxu0 0.0
      %2030 = vmatprep.subr.mxu0 0.0
      %2031 = vmatpush1.msra.mxu0 0.0
      %2032 = vmatprep.subr.mxu0 0.0
      %2033 = vmatpush1.msra.mxu0 0.0
      %2034 = vmatprep.subr.mxu0 0.0
      %2035 = vmatpush1.msra.mxu0 0.0
      %2036 = vmatprep.subr.mxu0 0.0
      %2037 = vmatpush1.msra.mxu0 0.0
      %2038 = vmatprep.subr.mxu0 0.0
      %2039 = vmatpush1.msra.mxu0 0.0
      %2040 = vmatprep.subr.mxu0 0.0
      %2041 = vmatpush1.msra.mxu0 0.0
      %2042 = vmatprep.subr.mxu0 0.0
      %2043 = vmatpush1.msra.mxu0 0.0
      %2044 = vmatprep.subr.mxu0 0.0
      %2045 = vmatpush1.msra.mxu0 0.0
      %2046 = vmatprep.subr.mxu0 0.0
      %2047 = vmatpush1.msra.mxu0 0.0
      %2048 = vmatprep.subr.mxu0 0.0
      %2049 = vmatpush1.msra.mxu0 0.0
      %2050 = vmatprep.subr.mxu0 0.0
      %2051 = vmatpush1.msra.mxu0 0.0
      %2052 = vmatprep.subr.mxu0 0.0
      %2053 = vmatpush1.msra.mxu0 0.0
      %2054 = vmatprep.subr.mxu0 0.0
      %2055 = vmatpush1.msra.mxu0 0.0
      %2056 = vmatprep.subr.mxu0 0.0
      %2057 = vmatpush1.msra.mxu0 0.0
      %2058 = vmatprep.subr.mxu0 0.0
      %2059 = vmatpush1.msra.mxu0 0.0
      %2060 = vmatprep.subr.mxu0 0.0
      %2061 = vmatpush1.msra.mxu0 0.0
      %2062 = vmatprep.subr.mxu0 0.0
      %2063 = vmatpush1.msra.mxu0 0.0
      %2064 = vmatprep.subr.mxu0 0.0
      %2065 = vmatpush1.msra.mxu0 0.0
      %2066 = vmatprep.subr.mxu0 0.0
      %2067 = vmatpush1.msra.mxu0 0.0
      %2068 = vmatprep.subr.mxu0 0.0
      %2069 = vmatpush1.msra.mxu0 0.0
      %2070 = vmatprep.subr.mxu0 0.0
      %2071 = vmatpush1.msra.mxu0 0.0
      %2072 = vmatprep.subr.mxu0 0.0
      %2073 = vmatpush1.msra.mxu0 0.0
      %2074 = vmatprep.mubr.f32.mxu0 0.0
      %2075 = vmatmul.mubr.f32.gmra.mrb[0].mxu0 %v2008
      %v2076 = vpop.f32.mrb[0].mxu0
      %v2077 = vadd.f32 0.0, %v2076
      %v2078 = vpop.f32.mrb[0].mxu0
      %2079 = vdwg.mxu0
      %s2080 = scalar_lea.vmem %s2, 8
      %v2081 = vld [vmem:[%s2080] sm:$0xff]
      %v2083 = vsel %vm2006, %v2081, 0
      %2085 = vmatprep.subr.mxu0 0.0
      %2086 = vmatpush1.msra.mxu0 %v2004
      %2087 = vmatprep.subr.mxu0 0.0
      %2088 = vmatpush1.msra.mxu0 0.0
      %2089 = vmatprep.subr.mxu0 0.0
      %2090 = vmatpush1.msra.mxu0 0.0
      %2091 = vmatprep.subr.mxu0 0.0
      %2092 = vmatpush1.msra.mxu0 0.0
      %2093 = vmatprep.subr.mxu0 0.0
      %2094 = vmatpush1.msra.mxu0 0.0
      %2095 = vmatprep.subr.mxu0 0.0
      %2096 = vmatpush1.msra.mxu0 0.0
      %2097 = vmatprep.subr.mxu0 0.0
      %2098 = vmatpush1.msra.mxu0 0.0
      %2099 = vmatprep.subr.mxu0 0.0
      %2100 = vmatpush1.msra.mxu0 0.0
      %2101 = vmatprep.subr.mxu0 0.0
      %2102 = vmatpush1.msra.mxu0 0.0
      %2103 = vmatprep.subr.mxu0 0.0
      %2104 = vmatpush1.msra.mxu0 0.0
      %2105 = vmatprep.subr.mxu0 0.0
      %2106 = vmatpush1.msra.mxu0 0.0
      %2107 = vmatprep.subr.mxu0 0.0
      %2108 = vmatpush1.msra.mxu0 0.0
      %2109 = vmatprep.subr.mxu0 0.0
      %2110 = vmatpush1.msra.mxu0 0.0
      %2111 = vmatprep.subr.mxu0 0.0
      %2112 = vmatpush1.msra.mxu0 0.0
      %2113 = vmatprep.subr.mxu0 0.0
      %2114 = vmatpush1.msra.mxu0 0.0
      %2115 = vmatprep.subr.mxu0 0.0
      %2116 = vmatpush1.msra.mxu0 0.0
      %2117 = vmatprep.subr.mxu0 0.0
      %2118 = vmatpush1.msra.mxu0 0.0
      %2119 = vmatprep.subr.mxu0 0.0
      %2120 = vmatpush1.msra.mxu0 0.0
      %2121 = vmatprep.subr.mxu0 0.0
      %2122 = vmatpush1.msra.mxu0 0.0
      %2123 = vmatprep.subr.mxu0 0.0
      %2124 = vmatpush1.msra.mxu0 0.0
      %2125 = vmatprep.subr.mxu0 0.0
      %2126 = vmatpush1.msra.mxu0 0.0
      %2127 = vmatprep.subr.mxu0 0.0
      %2128 = vmatpush1.msra.mxu0 0.0
      %2129 = vmatprep.subr.mxu0 0.0
      %2130 = vmatpush1.msra.mxu0 0.0
      %2131 = vmatprep.subr.mxu0 0.0
      %2132 = vmatpush1.msra.mxu0 0.0
      %2133 = vmatprep.subr.mxu0 0.0
      %2134 = vmatpush1.msra.mxu0 0.0
      %2135 = vmatprep.subr.mxu0 0.0
      %2136 = vmatpush1.msra.mxu0 0.0
      %2137 = vmatprep.subr.mxu0 0.0
      %2138 = vmatpush1.msra.mxu0 0.0
      %2139 = vmatprep.subr.mxu0 0.0
      %2140 = vmatpush1.msra.mxu0 0.0
      %2141 = vmatprep.subr.mxu0 0.0
      %2142 = vmatpush1.msra.mxu0 0.0
      %2143 = vmatprep.subr.mxu0 0.0
      %2144 = vmatpush1.msra.mxu0 0.0
      %2145 = vmatprep.subr.mxu0 0.0
      %2146 = vmatpush1.msra.mxu0 0.0
      %2147 = vmatprep.subr.mxu0 0.0
      %2148 = vmatpush1.msra.mxu0 0.0
      %2149 = vmatprep.mubr.f32.mxu0 0.0
      %2150 = vmatmul.mubr.f32.gmra.mrb[0].mxu0 %v2083
      %v2151 = vpop.f32.mrb[0].mxu0
      %v2152 = vadd.f32 0.0, %v2151
      %v2153 = vpop.f32.mrb[0].mxu0
      %2154 = vdwg.mxu0
      %v2155 = vld [vmem:[%s11] sm:$0xff]
      %v2156 = vld [vmem:[%s11 + $0x8] sm:$0xff]
      %v2157 = vld [vmem:[%s11 + $0x10] sm:$0xff]
      %v2158 = vld [vmem:[%s11 + $0x18] sm:$0xff]
      %v2159 = vld [vmem:[%s11 + $0x20] sm:$0xff]
      %v2160 = vld [vmem:[%s11 + $0x28] sm:$0xff]
      %v2161 = vld [vmem:[%s11 + $0x30] sm:$0xff]
      %v2162 = vld [vmem:[%s11 + $0x38] sm:$0xff]
      %v2163 = vld [vmem:[%s11 + $0x40] sm:$0xff]
      %v2164 = vld [vmem:[%s11 + $0x48] sm:$0xff]
      %v2165 = vld [vmem:[%s11 + $0x50] sm:$0xff]
      %v2166 = vld [vmem:[%s11 + $0x58] sm:$0xff]
      %v2167 = vld [vmem:[%s11 + $0x60] sm:$0xff]
      %v2168 = vld [vmem:[%s11 + $0x68] sm:$0xff]
      %v2169 = vld [vmem:[%s11 + $0x70] sm:$0xff]
      %v2170 = vld [vmem:[%s11 + $0x78] sm:$0xff]
      %s2171 = scalar_lea.vmem %s11, 128
      %v2172 = vld [vmem:[%s2171] sm:$0xff]
      %v2173 = vld [vmem:[%s2171 + $0x8] sm:$0xff]
      %v2174 = vld [vmem:[%s2171 + $0x10] sm:$0xff]
      %v2175 = vld [vmem:[%s2171 + $0x18] sm:$0xff]
      %v2176 = vld [vmem:[%s2171 + $0x20] sm:$0xff]
      %v2177 = vld [vmem:[%s2171 + $0x28] sm:$0xff]
      %v2178 = vld [vmem:[%s2171 + $0x30] sm:$0xff]
      %v2179 = vld [vmem:[%s2171 + $0x38] sm:$0xff]
      %v2180 = vld [vmem:[%s2171 + $0x40] sm:$0xff]
      %v2181 = vld [vmem:[%s2171 + $0x48] sm:$0xff]
      %v2182 = vld [vmem:[%s2171 + $0x50] sm:$0xff]
      %v2183 = vld [vmem:[%s2171 + $0x58] sm:$0xff]
      %v2184 = vld [vmem:[%s2171 + $0x60] sm:$0xff]
      %v2185 = vld [vmem:[%s2171 + $0x68] sm:$0xff]
      %v2186 = vld [vmem:[%s2171 + $0x70] sm:$0xff]
      %v2187 = vld [vmem:[%s2171 + $0x78] sm:$0xff]
      %2188 = vmatprep.subr.mxu0 0.0
      %2189 = vmatpush1.msra.mxu0 %v2172
      %2190 = vmatprep.subr.mxu0 0.0
      %2191 = vmatpush1.msra.mxu0 %v2173
      %2192 = vmatprep.subr.mxu0 0.0
      %2193 = vmatpush1.msra.mxu0 %v2174
      %2194 = vmatprep.subr.mxu0 0.0
      %2195 = vmatpush1.msra.mxu0 %v2175
      %2196 = vmatprep.subr.mxu0 0.0
      %2197 = vmatpush1.msra.mxu0 %v2176
      %2198 = vmatprep.subr.mxu0 0.0
      %2199 = vmatpush1.msra.mxu0 %v2177
      %2200 = vmatprep.subr.mxu0 0.0
      %2201 = vmatpush1.msra.mxu0 %v2178
      %2202 = vmatprep.subr.mxu0 0.0
      %2203 = vmatpush1.msra.mxu0 %v2179
      %2204 = vmatprep.subr.mxu0 0.0
      %2205 = vmatpush1.msra.mxu0 %v2180
      %2206 = vmatprep.subr.mxu0 0.0
      %2207 = vmatpush1.msra.mxu0 %v2181
      %2208 = vmatprep.subr.mxu0 0.0
      %2209 = vmatpush1.msra.mxu0 %v2182
      %2210 = vmatprep.subr.mxu0 0.0
      %2211 = vmatpush1.msra.mxu0 %v2183
      %2212 = vmatprep.subr.mxu0 0.0
      %2213 = vmatpush1.msra.mxu0 %v2184
      %2214 = vmatprep.subr.mxu0 0.0
      %2215 = vmatpush1.msra.mxu0 %v2185
      %2216 = vmatprep.subr.mxu0 0.0
      %2217 = vmatpush1.msra.mxu0 %v2186
      %2218 = vmatprep.subr.mxu0 0.0
      %2219 = vmatpush1.msra.mxu0 %v2187
      %2220 = vmatprep.subr.mxu0 0.0
      %2221 = vmatpush1.msra.mxu0 0.0
      %2222 = vmatprep.subr.mxu0 0.0
      %2223 = vmatpush1.msra.mxu0 0.0
      %2224 = vmatprep.subr.mxu0 0.0
      %2225 = vmatpush1.msra.mxu0 0.0
      %2226 = vmatprep.subr.mxu0 0.0
      %2227 = vmatpush1.msra.mxu0 0.0
      %2228 = vmatprep.subr.mxu0 0.0
      %2229 = vmatpush1.msra.mxu0 0.0
      %2230 = vmatprep.subr.mxu0 0.0
      %2231 = vmatpush1.msra.mxu0 0.0
      %2232 = vmatprep.subr.mxu0 0.0
      %2233 = vmatpush1.msra.mxu0 0.0
      %2234 = vmatprep.subr.mxu0 0.0
      %2235 = vmatpush1.msra.mxu0 0.0
      %2236 = vmatprep.subr.mxu0 0.0
      %2237 = vmatpush1.msra.mxu0 0.0
      %2238 = vmatprep.subr.mxu0 0.0
      %2239 = vmatpush1.msra.mxu0 0.0
      %2240 = vmatprep.subr.mxu0 0.0
      %2241 = vmatpush1.msra.mxu0 0.0
      %2242 = vmatprep.subr.mxu0 0.0
      %2243 = vmatpush1.msra.mxu0 0.0
      %2244 = vmatprep.subr.mxu0 0.0
      %2245 = vmatpush1.msra.mxu0 0.0
      %2246 = vmatprep.subr.mxu0 0.0
      %2247 = vmatpush1.msra.mxu0 0.0
      %2248 = vmatprep.subr.mxu0 0.0
      %2249 = vmatpush1.msra.mxu0 0.0
      %2250 = vmatprep.subr.mxu0 0.0
      %2251 = vmatpush1.msra.mxu0 0.0
      %2252 = vmatprep.mubr.f32.mxu0 0.0
      %2253 = vmatmul.mubr.f32.gmra.mrb[0].mxu0 %v2004
      %v2254 = vpop.f32.mrb[0].mxu0
      %v2255 = vadd.f32 0.0, %v2254
      %v2256 = vpop.f32.mrb[0].mxu0
      %2257 = vdwg.mxu0
      %2258 = vmatprep.subr.mxu0 0.0
      %2259 = vmatpush1.msra.mxu0 %v2155
      %2260 = vmatprep.subr.mxu0 0.0
      %2261 = vmatpush1.msra.mxu0 %v2156
      %2262 = vmatprep.subr.mxu0 0.0
      %2263 = vmatpush1.msra.mxu0 %v2157
      %2264 = vmatprep.subr.mxu0 0.0
      %2265 = vmatpush1.msra.mxu0 %v2158
      %2266 = vmatprep.subr.mxu0 0.0
      %2267 = vmatpush1.msra.mxu0 %v2159
      %2268 = vmatprep.subr.mxu0 0.0
      %2269 = vmatpush1.msra.mxu0 %v2160
      %2270 = vmatprep.subr.mxu0 0.0
      %2271 = vmatpush1.msra.mxu0 %v2161
      %2272 = vmatprep.subr.mxu0 0.0
      %2273 = vmatpush1.msra.mxu0 %v2162
      %2274 = vmatprep.subr.mxu0 0.0
      %2275 = vmatpush1.msra.mxu0 %v2163
      %2276 = vmatprep.subr.mxu0 0.0
      %2277 = vmatpush1.msra.mxu0 %v2164
      %2278 = vmatprep.subr.mxu0 0.0
      %2279 = vmatpush1.msra.mxu0 %v2165
      %2280 = vmatprep.subr.mxu0 0.0
      %2281 = vmatpush1.msra.mxu0 %v2166
      %2282 = vmatprep.subr.mxu0 0.0
      %2283 = vmatpush1.msra.mxu0 %v2167
      %2284 = vmatprep.subr.mxu0 0.0
      %2285 = vmatpush1.msra.mxu0 %v2168
      %2286 = vmatprep.subr.mxu0 0.0
      %2287 = vmatpush1.msra.mxu0 %v2169
      %2288 = vmatprep.subr.mxu0 0.0
      %2289 = vmatpush1.msra.mxu0 %v2170
      %2290 = vmatprep.subr.mxu0 0.0
      %2291 = vmatpush1.msra.mxu0 0.0
      %2292 = vmatprep.subr.mxu0 0.0
      %2293 = vmatpush1.msra.mxu0 0.0
      %2294 = vmatprep.subr.mxu0 0.0
      %2295 = vmatpush1.msra.mxu0 0.0
      %2296 = vmatprep.subr.mxu0 0.0
      %2297 = vmatpush1.msra.mxu0 0.0
      %2298 = vmatprep.subr.mxu0 0.0
      %2299 = vmatpush1.msra.mxu0 0.0
      %2300 = vmatprep.subr.mxu0 0.0
      %2301 = vmatpush1.msra.mxu0 0.0
      %2302 = vmatprep.subr.mxu0 0.0
      %2303 = vmatpush1.msra.mxu0 0.0
      %2304 = vmatprep.subr.mxu0 0.0
      %2305 = vmatpush1.msra.mxu0 0.0
      %2306 = vmatprep.subr.mxu0 0.0
      %2307 = vmatpush1.msra.mxu0 0.0
      %2308 = vmatprep.subr.mxu0 0.0
      %2309 = vmatpush1.msra.mxu0 0.0
      %2310 = vmatprep.subr.mxu0 0.0
      %2311 = vmatpush1.msra.mxu0 0.0
      %2312 = vmatprep.subr.mxu0 0.0
      %2313 = vmatpush1.msra.mxu0 0.0
      %2314 = vmatprep.subr.mxu0 0.0
      %2315 = vmatpush1.msra.mxu0 0.0
      %2316 = vmatprep.subr.mxu0 0.0
      %2317 = vmatpush1.msra.mxu0 0.0
      %2318 = vmatprep.subr.mxu0 0.0
      %2319 = vmatpush1.msra.mxu0 0.0
      %2320 = vmatprep.subr.mxu0 0.0
      %2321 = vmatpush1.msra.mxu0 0.0
      %2322 = vmatprep.mubr.f32.mxu0 0.0
      %2323 = vmatmul.mubr.f32.gmra.mrb[0].mxu0 %v2077
      %v2324 = vpop.f32.mrb[0].mxu0
      %v2325 = vadd.f32 %v2255, %v2324
      %v2326 = vpop.f32.mrb[0].mxu0
      %2327 = vdwg.mxu0
      %s2328 = scalar_lea.vmem %s11, 256
      %v2329 = vld [vmem:[%s2328] sm:$0xff]
      %v2330 = vld [vmem:[%s2328 + $0x8] sm:$0xff]
      %v2331 = vld [vmem:[%s2328 + $0x10] sm:$0xff]
      %v2332 = vld [vmem:[%s2328 + $0x18] sm:$0xff]
      %v2333 = vld [vmem:[%s2328 + $0x20] sm:$0xff]
      %v2334 = vld [vmem:[%s2328 + $0x28] sm:$0xff]
      %v2335 = vld [vmem:[%s2328 + $0x30] sm:$0xff]
      %v2336 = vld [vmem:[%s2328 + $0x38] sm:$0xff]
      %v2337 = vld [vmem:[%s2328 + $0x40] sm:$0xff]
      %v2338 = vld [vmem:[%s2328 + $0x48] sm:$0xff]
      %v2339 = vld [vmem:[%s2328 + $0x50] sm:$0xff]
      %v2340 = vld [vmem:[%s2328 + $0x58] sm:$0xff]
      %v2341 = vld [vmem:[%s2328 + $0x60] sm:$0xff]
      %v2342 = vld [vmem:[%s2328 + $0x68] sm:$0xff]
      %v2343 = vld [vmem:[%s2328 + $0x70] sm:$0xff]
      %v2344 = vld [vmem:[%s2328 + $0x78] sm:$0xff]
      %2345 = vmatprep.subr.mxu0 0.0
      %2346 = vmatpush1.msra.mxu0 %v2329
      %2347 = vmatprep.subr.mxu0 0.0
      %2348 = vmatpush1.msra.mxu0 %v2330
      %2349 = vmatprep.subr.mxu0 0.0
      %2350 = vmatpush1.msra.mxu0 %v2331
      %2351 = vmatprep.subr.mxu0 0.0
      %2352 = vmatpush1.msra.mxu0 %v2332
      %2353 = vmatprep.subr.mxu0 0.0
      %2354 = vmatpush1.msra.mxu0 %v2333
      %2355 = vmatprep.subr.mxu0 0.0
      %2356 = vmatpush1.msra.mxu0 %v2334
      %2357 = vmatprep.subr.mxu0 0.0
      %2358 = vmatpush1.msra.mxu0 %v2335
      %2359 = vmatprep.subr.mxu0 0.0
      %2360 = vmatpush1.msra.mxu0 %v2336
      %2361 = vmatprep.subr.mxu0 0.0
      %2362 = vmatpush1.msra.mxu0 %v2337
      %2363 = vmatprep.subr.mxu0 0.0
      %2364 = vmatpush1.msra.mxu0 %v2338
      %2365 = vmatprep.subr.mxu0 0.0
      %2366 = vmatpush1.msra.mxu0 %v2339
      %2367 = vmatprep.subr.mxu0 0.0
      %2368 = vmatpush1.msra.mxu0 %v2340
      %2369 = vmatprep.subr.mxu0 0.0
      %2370 = vmatpush1.msra.mxu0 %v2341
      %2371 = vmatprep.subr.mxu0 0.0
      %2372 = vmatpush1.msra.mxu0 %v2342
      %2373 = vmatprep.subr.mxu0 0.0
      %2374 = vmatpush1.msra.mxu0 %v2343
      %2375 = vmatprep.subr.mxu0 0.0
      %2376 = vmatpush1.msra.mxu0 %v2344
      %2377 = vmatprep.subr.mxu0 0.0
      %2378 = vmatpush1.msra.mxu0 0.0
      %2379 = vmatprep.subr.mxu0 0.0
      %2380 = vmatpush1.msra.mxu0 0.0
      %2381 = vmatprep.subr.mxu0 0.0
      %2382 = vmatpush1.msra.mxu0 0.0
      %2383 = vmatprep.subr.mxu0 0.0
      %2384 = vmatpush1.msra.mxu0 0.0
      %2385 = vmatprep.subr.mxu0 0.0
      %2386 = vmatpush1.msra.mxu0 0.0
      %2387 = vmatprep.subr.mxu0 0.0
      %2388 = vmatpush1.msra.mxu0 0.0
      %2389 = vmatprep.subr.mxu0 0.0
      %2390 = vmatpush1.msra.mxu0 0.0
      %2391 = vmatprep.subr.mxu0 0.0
      %2392 = vmatpush1.msra.mxu0 0.0
      %2393 = vmatprep.subr.mxu0 0.0
      %2394 = vmatpush1.msra.mxu0 0.0
      %2395 = vmatprep.subr.mxu0 0.0
      %2396 = vmatpush1.msra.mxu0 0.0
      %2397 = vmatprep.subr.mxu0 0.0
      %2398 = vmatpush1.msra.mxu0 0.0
      %2399 = vmatprep.subr.mxu0 0.0
      %2400 = vmatpush1.msra.mxu0 0.0
      %2401 = vmatprep.subr.mxu0 0.0
      %2402 = vmatpush1.msra.mxu0 0.0
      %2403 = vmatprep.subr.mxu0 0.0
      %2404 = vmatpush1.msra.mxu0 0.0
      %2405 = vmatprep.subr.mxu0 0.0
      %2406 = vmatpush1.msra.mxu0 0.0
      %2407 = vmatprep.subr.mxu0 0.0
      %2408 = vmatpush1.msra.mxu0 0.0
      %2409 = vmatprep.mubr.f32.mxu0 0.0
      %2410 = vmatmul.mubr.f32.gmra.mrb[0].mxu0 %v2152
      %v2411 = vpop.f32.mrb[0].mxu0
      %v2412 = vadd.f32 0.0, %v2411
      %v2413 = vpop.f32.mrb[0].mxu0
      %2414 = vdwg.mxu0
      %v2415 = vadd.f32 %v2325, %v2412
      %v2416 = vld [vmem:[%s12] sm:$0x1]
      %v2418 = vlaneseq
      %v2419 = vshrl.u32 %v2418, 7
      %v2420 = vsub.s32 0, %v2419
      %v2421 = vrot.slane %v2416, %v2420
      %v2423 = vadd.f32 %v2415, %v2421
      %v2424 = vmax.f32 %v2423, 0.0
      %2425 = vst.msk [vmem:[%s438] sm:$0xff] %vm626, %v2424
      %p2426 = scmp.lt.s32.totalorder %s24, 1
      %s2427 = scalar_select %p2426, %s24, 1
      %s2428 = smul.addr %s2427, 8
      %s2429 = scalar_lea.vmem %s13, %s2428
      // Predicated region
      $region73: #{block_group_forward.1} parent=71 // pred_check
        %p2430 = pneg %p320
      $region74: #{block_group_forward.1} parent=71 // pred_check_branch
        %2432 = sbr.rel (%p2430) target = $region76
      $region75: #{block_group_forward.1} parent=71 // pred_region
        _
      $region76: #{block_group_forward.1} parent=71 // pred_fallthru
        _
    $region72: #{block_group_forward.1} parent=5 // pred_fallthru
      _
    %p2433 = scmp.le.s32.totalorder 2, %s19
    // Predicated region
    $region77: #{block_group_forward.1} parent=5 // pred_check
      %p2434 = pneg %p2433
    $region78: #{block_group_forward.1} parent=5 // pred_check_branch
      %2436 = sbr.rel (%p2434) target = $region80
    $region79: #{block_group_forward.1} parent=5 // pred_region
      %s2437 = ssub.s32 %s19, 2
      // Predicated region
      $region81: #{block_group_forward.1} parent=79 // pred_check
        %p2438 = pneg %p326
      $region82: #{block_group_forward.1} parent=79 // pred_check_branch
        %2440 = sbr.rel (%p2438) target = $region84
      $region83: #{block_group_forward.1} parent=79 // pred_region
        %p2441 = scmp.lt.s32.totalorder %s25, 1
        %s2442 = scalar_select %p2441, %s25, 1
        %s2443 = smul.addr %s2442, 8
        %s2444 = scalar_lea.vmem %s13, %s2443
      $region84: #{block_group_forward.1} parent=79 // pred_fallthru
        _
    $region80: #{block_group_forward.1} parent=5 // pred_fallthru
      _
  $region6: #{block_group_forward.1} parent=0 // loop_footer
    %s23 = sadd.s32 1, %s19
  $region7: #{block_group_forward.1} parent=0 // loop_footer_branch
    %18 = sbr.rel target = $region3
  $region8: #{block_group_forward.1} parent=0 // loop_exit
    _

</llo_original>
